<compile_context>
chip_gen: v6e
topology: v6e:2x2x1
jax: 0.10.0
libtpu: 0.0.40
codegen_flags: <defaults>
</compile_context>

<pallas_src>
import functools

import jax
import jax.numpy as jnp
from jax.experimental import pallas as pl
from jax.experimental.pallas import tpu as pltpu


# ---------------------------------------------------------------------------
# Small host-side helpers
# ---------------------------------------------------------------------------

def _lane_pad(c):
    """Round a channel count up to the 128-lane vreg width."""
    return ((c + 127) // 128) * 128


def _pad_lanes(a, cpad):
    c = a.shape[-1]
    if c == cpad:
        return a
    return jnp.pad(a, [(0, 0)] * (a.ndim - 1) + [(0, cpad - c)])


def _num_tensorcores():
    """Best-effort TensorCores per chip: v7x has 2, v5e/v6e have 1."""
    try:
        kind = jax.devices()[0].device_kind.lower()
    except Exception:
        return 1
    return 2 if "v7" in kind else 1


def _pick_block_batches(total_b, nq, nk, *, must_divide=None, num_cores=1,
                        target_rows=2048):
    """Batch elements per grid step.

    Picks the largest bb such that: bb divides `must_divide` (so block
    boundaries align with the x/z split in the fused cross pass), the grid
    still has >= num_cores steps (v7x megacore), bb*nq stays near
    `target_rows` (amortize the ~0.35us/step pipeline overhead), and row
    blocks are sublane(8)-aligned unless they cover the full extent.
    On single-TC chips with small B this degenerates to grid=1."""
    must_divide = must_divide or total_b
    cap = must_divide
    if num_cores > 1:
        cap = min(cap, max(1, total_b // num_cores))
    cap = min(cap, max(1, target_rows // max(nq, 1)))
    for bb in range(cap, 0, -1):
        if must_divide % bb:
            continue
        if bb != total_b and ((bb * nq) % 8 or (bb * nk) % 8):
            continue
        return bb
    return total_b if must_divide == total_b else None


def _prep_proj_weights(params, c, cpad):
    """Output-projection weight/bias, transposed to (in, out), lane-padded."""
    wproj = _pad_lanes(params["wproj"].T, cpad).astype(jnp.bfloat16)   # (C, Cpad)
    bproj = _pad_lanes(params["bproj"].reshape(1, c).astype(jnp.float32), cpad)
    return wproj, bproj


# ---------------------------------------------------------------------------
# Kernels
# ---------------------------------------------------------------------------

def _mha_core(q_ref, kv_ref, o_ref, *, bb, nq, nk, num_heads, head_dim,
              k_off, v_off):
    """Multi-head attention core.

    q_ref : (bb*nq, *) bf16 VMEM scratch holding projected queries (attention
            scale pre-folded into the weight); head h's channels start at
            h*head_dim.
    kv_ref: (bb*nk, *) bf16 VMEM scratch holding projected keys/values; head
            h's key channels start at k_off + h*head_dim, value channels at
            v_off + h*head_dim.
    o_ref : (bb*nq, C) bf16 VMEM scratch receiving the PyTorch-layout
            (attn @ v).transpose(1, 2).reshape(B, N, C) result.

    Heads are looped (num_heads iterations); batches are handled inside each
    iteration by a batched einsum, so narrow head-column extracts/stores scale
    with num_heads, not bb*num_heads.
    """
    for h in range(num_heads):
        d0 = h * head_dim
        qh = q_ref[:, d0:d0 + head_dim].reshape(bb, nq, head_dim)
        kh = kv_ref[:, k_off + d0:k_off + d0 + head_dim].reshape(bb, nk, head_dim)
        vh = kv_ref[:, v_off + d0:v_off + d0 + head_dim].reshape(bb, nk, head_dim)
        # bf16 MXU operands, f32 accumulation; softmax math stays f32.
        s = jnp.einsum("bqd,bkd->bqk", qh, kh,
                       preferred_element_type=jnp.float32)        # (bb, nq, nk)
        s = s - jnp.max(s, axis=-1, keepdims=True)
        p = jnp.exp(s)
        inv_l = pl.reciprocal(jnp.sum(p, axis=-1, keepdims=True),
                              approx=True)                         # (bb, nq, 1)
        # attn_drop / proj_drop are p=0.0 -> identity.  Normalize AFTER the
        # value matmul so the scaling touches (nq, hd), not (nq, nk).
        o = jnp.einsum("bqk,bkd->bqd", p.astype(jnp.bfloat16), vh,
                       preferred_element_type=jnp.float32) * inv_l
        o_ref[:, d0:d0 + head_dim] = (
            o.reshape(bb * nq, head_dim).astype(o_ref.dtype))


def _self_attn_kernel(x_ref, wqkv_ref, wproj_ref, bproj_ref, out_ref,
                      qkv_scratch, o_scratch, *, bb, n, num_heads, head_dim):
    """Self-attention: fused q|k|v projection, MHA core, output projection.

    x_ref     : (bb*n, C) bf16 tokens (flattened over batch)
    wqkv_ref  : (C, 3C) bf16  [Wq*scale | Wk | Wv], transposed to (in, out)
    wproj_ref : (C, Cpad) bf16 lane-padded proj weight, transposed
    bproj_ref : (1, Cpad) f32  lane-padded proj bias
    out_ref   : (bb*n, Cpad)   lane-dense output block
    """
    c = num_heads * head_dim
    qkv_scratch[...] = jnp.dot(x_ref[...], wqkv_ref[...],
                               preferred_element_type=jnp.float32
                               ).astype(qkv_scratch.dtype)
    _mha_core(qkv_scratch, qkv_scratch, o_scratch, bb=bb, nq=n, nk=n,
              num_heads=num_heads, head_dim=head_dim, k_off=c, v_off=2 * c)
    y = jnp.dot(o_scratch[...], wproj_ref[...],
                preferred_element_type=jnp.float32) + bproj_ref[...]
    out_ref[...] = y.astype(out_ref.dtype)


def _cross_attn_kernel(xq_ref, xkv_ref, wq_ref, wkv_ref, wproj_ref, bproj_ref,
                       out_ref, q_scratch, kv_scratch, o_scratch,
                       *, bb, nq, nk, num_heads, head_dim):
    """Cross-attention: queries from xq_ref, keys/values from xkv_ref."""
    c = num_heads * head_dim
    q_scratch[...] = jnp.dot(xq_ref[...], wq_ref[...],
                             preferred_element_type=jnp.float32
                             ).astype(q_scratch.dtype)
    kv_scratch[...] = jnp.dot(xkv_ref[...], wkv_ref[...],
                              preferred_element_type=jnp.float32
                              ).astype(kv_scratch.dtype)
    _mha_core(q_scratch, kv_scratch, o_scratch, bb=bb, nq=nq, nk=nk,
              num_heads=num_heads, head_dim=head_dim, k_off=0, v_off=c)
    y = jnp.dot(o_scratch[...], wproj_ref[...],
                preferred_element_type=jnp.float32) + bproj_ref[...]
    out_ref[...] = y.astype(out_ref.dtype)


# ---------------------------------------------------------------------------
# pallas_call wrappers
# ---------------------------------------------------------------------------

def _self_attention_pallas(x, params, *, num_heads):
    B, N, C = x.shape
    head_dim = C // num_heads
    scale = head_dim ** (-0.5)
    cpad = _lane_pad(C)
    bb = _pick_block_batches(B, N, N, num_cores=_num_tensorcores())
    grid = B // bb

    # Weight prep (host/XLA side): transpose to (in, out), fold the attention
    # scale into the q block, fuse q|k|v so x is DMA'd once, lane-pad proj.
    wqkv = jnp.concatenate([params["wq"].T * scale, params["wkv"].T],
                           axis=1).astype(jnp.bfloat16)           # (C, 3C)
    wproj, bproj = _prep_proj_weights(params, C, cpad)

    x_flat = x.reshape(B * N, C).astype(jnp.bfloat16)

    kernel = functools.partial(_self_attn_kernel, bb=bb, n=N,
                               num_heads=num_heads, head_dim=head_dim)
    out_flat = pl.pallas_call(
        kernel,
        out_shape=jax.ShapeDtypeStruct((B * N, cpad), x.dtype),
        grid_spec=pltpu.PrefetchScalarGridSpec(
            num_scalar_prefetch=0,
            grid=(grid,),
            in_specs=[
                pl.BlockSpec((bb * N, C), lambda i: (i, 0)),
                pl.BlockSpec((C, 3 * C), lambda i: (0, 0)),
                pl.BlockSpec((C, cpad), lambda i: (0, 0)),
                pl.BlockSpec((1, cpad), lambda i: (0, 0)),
            ],
            out_specs=pl.BlockSpec((bb * N, cpad), lambda i: (i, 0)),
            scratch_shapes=[
                pltpu.VMEM((bb * N, 3 * C), jnp.bfloat16),
                pltpu.VMEM((bb * N, C), jnp.bfloat16),
            ],
        ),
        compiler_params=pltpu.CompilerParams(
            dimension_semantics=("parallel",)),
    )(x_flat, wqkv, wproj, bproj)
    return out_flat[:, :C].reshape(B, N, C)


def _cross_call(xq_flat, xkv_flat, kv_index_map, params, *, total_b, nq, nk,
                bb, num_heads, out_dtype):
    C = params["wq"].shape[0]
    head_dim = C // num_heads
    scale = head_dim ** (-0.5)
    cpad = _lane_pad(C)
    grid = total_b // bb

    wq = (params["wq"].T * scale).astype(jnp.bfloat16)            # (C, C)
    wkv = params["wkv"].T.astype(jnp.bfloat16)                    # (C, 2C)
    wproj, bproj = _prep_proj_weights(params, C, cpad)

    kernel = functools.partial(_cross_attn_kernel, bb=bb, nq=nq, nk=nk,
                               num_heads=num_heads, head_dim=head_dim)
    out_flat = pl.pallas_call(
        kernel,
        out_shape=jax.ShapeDtypeStruct((total_b * nq, cpad), out_dtype),
        grid_spec=pltpu.PrefetchScalarGridSpec(
            num_scalar_prefetch=0,
            grid=(grid,),
            in_specs=[
                pl.BlockSpec((bb * nq, C), lambda i: (i, 0)),
                pl.BlockSpec((bb * nk, C), kv_index_map),
                pl.BlockSpec((C, C), lambda i: (0, 0)),
                pl.BlockSpec((C, 2 * C), lambda i: (0, 0)),
                pl.BlockSpec((C, cpad), lambda i: (0, 0)),
                pl.BlockSpec((1, cpad), lambda i: (0, 0)),
            ],
            out_specs=pl.BlockSpec((bb * nq, cpad), lambda i: (i, 0)),
            scratch_shapes=[
                pltpu.VMEM((bb * nq, C), jnp.bfloat16),
                pltpu.VMEM((bb * nk, 2 * C), jnp.bfloat16),
                pltpu.VMEM((bb * nq, C), jnp.bfloat16),
            ],
        ),
        compiler_params=pltpu.CompilerParams(
            dimension_semantics=("parallel",)),
    )(xq_flat, xkv_flat, wq, wkv, wproj, bproj)
    return out_flat[:, :C]


def _cross_attention_pallas(xq, xkv, params, *, num_heads):
    """General cross pass: queries from xq, keys/values from xkv."""
    B, Nq, C = xq.shape
    _, Nk, _ = xkv.shape
    bb = _pick_block_batches(B, Nq, Nk, num_cores=_num_tensorcores())
    out = _cross_call(xq.reshape(B * Nq, C).astype(jnp.bfloat16),
                      xkv.reshape(B * Nk, C).astype(jnp.bfloat16),
                      lambda i: (i, 0), params,
                      total_b=B, nq=Nq, nk=Nk, bb=bb, num_heads=num_heads,
                      out_dtype=xq.dtype)
    return out.reshape(B, Nq, C)


def _fused_cross_attention_pallas(x, z, params, *, num_heads):
    """Both cross passes (x->z and z->x) in ONE pallas_call.

    A single stacked [x; z] array feeds both the query and kv in_specs; the kv
    BlockSpec uses a rotated index_map (block (i + grid//2) % grid), so no
    second concatenated copy is materialized."""
    B, N, C = x.shape
    bb = _pick_block_batches(2 * B, N, N, must_divide=B,
                             num_cores=_num_tensorcores())
    if bb is None:
        # Rotation trick needs split-aligned blocks; fall back to an explicit
        # second kv stack (still a single pallas_call).
        xq = jnp.concatenate([x, z], axis=0)
        xkv = jnp.concatenate([z, x], axis=0)
        out = _cross_attention_pallas(xq, xkv, params, num_heads=num_heads)
        return out[:B], out[B:]
    grid = (2 * B) // bb
    half = grid // 2
    stacked = (jnp.concatenate([x, z], axis=0)
               .reshape(2 * B * N, C).astype(jnp.bfloat16))
    out = _cross_call(stacked, stacked,
                      lambda i: ((i + half) % grid, 0), params,
                      total_b=2 * B, nq=N, nk=N, bb=bb, num_heads=num_heads,
                      out_dtype=x.dtype)
    out = out.reshape(2 * B, N, C)
    return out[:B], out[B:]


def attention_forward(params, x, Hx, Wx, z=None, Hz=None, Wz=None, *,
                      num_heads=8):
    """Mirror of Attention.forward for sr_ratio=1, linear=False."""
    if z is None:
        return _self_attention_pallas(x, params, num_heads=num_heads)
    if x.shape[0] == z.shape[0] and x.shape[1] == z.shape[1]:
        return _fused_cross_attention_pallas(x, z, params, num_heads=num_heads)
    # Different sequence lengths: two separate cross calls.
    out_x = _cross_attention_pallas(x, z, params, num_heads=num_heads)
    out_z = _cross_attention_pallas(z, x, params, num_heads=num_heads)
    return out_x, out_z


# ---------------------------------------------------------------------------
# Parameters + pure-JAX reference
# ---------------------------------------------------------------------------

def init_params(key, dim):
    """Deterministic parameter init matching the module's shapes.

    nn.Linear weight is (out, in); trunc_normal(std=0.02) is approximated by
    normal * 0.02.  qkv_bias=False -> q/kv have no bias; proj bias is 0.
    """
    k1, k2, k3 = jax.random.split(key, 3)
    return {
        "wq": jax.random.normal(k1, (dim, dim), jnp.float32) * 0.02,
        "wkv": jax.random.normal(k2, (2 * dim, dim), jnp.float32) * 0.02,
        "wproj": jax.random.normal(k3, (dim, dim), jnp.float32) * 0.02,
        "bproj": jnp.zeros((dim,), jnp.float32),
    }


def _reference_forward(params, xq, xkv, num_heads):
    """Pure-JAX f32 reference of the same path, for the correctness check."""
    B, Nq, C = xq.shape
    _, Nk, _ = xkv.shape
    hd = C // num_heads
    scale = hd ** (-0.5)
    q = xq @ params["wq"].T
    kv = xkv @ params["wkv"].T
    k, v = kv[..., :C], kv[..., C:]
    qh = q.reshape(B, Nq, num_heads, hd).transpose(0, 2, 1, 3)
    kh = k.reshape(B, Nk, num_heads, hd).transpose(0, 2, 1, 3)
    vh = v.reshape(B, Nk, num_heads, hd).transpose(0, 2, 1, 3)
    s = jnp.einsum("bhqd,bhkd->bhqk", qh, kh) * scale
    p = jax.nn.softmax(s, axis=-1)
    o = jnp.einsum("bhqk,bhkd->bhqd", p, vh)
    o = o.transpose(0, 2, 1, 3).reshape(B, Nq, C)
    return o @ params["wproj"].T + params["bproj"]


if __name__ == "__main__":
    B = 2
    dim = 32
    num_heads = 8
    Hx = Wx = 4
    Hz = Wz = 4
    Nx = Hx * Wx   # 16
    Nz = Hz * Wz   # 16

    key = jax.random.PRNGKey(0)
    kp, kx, kz = jax.random.split(key, 3)
    params = init_params(kp, dim)
    x = jax.random.normal(kx, (B, Nx, dim), jnp.float32)
    z = jax.random.normal(kz, (B, Nz, dim), jnp.float32)

    # Cross-attention path (z given) — both passes fused into one pallas_call.
    out_x, out_z = attention_forward(params, x, Hx, Wx, z, Hz, Wz,
                                     num_heads=num_heads)
    jax.block_until_ready(out_x)
    jax.block_until_ready(out_z)

    # Self-attention path (z=None) — single pallas_call with fused qkv weight.
    out_self = attention_forward(params, x, Hx, Wx, num_heads=num_heads)
    jax.block_until_ready(out_self)

    # Correctness check against a pure-JAX f32 reference.  Tolerances account
    # for bf16 activations/MXU operands and pl.reciprocal(approx=True).
    ref_x = _reference_forward(params, x, z, num_heads)
    ref_z = _reference_forward(params, z, x, num_heads)
    ref_s = _reference_forward(params, x, x, num_heads)
    assert jnp.allclose(out_x, ref_x, atol=3e-3, rtol=2e-2)
    assert jnp.allclose(out_z, ref_z, atol=3e-3, rtol=2e-2)
    assert jnp.allclose(out_self, ref_s, atol=3e-3, rtol=2e-2)

    print("KERNEL_OK")
</pallas_src>

<mosaic_0001>
module attributes {stable_mosaic.version = 11 : i64} {
  func.func @_cross_attn_kernel(%arg0: i32, %arg1: memref<32x32xbf16, #tpu.memory_space<vmem>>, %arg2: memref<32x32xbf16, #tpu.memory_space<vmem>>, %arg3: memref<32x32xbf16, #tpu.memory_space<vmem>>, %arg4: memref<32x64xbf16, #tpu.memory_space<vmem>>, %arg5: memref<32x128xbf16, #tpu.memory_space<vmem>>, %arg6: memref<1x128xf32, #tpu.memory_space<vmem>>, %arg7: memref<32x128xf32, #tpu.memory_space<vmem>>, %arg8: memref<32x32xbf16, #tpu.memory_space<vmem>>, %arg9: memref<32x64xbf16, #tpu.memory_space<vmem>>, %arg10: memref<32x32xbf16, #tpu.memory_space<vmem>>) attributes {dimension_semantics = [#tpu.dimension_semantics<parallel>], iteration_bounds = array<i64: 2>, scalar_prefetch = 0 : i64, scratch_operands = 3 : i64, tpu.core_type = #tpu.core_type<tc>, window_params = [{transform_indices = @transform_0, window_bounds = array<i64: 32, 32>}, {transform_indices = @transform_1, window_bounds = array<i64: 32, 32>}, {pipeline_mode = #tpu.pipeline_mode<synchronous>, transform_indices = @transform_2, window_bounds = array<i64: 32, 32>}, {pipeline_mode = #tpu.pipeline_mode<synchronous>, transform_indices = @transform_3, window_bounds = array<i64: 32, 64>}, {pipeline_mode = #tpu.pipeline_mode<synchronous>, transform_indices = @transform_4, window_bounds = array<i64: 32, 128>}, {pipeline_mode = #tpu.pipeline_mode<synchronous>, transform_indices = @transform_5, window_bounds = array<i64: 1, 128>}, {transform_indices = @transform_6, window_bounds = array<i64: 32, 128>}]} {
    %c0 = arith.constant 0 : index
    %c0_0 = arith.constant 0 : index
    %0 = vector.load %arg1[%c0, %c0_0] : memref<32x32xbf16, #tpu.memory_space<vmem>>, vector<32x32xbf16>
    %c0_1 = arith.constant 0 : index
    %c0_2 = arith.constant 0 : index
    %1 = vector.load %arg3[%c0_1, %c0_2] : memref<32x32xbf16, #tpu.memory_space<vmem>>, vector<32x32xbf16>
    %cst = arith.constant dense<0.000000e+00> : vector<32x32xf32>
    %2 = tpu.matmul %0, %1, %cst {dimension_numbers = #tpu.dot_dimension_numbers<[1], [0], [0], [1], [0, 0, 1, 1], [], []>} : vector<32x32xbf16>, vector<32x32xbf16>, vector<32x32xf32> -> vector<32x32xf32>
    %3 = arith.truncf %2 : vector<32x32xf32> to vector<32x32xbf16>
    %c0_3 = arith.constant 0 : index
    %c0_4 = arith.constant 0 : index
    %4 = vector.load %arg8[%c0_3, %c0_4] : memref<32x32xbf16, #tpu.memory_space<vmem>>, vector<32x32xbf16>
    tpu.vector_store %arg8[%c0_3, %c0_4], %3 {strides = array<i32>} : memref<32x32xbf16, #tpu.memory_space<vmem>>, vector<32x32xbf16>,
    %c0_5 = arith.constant 0 : index
    %c0_6 = arith.constant 0 : index
    %5 = vector.load %arg2[%c0_5, %c0_6] : memref<32x32xbf16, #tpu.memory_space<vmem>>, vector<32x32xbf16>
    %c0_7 = arith.constant 0 : index
    %c0_8 = arith.constant 0 : index
    %6 = vector.load %arg4[%c0_7, %c0_8] : memref<32x64xbf16, #tpu.memory_space<vmem>>, vector<32x64xbf16>
    %cst_9 = arith.constant dense<0.000000e+00> : vector<32x64xf32>
    %7 = tpu.matmul %5, %6, %cst_9 {dimension_numbers = #tpu.dot_dimension_numbers<[1], [0], [0], [1], [0, 0, 1, 1], [], []>} : vector<32x32xbf16>, vector<32x64xbf16>, vector<32x64xf32> -> vector<32x64xf32>
    %8 = arith.truncf %7 : vector<32x64xf32> to vector<32x64xbf16>
    %c0_10 = arith.constant 0 : index
    %c0_11 = arith.constant 0 : index
    %9 = vector.load %arg9[%c0_10, %c0_11] : memref<32x64xbf16, #tpu.memory_space<vmem>>, vector<32x64xbf16>
    tpu.vector_store %arg9[%c0_10, %c0_11], %8 {strides = array<i32>} : memref<32x64xbf16, #tpu.memory_space<vmem>>, vector<32x64xbf16>,
    %c0_12 = arith.constant 0 : index
    %c0_13 = arith.constant 0 : index
    %10 = vector.load %arg8[%c0_12, %c0_13] : memref<32x32xbf16, #tpu.memory_space<vmem>>, vector<32x4xbf16>
    %11 = vector.shape_cast %10 : vector<32x4xbf16> to vector<2x16x4xbf16>
    %c0_14 = arith.constant 0 : index
    %c0_15 = arith.constant 0 : index
    %12 = vector.load %arg9[%c0_14, %c0_15] : memref<32x64xbf16, #tpu.memory_space<vmem>>, vector<32x4xbf16>
    %13 = vector.shape_cast %12 : vector<32x4xbf16> to vector<2x16x4xbf16>
    %c0_16 = arith.constant 0 : index
    %c32 = arith.constant 32 : index
    %14 = vector.load %arg9[%c0_16, %c32] : memref<32x64xbf16, #tpu.memory_space<vmem>>, vector<32x4xbf16>
    %15 = vector.shape_cast %14 : vector<32x4xbf16> to vector<2x16x4xbf16>
    "tpu.trace_start"() <{level = 10 : i32, message = "bqd,bkd->bqk"}> : () -> ()
    %cst_17 = arith.constant dense<0.000000e+00> : vector<2x16x16xf32>
    %16 = tpu.matmul %11, %13, %cst_17 {dimension_numbers = #tpu.dot_dimension_numbers<[2], [2], [1], [1], [0, 0, 0, 1, 1, 1], [0], [0]>} : vector<2x16x4xbf16>, vector<2x16x4xbf16>, vector<2x16x16xf32> -> vector<2x16x16xf32>
    "tpu.trace_stop"() : () -> ()
    %cst_18 = arith.constant dense<0xFF800000> : vector<2x16xf32>
    %17 = vector.multi_reduction <maximumf>, %16, %cst_18 [2] : vector<2x16x16xf32> to vector<2x16xf32>
    %18 = vector.shape_cast %17 : vector<2x16xf32> to vector<2x16x1xf32>
    %19 = vector.broadcast %18 : vector<2x16x1xf32> to vector<2x16x16xf32>
    %20 = arith.subf %16, %19 : vector<2x16x16xf32>
    %21 = math.exp %20 : vector<2x16x16xf32>
    %cst_19 = arith.constant dense<0.000000e+00> : vector<2x16xf32>
    %22 = vector.multi_reduction <add>, %21, %cst_19 [2] : vector<2x16x16xf32> to vector<2x16xf32>
    %23 = vector.shape_cast %22 : vector<2x16xf32> to vector<2x16x1xf32>
    %24 = tpu.reciprocal %23 {approx = true} : vector<2x16x1xf32> -> vector<2x16x1xf32>
    %25 = arith.truncf %21 : vector<2x16x16xf32> to vector<2x16x16xbf16>
    "tpu.trace_start"() <{level = 10 : i32, message = "bqk,bkd->bqd"}> : () -> ()
    %cst_20 = arith.constant dense<0.000000e+00> : vector<2x16x4xf32>
    %26 = tpu.matmul %25, %15, %cst_20 {dimension_numbers = #tpu.dot_dimension_numbers<[2], [1], [1], [2], [0, 0, 0, 1, 1, 2], [0], [0]>} : vector<2x16x16xbf16>, vector<2x16x4xbf16>, vector<2x16x4xf32> -> vector<2x16x4xf32>
    "tpu.trace_stop"() : () -> ()
    %27 = vector.broadcast %24 : vector<2x16x1xf32> to vector<2x16x4xf32>
    %28 = arith.mulf %26, %27 : vector<2x16x4xf32>
    %29 = vector.shape_cast %28 : vector<2x16x4xf32> to vector<32x4xf32>
    %30 = arith.truncf %29 : vector<32x4xf32> to vector<32x4xbf16>
    %c0_21 = arith.constant 0 : index
    %c0_22 = arith.constant 0 : index
    %31 = vector.load %arg10[%c0_21, %c0_22] : memref<32x32xbf16, #tpu.memory_space<vmem>>, vector<32x4xbf16>
    tpu.vector_store %arg10[%c0_21, %c0_22], %30 {strides = array<i32>} : memref<32x32xbf16, #tpu.memory_space<vmem>>, vector<32x4xbf16>,
    %c0_23 = arith.constant 0 : index
    %c4 = arith.constant 4 : index
    %32 = vector.load %arg8[%c0_23, %c4] : memref<32x32xbf16, #tpu.memory_space<vmem>>, vector<32x4xbf16>
    %33 = vector.shape_cast %32 : vector<32x4xbf16> to vector<2x16x4xbf16>
    %c0_24 = arith.constant 0 : index
    %c4_25 = arith.constant 4 : index
    %34 = vector.load %arg9[%c0_24, %c4_25] : memref<32x64xbf16, #tpu.memory_space<vmem>>, vector<32x4xbf16>
    %35 = vector.shape_cast %34 : vector<32x4xbf16> to vector<2x16x4xbf16>
    %c0_26 = arith.constant 0 : index
    %c36 = arith.constant 36 : index
    %36 = vector.load %arg9[%c0_26, %c36] : memref<32x64xbf16, #tpu.memory_space<vmem>>, vector<32x4xbf16>
    %37 = vector.shape_cast %36 : vector<32x4xbf16> to vector<2x16x4xbf16>
    "tpu.trace_start"() <{level = 10 : i32, message = "bqd,bkd->bqk"}> : () -> ()
    %cst_27 = arith.constant dense<0.000000e+00> : vector<2x16x16xf32>
    %38 = tpu.matmul %33, %35, %cst_27 {dimension_numbers = #tpu.dot_dimension_numbers<[2], [2], [1], [1], [0, 0, 0, 1, 1, 1], [0], [0]>} : vector<2x16x4xbf16>, vector<2x16x4xbf16>, vector<2x16x16xf32> -> vector<2x16x16xf32>
    "tpu.trace_stop"() : () -> ()
    %cst_28 = arith.constant dense<0xFF800000> : vector<2x16xf32>
    %39 = vector.multi_reduction <maximumf>, %38, %cst_28 [2] : vector<2x16x16xf32> to vector<2x16xf32>
    %40 = vector.shape_cast %39 : vector<2x16xf32> to vector<2x16x1xf32>
    %41 = vector.broadcast %40 : vector<2x16x1xf32> to vector<2x16x16xf32>
    %42 = arith.subf %38, %41 : vector<2x16x16xf32>
    %43 = math.exp %42 : vector<2x16x16xf32>
    %cst_29 = arith.constant dense<0.000000e+00> : vector<2x16xf32>
    %44 = vector.multi_reduction <add>, %43, %cst_29 [2] : vector<2x16x16xf32> to vector<2x16xf32>
    %45 = vector.shape_cast %44 : vector<2x16xf32> to vector<2x16x1xf32>
    %46 = tpu.reciprocal %45 {approx = true} : vector<2x16x1xf32> -> vector<2x16x1xf32>
    %47 = arith.truncf %43 : vector<2x16x16xf32> to vector<2x16x16xbf16>
    "tpu.trace_start"() <{level = 10 : i32, message = "bqk,bkd->bqd"}> : () -> ()
    %cst_30 = arith.constant dense<0.000000e+00> : vector<2x16x4xf32>
    %48 = tpu.matmul %47, %37, %cst_30 {dimension_numbers = #tpu.dot_dimension_numbers<[2], [1], [1], [2], [0, 0, 0, 1, 1, 2], [0], [0]>} : vector<2x16x16xbf16>, vector<2x16x4xbf16>, vector<2x16x4xf32> -> vector<2x16x4xf32>
    "tpu.trace_stop"() : () -> ()
    %49 = vector.broadcast %46 : vector<2x16x1xf32> to vector<2x16x4xf32>
    %50 = arith.mulf %48, %49 : vector<2x16x4xf32>
    %51 = vector.shape_cast %50 : vector<2x16x4xf32> to vector<32x4xf32>
    %52 = arith.truncf %51 : vector<32x4xf32> to vector<32x4xbf16>
    %c0_31 = arith.constant 0 : index
    %c4_32 = arith.constant 4 : index
    %53 = vector.load %arg10[%c0_31, %c4_32] : memref<32x32xbf16, #tpu.memory_space<vmem>>, vector<32x4xbf16>
    tpu.vector_store %arg10[%c0_31, %c4_32], %52 {strides = array<i32>} : memref<32x32xbf16, #tpu.memory_space<vmem>>, vector<32x4xbf16>,
    %c0_33 = arith.constant 0 : index
    %c8 = arith.constant 8 : index
    %54 = vector.load %arg8[%c0_33, %c8] : memref<32x32xbf16, #tpu.memory_space<vmem>>, vector<32x4xbf16>
    %55 = vector.shape_cast %54 : vector<32x4xbf16> to vector<2x16x4xbf16>
    %c0_34 = arith.constant 0 : index
    %c8_35 = arith.constant 8 : index
    %56 = vector.load %arg9[%c0_34, %c8_35] : memref<32x64xbf16, #tpu.memory_space<vmem>>, vector<32x4xbf16>
    %57 = vector.shape_cast %56 : vector<32x4xbf16> to vector<2x16x4xbf16>
    %c0_36 = arith.constant 0 : index
    %c40 = arith.constant 40 : index
    %58 = vector.load %arg9[%c0_36, %c40] : memref<32x64xbf16, #tpu.memory_space<vmem>>, vector<32x4xbf16>
    %59 = vector.shape_cast %58 : vector<32x4xbf16> to vector<2x16x4xbf16>
    "tpu.trace_start"() <{level = 10 : i32, message = "bqd,bkd->bqk"}> : () -> ()
    %cst_37 = arith.constant dense<0.000000e+00> : vector<2x16x16xf32>
    %60 = tpu.matmul %55, %57, %cst_37 {dimension_numbers = #tpu.dot_dimension_numbers<[2], [2], [1], [1], [0, 0, 0, 1, 1, 1], [0], [0]>} : vector<2x16x4xbf16>, vector<2x16x4xbf16>, vector<2x16x16xf32> -> vector<2x16x16xf32>
    "tpu.trace_stop"() : () -> ()
    %cst_38 = arith.constant dense<0xFF800000> : vector<2x16xf32>
    %61 = vector.multi_reduction <maximumf>, %60, %cst_38 [2] : vector<2x16x16xf32> to vector<2x16xf32>
    %62 = vector.shape_cast %61 : vector<2x16xf32> to vector<2x16x1xf32>
    %63 = vector.broadcast %62 : vector<2x16x1xf32> to vector<2x16x16xf32>
    %64 = arith.subf %60, %63 : vector<2x16x16xf32>
    %65 = math.exp %64 : vector<2x16x16xf32>
    %cst_39 = arith.constant dense<0.000000e+00> : vector<2x16xf32>
    %66 = vector.multi_reduction <add>, %65, %cst_39 [2] : vector<2x16x16xf32> to vector<2x16xf32>
    %67 = vector.shape_cast %66 : vector<2x16xf32> to vector<2x16x1xf32>
    %68 = tpu.reciprocal %67 {approx = true} : vector<2x16x1xf32> -> vector<2x16x1xf32>
    %69 = arith.truncf %65 : vector<2x16x16xf32> to vector<2x16x16xbf16>
    "tpu.trace_start"() <{level = 10 : i32, message = "bqk,bkd->bqd"}> : () -> ()
    %cst_40 = arith.constant dense<0.000000e+00> : vector<2x16x4xf32>
    %70 = tpu.matmul %69, %59, %cst_40 {dimension_numbers = #tpu.dot_dimension_numbers<[2], [1], [1], [2], [0, 0, 0, 1, 1, 2], [0], [0]>} : vector<2x16x16xbf16>, vector<2x16x4xbf16>, vector<2x16x4xf32> -> vector<2x16x4xf32>
    "tpu.trace_stop"() : () -> ()
    %71 = vector.broadcast %68 : vector<2x16x1xf32> to vector<2x16x4xf32>
    %72 = arith.mulf %70, %71 : vector<2x16x4xf32>
    %73 = vector.shape_cast %72 : vector<2x16x4xf32> to vector<32x4xf32>
    %74 = arith.truncf %73 : vector<32x4xf32> to vector<32x4xbf16>
    %c0_41 = arith.constant 0 : index
    %c8_42 = arith.constant 8 : index
    %75 = vector.load %arg10[%c0_41, %c8_42] : memref<32x32xbf16, #tpu.memory_space<vmem>>, vector<32x4xbf16>
    tpu.vector_store %arg10[%c0_41, %c8_42], %74 {strides = array<i32>} : memref<32x32xbf16, #tpu.memory_space<vmem>>, vector<32x4xbf16>,
    %c0_43 = arith.constant 0 : index
    %c12 = arith.constant 12 : index
    %76 = vector.load %arg8[%c0_43, %c12] : memref<32x32xbf16, #tpu.memory_space<vmem>>, vector<32x4xbf16>
    %77 = vector.shape_cast %76 : vector<32x4xbf16> to vector<2x16x4xbf16>
    %c0_44 = arith.constant 0 : index
    %c12_45 = arith.constant 12 : index
    %78 = vector.load %arg9[%c0_44, %c12_45] : memref<32x64xbf16, #tpu.memory_space<vmem>>, vector<32x4xbf16>
    %79 = vector.shape_cast %78 : vector<32x4xbf16> to vector<2x16x4xbf16>
    %c0_46 = arith.constant 0 : index
    %c44 = arith.constant 44 : index
    %80 = vector.load %arg9[%c0_46, %c44] : memref<32x64xbf16, #tpu.memory_space<vmem>>, vector<32x4xbf16>
    %81 = vector.shape_cast %80 : vector<32x4xbf16> to vector<2x16x4xbf16>
    "tpu.trace_start"() <{level = 10 : i32, message = "bqd,bkd->bqk"}> : () -> ()
    %cst_47 = arith.constant dense<0.000000e+00> : vector<2x16x16xf32>
    %82 = tpu.matmul %77, %79, %cst_47 {dimension_numbers = #tpu.dot_dimension_numbers<[2], [2], [1], [1], [0, 0, 0, 1, 1, 1], [0], [0]>} : vector<2x16x4xbf16>, vector<2x16x4xbf16>, vector<2x16x16xf32> -> vector<2x16x16xf32>
    "tpu.trace_stop"() : () -> ()
    %cst_48 = arith.constant dense<0xFF800000> : vector<2x16xf32>
    %83 = vector.multi_reduction <maximumf>, %82, %cst_48 [2] : vector<2x16x16xf32> to vector<2x16xf32>
    %84 = vector.shape_cast %83 : vector<2x16xf32> to vector<2x16x1xf32>
    %85 = vector.broadcast %84 : vector<2x16x1xf32> to vector<2x16x16xf32>
    %86 = arith.subf %82, %85 : vector<2x16x16xf32>
    %87 = math.exp %86 : vector<2x16x16xf32>
    %cst_49 = arith.constant dense<0.000000e+00> : vector<2x16xf32>
    %88 = vector.multi_reduction <add>, %87, %cst_49 [2] : vector<2x16x16xf32> to vector<2x16xf32>
    %89 = vector.shape_cast %88 : vector<2x16xf32> to vector<2x16x1xf32>
    %90 = tpu.reciprocal %89 {approx = true} : vector<2x16x1xf32> -> vector<2x16x1xf32>
    %91 = arith.truncf %87 : vector<2x16x16xf32> to vector<2x16x16xbf16>
    "tpu.trace_start"() <{level = 10 : i32, message = "bqk,bkd->bqd"}> : () -> ()
    %cst_50 = arith.constant dense<0.000000e+00> : vector<2x16x4xf32>
    %92 = tpu.matmul %91, %81, %cst_50 {dimension_numbers = #tpu.dot_dimension_numbers<[2], [1], [1], [2], [0, 0, 0, 1, 1, 2], [0], [0]>} : vector<2x16x16xbf16>, vector<2x16x4xbf16>, vector<2x16x4xf32> -> vector<2x16x4xf32>
    "tpu.trace_stop"() : () -> ()
    %93 = vector.broadcast %90 : vector<2x16x1xf32> to vector<2x16x4xf32>
    %94 = arith.mulf %92, %93 : vector<2x16x4xf32>
    %95 = vector.shape_cast %94 : vector<2x16x4xf32> to vector<32x4xf32>
    %96 = arith.truncf %95 : vector<32x4xf32> to vector<32x4xbf16>
    %c0_51 = arith.constant 0 : index
    %c12_52 = arith.constant 12 : index
    %97 = vector.load %arg10[%c0_51, %c12_52] : memref<32x32xbf16, #tpu.memory_space<vmem>>, vector<32x4xbf16>
    tpu.vector_store %arg10[%c0_51, %c12_52], %96 {strides = array<i32>} : memref<32x32xbf16, #tpu.memory_space<vmem>>, vector<32x4xbf16>,
    %c0_53 = arith.constant 0 : index
    %c16 = arith.constant 16 : index
    %98 = vector.load %arg8[%c0_53, %c16] : memref<32x32xbf16, #tpu.memory_space<vmem>>, vector<32x4xbf16>
    %99 = vector.shape_cast %98 : vector<32x4xbf16> to vector<2x16x4xbf16>
    %c0_54 = arith.constant 0 : index
    %c16_55 = arith.constant 16 : index
    %100 = vector.load %arg9[%c0_54, %c16_55] : memref<32x64xbf16, #tpu.memory_space<vmem>>, vector<32x4xbf16>
    %101 = vector.shape_cast %100 : vector<32x4xbf16> to vector<2x16x4xbf16>
    %c0_56 = arith.constant 0 : index
    %c48 = arith.constant 48 : index
    %102 = vector.load %arg9[%c0_56, %c48] : memref<32x64xbf16, #tpu.memory_space<vmem>>, vector<32x4xbf16>
    %103 = vector.shape_cast %102 : vector<32x4xbf16> to vector<2x16x4xbf16>
    "tpu.trace_start"() <{level = 10 : i32, message = "bqd,bkd->bqk"}> : () -> ()
    %cst_57 = arith.constant dense<0.000000e+00> : vector<2x16x16xf32>
    %104 = tpu.matmul %99, %101, %cst_57 {dimension_numbers = #tpu.dot_dimension_numbers<[2], [2], [1], [1], [0, 0, 0, 1, 1, 1], [0], [0]>} : vector<2x16x4xbf16>, vector<2x16x4xbf16>, vector<2x16x16xf32> -> vector<2x16x16xf32>
    "tpu.trace_stop"() : () -> ()
    %cst_58 = arith.constant dense<0xFF800000> : vector<2x16xf32>
    %105 = vector.multi_reduction <maximumf>, %104, %cst_58 [2] : vector<2x16x16xf32> to vector<2x16xf32>
    %106 = vector.shape_cast %105 : vector<2x16xf32> to vector<2x16x1xf32>
    %107 = vector.broadcast %106 : vector<2x16x1xf32> to vector<2x16x16xf32>
    %108 = arith.subf %104, %107 : vector<2x16x16xf32>
    %109 = math.exp %108 : vector<2x16x16xf32>
    %cst_59 = arith.constant dense<0.000000e+00> : vector<2x16xf32>
    %110 = vector.multi_reduction <add>, %109, %cst_59 [2] : vector<2x16x16xf32> to vector<2x16xf32>
    %111 = vector.shape_cast %110 : vector<2x16xf32> to vector<2x16x1xf32>
    %112 = tpu.reciprocal %111 {approx = true} : vector<2x16x1xf32> -> vector<2x16x1xf32>
    %113 = arith.truncf %109 : vector<2x16x16xf32> to vector<2x16x16xbf16>
    "tpu.trace_start"() <{level = 10 : i32, message = "bqk,bkd->bqd"}> : () -> ()
    %cst_60 = arith.constant dense<0.000000e+00> : vector<2x16x4xf32>
    %114 = tpu.matmul %113, %103, %cst_60 {dimension_numbers = #tpu.dot_dimension_numbers<[2], [1], [1], [2], [0, 0, 0, 1, 1, 2], [0], [0]>} : vector<2x16x16xbf16>, vector<2x16x4xbf16>, vector<2x16x4xf32> -> vector<2x16x4xf32>
    "tpu.trace_stop"() : () -> ()
    %115 = vector.broadcast %112 : vector<2x16x1xf32> to vector<2x16x4xf32>
    %116 = arith.mulf %114, %115 : vector<2x16x4xf32>
    %117 = vector.shape_cast %116 : vector<2x16x4xf32> to vector<32x4xf32>
    %118 = arith.truncf %117 : vector<32x4xf32> to vector<32x4xbf16>
    %c0_61 = arith.constant 0 : index
    %c16_62 = arith.constant 16 : index
    %119 = vector.load %arg10[%c0_61, %c16_62] : memref<32x32xbf16, #tpu.memory_space<vmem>>, vector<32x4xbf16>
    tpu.vector_store %arg10[%c0_61, %c16_62], %118 {strides = array<i32>} : memref<32x32xbf16, #tpu.memory_space<vmem>>, vector<32x4xbf16>,
    %c0_63 = arith.constant 0 : index
    %c20 = arith.constant 20 : index
    %120 = vector.load %arg8[%c0_63, %c20] : memref<32x32xbf16, #tpu.memory_space<vmem>>, vector<32x4xbf16>
    %121 = vector.shape_cast %120 : vector<32x4xbf16> to vector<2x16x4xbf16>
    %c0_64 = arith.constant 0 : index
    %c20_65 = arith.constant 20 : index
    %122 = vector.load %arg9[%c0_64, %c20_65] : memref<32x64xbf16, #tpu.memory_space<vmem>>, vector<32x4xbf16>
    %123 = vector.shape_cast %122 : vector<32x4xbf16> to vector<2x16x4xbf16>
    %c0_66 = arith.constant 0 : index
    %c52 = arith.constant 52 : index
    %124 = vector.load %arg9[%c0_66, %c52] : memref<32x64xbf16, #tpu.memory_space<vmem>>, vector<32x4xbf16>
    %125 = vector.shape_cast %124 : vector<32x4xbf16> to vector<2x16x4xbf16>
    "tpu.trace_start"() <{level = 10 : i32, message = "bqd,bkd->bqk"}> : () -> ()
    %cst_67 = arith.constant dense<0.000000e+00> : vector<2x16x16xf32>
    %126 = tpu.matmul %121, %123, %cst_67 {dimension_numbers = #tpu.dot_dimension_numbers<[2], [2], [1], [1], [0, 0, 0, 1, 1, 1], [0], [0]>} : vector<2x16x4xbf16>, vector<2x16x4xbf16>, vector<2x16x16xf32> -> vector<2x16x16xf32>
    "tpu.trace_stop"() : () -> ()
    %cst_68 = arith.constant dense<0xFF800000> : vector<2x16xf32>
    %127 = vector.multi_reduction <maximumf>, %126, %cst_68 [2] : vector<2x16x16xf32> to vector<2x16xf32>
    %128 = vector.shape_cast %127 : vector<2x16xf32> to vector<2x16x1xf32>
    %129 = vector.broadcast %128 : vector<2x16x1xf32> to vector<2x16x16xf32>
    %130 = arith.subf %126, %129 : vector<2x16x16xf32>
    %131 = math.exp %130 : vector<2x16x16xf32>
    %cst_69 = arith.constant dense<0.000000e+00> : vector<2x16xf32>
    %132 = vector.multi_reduction <add>, %131, %cst_69 [2] : vector<2x16x16xf32> to vector<2x16xf32>
    %133 = vector.shape_cast %132 : vector<2x16xf32> to vector<2x16x1xf32>
    %134 = tpu.reciprocal %133 {approx = true} : vector<2x16x1xf32> -> vector<2x16x1xf32>
    %135 = arith.truncf %131 : vector<2x16x16xf32> to vector<2x16x16xbf16>
    "tpu.trace_start"() <{level = 10 : i32, message = "bqk,bkd->bqd"}> : () -> ()
    %cst_70 = arith.constant dense<0.000000e+00> : vector<2x16x4xf32>
    %136 = tpu.matmul %135, %125, %cst_70 {dimension_numbers = #tpu.dot_dimension_numbers<[2], [1], [1], [2], [0, 0, 0, 1, 1, 2], [0], [0]>} : vector<2x16x16xbf16>, vector<2x16x4xbf16>, vector<2x16x4xf32> -> vector<2x16x4xf32>
    "tpu.trace_stop"() : () -> ()
    %137 = vector.broadcast %134 : vector<2x16x1xf32> to vector<2x16x4xf32>
    %138 = arith.mulf %136, %137 : vector<2x16x4xf32>
    %139 = vector.shape_cast %138 : vector<2x16x4xf32> to vector<32x4xf32>
    %140 = arith.truncf %139 : vector<32x4xf32> to vector<32x4xbf16>
    %c0_71 = arith.constant 0 : index
    %c20_72 = arith.constant 20 : index
    %141 = vector.load %arg10[%c0_71, %c20_72] : memref<32x32xbf16, #tpu.memory_space<vmem>>, vector<32x4xbf16>
    tpu.vector_store %arg10[%c0_71, %c20_72], %140 {strides = array<i32>} : memref<32x32xbf16, #tpu.memory_space<vmem>>, vector<32x4xbf16>,
    %c0_73 = arith.constant 0 : index
    %c24 = arith.constant 24 : index
    %142 = vector.load %arg8[%c0_73, %c24] : memref<32x32xbf16, #tpu.memory_space<vmem>>, vector<32x4xbf16>
    %143 = vector.shape_cast %142 : vector<32x4xbf16> to vector<2x16x4xbf16>
    %c0_74 = arith.constant 0 : index
    %c24_75 = arith.constant 24 : index
    %144 = vector.load %arg9[%c0_74, %c24_75] : memref<32x64xbf16, #tpu.memory_space<vmem>>, vector<32x4xbf16>
    %145 = vector.shape_cast %144 : vector<32x4xbf16> to vector<2x16x4xbf16>
    %c0_76 = arith.constant 0 : index
    %c56 = arith.constant 56 : index
    %146 = vector.load %arg9[%c0_76, %c56] : memref<32x64xbf16, #tpu.memory_space<vmem>>, vector<32x4xbf16>
    %147 = vector.shape_cast %146 : vector<32x4xbf16> to vector<2x16x4xbf16>
    "tpu.trace_start"() <{level = 10 : i32, message = "bqd,bkd->bqk"}> : () -> ()
    %cst_77 = arith.constant dense<0.000000e+00> : vector<2x16x16xf32>
    %148 = tpu.matmul %143, %145, %cst_77 {dimension_numbers = #tpu.dot_dimension_numbers<[2], [2], [1], [1], [0, 0, 0, 1, 1, 1], [0], [0]>} : vector<2x16x4xbf16>, vector<2x16x4xbf16>, vector<2x16x16xf32> -> vector<2x16x16xf32>
    "tpu.trace_stop"() : () -> ()
    %cst_78 = arith.constant dense<0xFF800000> : vector<2x16xf32>
    %149 = vector.multi_reduction <maximumf>, %148, %cst_78 [2] : vector<2x16x16xf32> to vector<2x16xf32>
    %150 = vector.shape_cast %149 : vector<2x16xf32> to vector<2x16x1xf32>
    %151 = vector.broadcast %150 : vector<2x16x1xf32> to vector<2x16x16xf32>
    %152 = arith.subf %148, %151 : vector<2x16x16xf32>
    %153 = math.exp %152 : vector<2x16x16xf32>
    %cst_79 = arith.constant dense<0.000000e+00> : vector<2x16xf32>
    %154 = vector.multi_reduction <add>, %153, %cst_79 [2] : vector<2x16x16xf32> to vector<2x16xf32>
    %155 = vector.shape_cast %154 : vector<2x16xf32> to vector<2x16x1xf32>
    %156 = tpu.reciprocal %155 {approx = true} : vector<2x16x1xf32> -> vector<2x16x1xf32>
    %157 = arith.truncf %153 : vector<2x16x16xf32> to vector<2x16x16xbf16>
    "tpu.trace_start"() <{level = 10 : i32, message = "bqk,bkd->bqd"}> : () -> ()
    %cst_80 = arith.constant dense<0.000000e+00> : vector<2x16x4xf32>
    %158 = tpu.matmul %157, %147, %cst_80 {dimension_numbers = #tpu.dot_dimension_numbers<[2], [1], [1], [2], [0, 0, 0, 1, 1, 2], [0], [0]>} : vector<2x16x16xbf16>, vector<2x16x4xbf16>, vector<2x16x4xf32> -> vector<2x16x4xf32>
    "tpu.trace_stop"() : () -> ()
    %159 = vector.broadcast %156 : vector<2x16x1xf32> to vector<2x16x4xf32>
    %160 = arith.mulf %158, %159 : vector<2x16x4xf32>
    %161 = vector.shape_cast %160 : vector<2x16x4xf32> to vector<32x4xf32>
    %162 = arith.truncf %161 : vector<32x4xf32> to vector<32x4xbf16>
    %c0_81 = arith.constant 0 : index
    %c24_82 = arith.constant 24 : index
    %163 = vector.load %arg10[%c0_81, %c24_82] : memref<32x32xbf16, #tpu.memory_space<vmem>>, vector<32x4xbf16>
    tpu.vector_store %arg10[%c0_81, %c24_82], %162 {strides = array<i32>} : memref<32x32xbf16, #tpu.memory_space<vmem>>, vector<32x4xbf16>,
    %c0_83 = arith.constant 0 : index
    %c28 = arith.constant 28 : index
    %164 = vector.load %arg8[%c0_83, %c28] : memref<32x32xbf16, #tpu.memory_space<vmem>>, vector<32x4xbf16>
    %165 = vector.shape_cast %164 : vector<32x4xbf16> to vector<2x16x4xbf16>
    %c0_84 = arith.constant 0 : index
    %c28_85 = arith.constant 28 : index
    %166 = vector.load %arg9[%c0_84, %c28_85] : memref<32x64xbf16, #tpu.memory_space<vmem>>, vector<32x4xbf16>
    %167 = vector.shape_cast %166 : vector<32x4xbf16> to vector<2x16x4xbf16>
    %c0_86 = arith.constant 0 : index
    %c60 = arith.constant 60 : index
    %168 = vector.load %arg9[%c0_86, %c60] : memref<32x64xbf16, #tpu.memory_space<vmem>>, vector<32x4xbf16>
    %169 = vector.shape_cast %168 : vector<32x4xbf16> to vector<2x16x4xbf16>
    "tpu.trace_start"() <{level = 10 : i32, message = "bqd,bkd->bqk"}> : () -> ()
    %cst_87 = arith.constant dense<0.000000e+00> : vector<2x16x16xf32>
    %170 = tpu.matmul %165, %167, %cst_87 {dimension_numbers = #tpu.dot_dimension_numbers<[2], [2], [1], [1], [0, 0, 0, 1, 1, 1], [0], [0]>} : vector<2x16x4xbf16>, vector<2x16x4xbf16>, vector<2x16x16xf32> -> vector<2x16x16xf32>
    "tpu.trace_stop"() : () -> ()
    %cst_88 = arith.constant dense<0xFF800000> : vector<2x16xf32>
    %171 = vector.multi_reduction <maximumf>, %170, %cst_88 [2] : vector<2x16x16xf32> to vector<2x16xf32>
    %172 = vector.shape_cast %171 : vector<2x16xf32> to vector<2x16x1xf32>
    %173 = vector.broadcast %172 : vector<2x16x1xf32> to vector<2x16x16xf32>
    %174 = arith.subf %170, %173 : vector<2x16x16xf32>
    %175 = math.exp %174 : vector<2x16x16xf32>
    %cst_89 = arith.constant dense<0.000000e+00> : vector<2x16xf32>
    %176 = vector.multi_reduction <add>, %175, %cst_89 [2] : vector<2x16x16xf32> to vector<2x16xf32>
    %177 = vector.shape_cast %176 : vector<2x16xf32> to vector<2x16x1xf32>
    %178 = tpu.reciprocal %177 {approx = true} : vector<2x16x1xf32> -> vector<2x16x1xf32>
    %179 = arith.truncf %175 : vector<2x16x16xf32> to vector<2x16x16xbf16>
    "tpu.trace_start"() <{level = 10 : i32, message = "bqk,bkd->bqd"}> : () -> ()
    %cst_90 = arith.constant dense<0.000000e+00> : vector<2x16x4xf32>
    %180 = tpu.matmul %179, %169, %cst_90 {dimension_numbers = #tpu.dot_dimension_numbers<[2], [1], [1], [2], [0, 0, 0, 1, 1, 2], [0], [0]>} : vector<2x16x16xbf16>, vector<2x16x4xbf16>, vector<2x16x4xf32> -> vector<2x16x4xf32>
    "tpu.trace_stop"() : () -> ()
    %181 = vector.broadcast %178 : vector<2x16x1xf32> to vector<2x16x4xf32>
    %182 = arith.mulf %180, %181 : vector<2x16x4xf32>
    %183 = vector.shape_cast %182 : vector<2x16x4xf32> to vector<32x4xf32>
    %184 = arith.truncf %183 : vector<32x4xf32> to vector<32x4xbf16>
    %c0_91 = arith.constant 0 : index
    %c28_92 = arith.constant 28 : index
    %185 = vector.load %arg10[%c0_91, %c28_92] : memref<32x32xbf16, #tpu.memory_space<vmem>>, vector<32x4xbf16>
    tpu.vector_store %arg10[%c0_91, %c28_92], %184 {strides = array<i32>} : memref<32x32xbf16, #tpu.memory_space<vmem>>, vector<32x4xbf16>,
    %c0_93 = arith.constant 0 : index
    %c0_94 = arith.constant 0 : index
    %186 = vector.load %arg10[%c0_93, %c0_94] : memref<32x32xbf16, #tpu.memory_space<vmem>>, vector<32x32xbf16>
    %c0_95 = arith.constant 0 : index
    %c0_96 = arith.constant 0 : index
    %187 = vector.load %arg5[%c0_95, %c0_96] : memref<32x128xbf16, #tpu.memory_space<vmem>>, vector<32x128xbf16>
    %cst_97 = arith.constant dense<0.000000e+00> : vector<32x128xf32>
    %188 = tpu.matmul %186, %187, %cst_97 {dimension_numbers = #tpu.dot_dimension_numbers<[1], [0], [0], [1], [0, 0, 1, 1], [], []>} : vector<32x32xbf16>, vector<32x128xbf16>, vector<32x128xf32> -> vector<32x128xf32>
    %c0_98 = arith.constant 0 : index
    %c0_99 = arith.constant 0 : index
    %189 = vector.load %arg6[%c0_98, %c0_99] : memref<1x128xf32, #tpu.memory_space<vmem>>, vector<1x128xf32>
    %190 = vector.broadcast %189 : vector<1x128xf32> to vector<32x128xf32>
    %191 = arith.addf %188, %190 : vector<32x128xf32>
    %c0_100 = arith.constant 0 : index
    %c0_101 = arith.constant 0 : index
    %192 = vector.load %arg7[%c0_100, %c0_101] : memref<32x128xf32, #tpu.memory_space<vmem>>, vector<32x128xf32>
    tpu.vector_store %arg7[%c0_100, %c0_101], %191 {strides = array<i32>} : memref<32x128xf32, #tpu.memory_space<vmem>>, vector<32x128xf32>,
    return
  }
  func.func @transform_0(%arg0: i32) -> (i32, i32) {
    %c0_i32 = arith.constant 0 : i32
    %c0_i32_0 = arith.constant 0 : i32
    return %arg0, %c0_i32 : i32, i32
  }
  func.func @transform_1(%arg0: i32) -> (i32, i32) {
    %c1_i32 = arith.constant 1 : i32
    %0 = arith.addi %arg0, %c1_i32 : i32
    %c2_i32 = arith.constant 2 : i32
    %c0_i32 = arith.constant 0 : i32
    %1 = arith.cmpi eq, %c2_i32, %c0_i32 : i32
    %c1_i32_0 = arith.constant 1 : i32
    %2 = arith.select %1, %c1_i32_0, %c2_i32 : i32
    %3 = arith.remsi %0, %2 : i32
    %c0_i32_1 = arith.constant 0 : i32
    %4 = arith.cmpi ne, %3, %c0_i32_1 : i32
    %c0_i32_2 = arith.constant 0 : i32
    %5 = arith.cmpi slt, %3, %c0_i32_2 : i32
    %c0_i32_3 = arith.constant 0 : i32
    %6 = arith.cmpi slt, %2, %c0_i32_3 : i32
    %7 = arith.xori %5, %6 : i1
    %8 = arith.andi %7, %4 : i1
    %9 = arith.addi %3, %2 : i32
    %10 = arith.select %8, %9, %3 : i32
    %c0_i32_4 = arith.constant 0 : i32
    %c0_i32_5 = arith.constant 0 : i32
    return %10, %c0_i32_4 : i32, i32
  }
  func.func @transform_2(%arg0: i32) -> (i32, i32) {
    %c0_i32 = arith.constant 0 : i32
    %c0_i32_0 = arith.constant 0 : i32
    %c0_i32_1 = arith.constant 0 : i32
    return %c0_i32, %c0_i32_0 : i32, i32
  }
  func.func @transform_3(%arg0: i32) -> (i32, i32) {
    %c0_i32 = arith.constant 0 : i32
    %c0_i32_0 = arith.constant 0 : i32
    %c0_i32_1 = arith.constant 0 : i32
    return %c0_i32, %c0_i32_0 : i32, i32
  }
  func.func @transform_4(%arg0: i32) -> (i32, i32) {
    %c0_i32 = arith.constant 0 : i32
    %c0_i32_0 = arith.constant 0 : i32
    %c0_i32_1 = arith.constant 0 : i32
    return %c0_i32, %c0_i32_0 : i32, i32
  }
  func.func @transform_5(%arg0: i32) -> (i32, i32) {
    %c0_i32 = arith.constant 0 : i32
    %c0_i32_0 = arith.constant 0 : i32
    %c0_i32_1 = arith.constant 0 : i32
    return %c0_i32, %c0_i32_0 : i32, i32
  }
  func.func @transform_6(%arg0: i32) -> (i32, i32) {
    %c0_i32 = arith.constant 0 : i32
    %c0_i32_0 = arith.constant 0 : i32
    return %arg0, %c0_i32 : i32, i32
  }
}

</mosaic_0001>

<llo_original>
// kernel: tpu_custom_call.1
$region0: #{tpu_custom_call.1}
  #allocation0 [shape = 'u32[]', space=smem, size = 0x4, offset = 0x4, fixed_abs, tag = 'smem constant byte address 0x4 - core index']
  #allocation1 [shape = 'u32[144,128]{1,0:T(1,128)}', space=vmem, size = 0x12000, scoped, tag = 'internal scratch']
  #allocation2 [shape = 'bf16[32,32]{1,0:T(8,128)(2,1)}', space=vmem, size = 0x2000, scoped, tag = 'scratch operand']
  #allocation3 [shape = 'bf16[32,64]{1,0:T(8,128)(2,1)}', space=vmem, size = 0x2000, scoped, tag = 'scratch operand']
  #allocation4 [shape = 'bf16[32,32]{1,0:T(8,128)(2,1)}', space=vmem, size = 0x2000, scoped, tag = 'scratch operand']
  %s0 = inlined_call_operand.vmem [shape: bf16[64,32], index: 0, kind: input, shape index: {}]
  %s1 = inlined_call_operand.vmem [shape: bf16[64,32], index: 1, kind: input, shape index: {}]
  %s2 = inlined_call_operand.vmem [shape: bf16[32,32], index: 2, kind: input, shape index: {}]
  %s3 = inlined_call_operand.vmem [shape: bf16[32,64], index: 3, kind: input, shape index: {}]
  %s4 = inlined_call_operand.vmem [shape: bf16[32,128], index: 4, kind: input, shape index: {}]
  %s5 = inlined_call_operand.vmem [shape: f32[1,128], index: 5, kind: input, shape index: {}]
  %s6 = inlined_call_operand.hbm [shape: f32[64,128], index: 6, kind: output, shape index: {}]
  %s7 = sld [smem:[#allocation0]]
  $region57: #{tpu_custom_call.1} parent=0
    _
  %s9 = ssub.s32 1, %s7
  %s10 = scalar_select 0, %s9, %s7
  $region1: #{tpu_custom_call.1} parent=0
    #allocation5 [shape = 'u8[32768]{0}', space=vmem, size = 0x8000, scoped, tag = 'output window, operand 0']
    #allocation6 [shape = 's32[2]{0}', space=sflag, size = 0x8, scoped, tag = 'scoped memory for tpu_custom_call.1']
    %11 = vsyncpa [#allocation6], 0
    %s12 = scalar_lea.sflag [#allocation6], 1
    %13 = vsyncpa %s12, 0
    loop: start=0, step=1, limit=4
    $region2: #{tpu_custom_call.1} parent=1 // loop_pre_header
      _
    $region3: #{tpu_custom_call.1} parent=1 // loop_header
      %s15 = sphi 0, %s19
      %p16 = scmp.ge.s32.totalorder %s15, 4
      %s25 = sphi 0, %s27
      %s28 = sphi 0, %s25
      %s29 = sphi 0, %s28
      %s45 = sphi 0, %s29
      %s77 = sphi 0, %s79
      %s80 = sphi 0, %s77
      %s81 = sphi 0, %s80
      %s97 = sphi 0, %s81
      %s101 = sphi 0, %s101
      %s103 = sphi 0, %s101
      %s104 = sphi 0, %s103
      %s118 = sphi 0, %s104
      %s122 = sphi 0, %s122
      %s124 = sphi 0, %s122
      %s125 = sphi 0, %s124
      %s139 = sphi 0, %s125
      %s143 = sphi 0, %s143
      %s145 = sphi 0, %s143
      %s146 = sphi 0, %s145
      %s160 = sphi 0, %s146
      %s164 = sphi 0, %s164
      %s166 = sphi 0, %s164
      %s167 = sphi 0, %s166
      %s181 = sphi 0, %s167
      %s187 = sphi 0, %s189
      %s190 = sphi 0, %s187
      %s191 = sphi 0, %s190
      %s207 = sphi 0, %s191
    $region4: #{tpu_custom_call.1} parent=1 // loop_header_branch
      %18 = sbr.rel (%p16) target = $region8
    $region5: #{tpu_custom_call.1} parent=1 // loop_body
      %s20 = ssub.s32 %s15, 1
      %s21 = ssub.s32 %s15, 2
      %s22 = sadd.s32 %s15, 1
      %s23 = ssub.s32 %s15, %s22
      %p24 = scmp.eq.s32.totalorder %s23, 0
      %s26 = sadd.s32 %s25, 1
      %s27 = scalar_select %p24, %s25, %s26
      %p30 = pneg %p24
      %p31 = scmp.eq.s32.totalorder %s15, 1
      %p32 = por %p30, %p31
      %p33 = scmp.ne.s32.totalorder %s25, %s28
      %p34 = scmp.eq.s32.totalorder %s15, 0
      %p35 = por %p33, %p34
      %p36 = scmp.ne.s32.totalorder %s25, %s28
      %p37 = scmp.eq.s32.totalorder %s20, 1
      %p38 = por %p36, %p37
      %p39 = scmp.ne.s32.totalorder %s28, %s29
      %p40 = scmp.eq.s32.totalorder %s20, 0
      %p41 = por %p39, %p40
      %p42 = scmp.ne.s32.totalorder %s28, %s29
      %p43 = scmp.eq.s32.totalorder %s21, 1
      %p44 = por %p42, %p43
      %p46 = scmp.ne.s32.totalorder %s29, %s45
      %p47 = scmp.eq.s32.totalorder %s21, 0
      %p48 = por %p46, %p47
      %s49 = sadd.s32 %s15, 1
      %p50 = scmp.lt.s32.totalorder %s49, 0
      %s51 = ssub.s32 0, %s49
      %s52 = scalar_select %p50, %s51, %s49
      %s53 = sand.u32 %s52, 1
      %s54 = ssub.s32 0, %s53
      %s55 = scalar_select %p50, %s54, %s53
      %p56 = scmp.ne.s32.totalorder %s55, 0
      %p57 = scmp.lt.s32.totalorder %s55, 0
      %p58 = pnand %p57, %p56
      %p59 = pneg %p58
      %s60 = sadd.s32 %s55, 2
      %s61 = scalar_select %p59, %s60, %s55
      %s62 = sadd.s32 %s22, 1
      %p63 = scmp.lt.s32.totalorder %s62, 0
      %s64 = ssub.s32 0, %s62
      %s65 = scalar_select %p63, %s64, %s62
      %s66 = sand.u32 %s65, 1
      %s67 = ssub.s32 0, %s66
      %s68 = scalar_select %p63, %s67, %s66
      %p69 = scmp.ne.s32.totalorder %s68, 0
      %p70 = scmp.lt.s32.totalorder %s68, 0
      %p71 = pnand %p70, %p69
      %p72 = pneg %p71
      %s73 = sadd.s32 %s68, 2
      %s74 = scalar_select %p72, %s73, %s68
      %s75 = ssub.s32 %s61, %s74
      %p76 = scmp.eq.s32.totalorder %s75, 0
      %s78 = sadd.s32 %s77, 1
      %s79 = scalar_select %p76, %s77, %s78
      %p82 = pneg %p76
      %p83 = scmp.eq.s32.totalorder %s15, 1
      %p84 = por %p82, %p83
      %p85 = scmp.ne.s32.totalorder %s77, %s80
      %p86 = scmp.eq.s32.totalorder %s15, 0
      %p87 = por %p85, %p86
      %p88 = scmp.ne.s32.totalorder %s77, %s80
      %p89 = scmp.eq.s32.totalorder %s20, 1
      %p90 = por %p88, %p89
      %p91 = scmp.ne.s32.totalorder %s80, %s81
      %p92 = scmp.eq.s32.totalorder %s20, 0
      %p93 = por %p91, %p92
      %p94 = scmp.ne.s32.totalorder %s80, %s81
      %p95 = scmp.eq.s32.totalorder %s21, 1
      %p96 = por %p94, %p95
      %p98 = scmp.ne.s32.totalorder %s81, %s97
      %p99 = scmp.eq.s32.totalorder %s21, 0
      %p100 = por %p98, %p99
      %s102 = sadd.s32 %s101, 1
      %p105 = scmp.eq.s32.totalorder %s15, 1
      %p106 = scmp.ne.s32.totalorder %s101, %s103
      %p107 = scmp.eq.s32.totalorder %s15, 0
      %p108 = por %p106, %p107
      %p109 = scmp.ne.s32.totalorder %s101, %s103
      %p110 = scmp.eq.s32.totalorder %s20, 1
      %p111 = por %p109, %p110
      %p112 = scmp.ne.s32.totalorder %s103, %s104
      %p113 = scmp.eq.s32.totalorder %s20, 0
      %p114 = por %p112, %p113
      %p115 = scmp.ne.s32.totalorder %s103, %s104
      %p116 = scmp.eq.s32.totalorder %s21, 1
      %p117 = por %p115, %p116
      %p119 = scmp.ne.s32.totalorder %s104, %s118
      %p120 = scmp.eq.s32.totalorder %s21, 0
      %p121 = por %p119, %p120
      %s123 = sadd.s32 %s122, 1
      %p126 = scmp.eq.s32.totalorder %s15, 1
      %p127 = scmp.ne.s32.totalorder %s122, %s124
      %p128 = scmp.eq.s32.totalorder %s15, 0
      %p129 = por %p127, %p128
      %p130 = scmp.ne.s32.totalorder %s122, %s124
      %p131 = scmp.eq.s32.totalorder %s20, 1
      %p132 = por %p130, %p131
      %p133 = scmp.ne.s32.totalorder %s124, %s125
      %p134 = scmp.eq.s32.totalorder %s20, 0
      %p135 = por %p133, %p134
      %p136 = scmp.ne.s32.totalorder %s124, %s125
      %p137 = scmp.eq.s32.totalorder %s21, 1
      %p138 = por %p136, %p137
      %p140 = scmp.ne.s32.totalorder %s125, %s139
      %p141 = scmp.eq.s32.totalorder %s21, 0
      %p142 = por %p140, %p141
      %s144 = sadd.s32 %s143, 1
      %p147 = scmp.eq.s32.totalorder %s15, 1
      %p148 = scmp.ne.s32.totalorder %s143, %s145
      %p149 = scmp.eq.s32.totalorder %s15, 0
      %p150 = por %p148, %p149
      %p151 = scmp.ne.s32.totalorder %s143, %s145
      %p152 = scmp.eq.s32.totalorder %s20, 1
      %p153 = por %p151, %p152
      %p154 = scmp.ne.s32.totalorder %s145, %s146
      %p155 = scmp.eq.s32.totalorder %s20, 0
      %p156 = por %p154, %p155
      %p157 = scmp.ne.s32.totalorder %s145, %s146
      %p158 = scmp.eq.s32.totalorder %s21, 1
      %p159 = por %p157, %p158
      %p161 = scmp.ne.s32.totalorder %s146, %s160
      %p162 = scmp.eq.s32.totalorder %s21, 0
      %p163 = por %p161, %p162
      %s165 = sadd.s32 %s164, 1
      %p168 = scmp.eq.s32.totalorder %s15, 1
      %p169 = scmp.ne.s32.totalorder %s164, %s166
      %p170 = scmp.eq.s32.totalorder %s15, 0
      %p171 = por %p169, %p170
      %p172 = scmp.ne.s32.totalorder %s164, %s166
      %p173 = scmp.eq.s32.totalorder %s20, 1
      %p174 = por %p172, %p173
      %p175 = scmp.ne.s32.totalorder %s166, %s167
      %p176 = scmp.eq.s32.totalorder %s20, 0
      %p177 = por %p175, %p176
      %p178 = scmp.ne.s32.totalorder %s166, %s167
      %p179 = scmp.eq.s32.totalorder %s21, 1
      %p180 = por %p178, %p179
      %p182 = scmp.ne.s32.totalorder %s167, %s181
      %p183 = scmp.eq.s32.totalorder %s21, 0
      %p184 = por %p182, %p183
      %s185 = ssub.s32 %s15, %s22
      %p186 = scmp.eq.s32.totalorder %s185, 0
      %s188 = sadd.s32 %s187, 1
      %s189 = scalar_select %p186, %s187, %s188
      %p192 = pneg %p186
      %p193 = scmp.eq.s32.totalorder %s15, 1
      %p194 = por %p192, %p193
      %p195 = scmp.ne.s32.totalorder %s187, %s190
      %p196 = scmp.eq.s32.totalorder %s15, 0
      %p197 = por %p195, %p196
      %p198 = scmp.ne.s32.totalorder %s187, %s190
      %p199 = scmp.eq.s32.totalorder %s20, 1
      %p200 = por %p198, %p199
      %p201 = scmp.ne.s32.totalorder %s190, %s191
      %p202 = scmp.eq.s32.totalorder %s20, 0
      %p203 = por %p201, %p202
      %p204 = scmp.ne.s32.totalorder %s190, %s191
      %p205 = scmp.eq.s32.totalorder %s21, 1
      %p206 = por %p204, %p205
      %p208 = scmp.ne.s32.totalorder %s191, %s207
      %p209 = scmp.eq.s32.totalorder %s21, 0
      %p210 = por %p208, %p209
      %p211 = scmp.le.s32.totalorder 1, %s15
      %p212 = scmp.lt.s32.totalorder %s15, 3
      %p213 = pnand %p211, %p212
      %p214 = pneg %p213
      // Predicated region
      $region9: #{tpu_custom_call.1} parent=5 // pred_check
        _
      $region10: #{tpu_custom_call.1} parent=5 // pred_check_branch
        %216 = sbr.rel (%p213) target = $region12
      $region11: #{tpu_custom_call.1} parent=5 // pred_region
        %s217 = ssub.s32 %s15, 1
        // Predicated region
        $region13: #{tpu_custom_call.1} parent=11 // pred_check
          %p218 = pneg %p114
        $region14: #{tpu_custom_call.1} parent=11 // pred_check_branch
          %220 = sbr.rel (%p218) target = $region16
        $region15: #{tpu_custom_call.1} parent=11 // pred_region
          _
        $region16: #{tpu_custom_call.1} parent=11 // pred_fallthru
          _
        // Predicated region
        $region17: #{tpu_custom_call.1} parent=11 // pred_check
          %p221 = pneg %p135
        $region18: #{tpu_custom_call.1} parent=11 // pred_check_branch
          %223 = sbr.rel (%p221) target = $region20
        $region19: #{tpu_custom_call.1} parent=11 // pred_region
          _
        $region20: #{tpu_custom_call.1} parent=11 // pred_fallthru
          _
        // Predicated region
        $region21: #{tpu_custom_call.1} parent=11 // pred_check
          %p224 = pneg %p156
        $region22: #{tpu_custom_call.1} parent=11 // pred_check_branch
          %226 = sbr.rel (%p224) target = $region24
        $region23: #{tpu_custom_call.1} parent=11 // pred_region
          _
        $region24: #{tpu_custom_call.1} parent=11 // pred_fallthru
          _
        // Predicated region
        $region25: #{tpu_custom_call.1} parent=11 // pred_check
          %p227 = pneg %p177
        $region26: #{tpu_custom_call.1} parent=11 // pred_check_branch
          %229 = sbr.rel (%p227) target = $region28
        $region27: #{tpu_custom_call.1} parent=11 // pred_region
          _
        $region28: #{tpu_custom_call.1} parent=11 // pred_fallthru
          _
      $region12: #{tpu_custom_call.1} parent=5 // pred_fallthru
        _
      %p230 = scmp.lt.s32.totalorder %s15, 2
      // Predicated region
      $region29: #{tpu_custom_call.1} parent=5 // pred_check
        %p231 = pneg %p230
      $region30: #{tpu_custom_call.1} parent=5 // pred_check_branch
        %233 = sbr.rel (%p231) target = $region32
      $region31: #{tpu_custom_call.1} parent=5 // pred_region
        // Predicated region
        $region33: #{tpu_custom_call.1} parent=31 // pred_check
          %p234 = pneg %p35
        $region34: #{tpu_custom_call.1} parent=31 // pred_check_branch
          %236 = sbr.rel (%p234) target = $region36
        $region35: #{tpu_custom_call.1} parent=31 // pred_region
          %s237 = smul.u32 4, %s15
          %p238 = scmp.lt.s32.totalorder %s237, 7
          %s239 = scalar_select %p238, %s237, 7
          %s240 = smul.addr %s239, 4
          %s241 = scalar_lea.vmem %s0, %s240
          %s242 = smul.u32 4, %s15
        $region36: #{tpu_custom_call.1} parent=31 // pred_fallthru
          _
        // Predicated region
        $region37: #{tpu_custom_call.1} parent=31 // pred_check
          %p243 = pneg %p87
        $region38: #{tpu_custom_call.1} parent=31 // pred_check_branch
          %245 = sbr.rel (%p243) target = $region40
        $region39: #{tpu_custom_call.1} parent=31 // pred_region
          %s246 = sadd.s32 %s15, 1
          %p247 = scmp.lt.s32.totalorder %s246, 0
          %s248 = ssub.s32 0, %s246
          %s249 = scalar_select %p247, %s248, %s246
          %s250 = sand.u32 %s249, 1
          %s251 = ssub.s32 0, %s250
          %s252 = scalar_select %p247, %s251, %s250
          %p253 = scmp.ne.s32.totalorder %s252, 0
          %p254 = scmp.lt.s32.totalorder %s252, 0
          %p255 = pnand %p254, %p253
          %p256 = pneg %p255
          %s257 = sadd.s32 %s252, 2
          %s258 = scalar_select %p256, %s257, %s252
          %s259 = smul.u32 4, %s258
          %p260 = scmp.lt.s32.totalorder %s259, 7
          %s261 = scalar_select %p260, %s259, 7
          %s262 = smul.addr %s261, 4
          %s263 = scalar_lea.vmem %s1, %s262
          %s264 = sadd.s32 %s15, 1
          %p265 = scmp.lt.s32.totalorder %s264, 0
          %s266 = ssub.s32 0, %s264
          %s267 = scalar_select %p265, %s266, %s264
          %s268 = sand.u32 %s267, 1
          %s269 = ssub.s32 0, %s268
          %s270 = scalar_select %p265, %s269, %s268
          %p271 = scmp.ne.s32.totalorder %s270, 0
          %p272 = scmp.lt.s32.totalorder %s270, 0
          %p273 = pnand %p272, %p271
          %p274 = pneg %p273
          %s275 = sadd.s32 %s270, 2
          %s276 = scalar_select %p274, %s275, %s270
          %s277 = smul.u32 4, %s276
        $region40: #{tpu_custom_call.1} parent=31 // pred_fallthru
          _
      $region32: #{tpu_custom_call.1} parent=5 // pred_fallthru
        _
      %p278 = scmp.le.s32.totalorder 1, %s15
      %p279 = scmp.lt.s32.totalorder %s15, 3
      %p280 = pnand %p278, %p279
      %p281 = pneg %p280
      // Predicated region
      $region41: #{tpu_custom_call.1} parent=5 // pred_check
        _
      $region42: #{tpu_custom_call.1} parent=5 // pred_check_branch
        %283 = sbr.rel (%p280) target = $region44
      $region43: #{tpu_custom_call.1} parent=5 // pred_region
        %s284 = ssub.s32 %s15, 1
        %s285 = smul.u32 4, %s20
        %p286 = scmp.lt.s32.totalorder %s285, 7
        %s287 = scalar_select %p286, %s285, 7
        %s288 = smul.addr %s287, 4
        %s289 = scalar_lea.vmem %s0, %s288
        %p290 = pneg %p41
        %p291 = pneg %p38
        %s292 = sadd.s32 %s20, 1
        %p293 = scmp.lt.s32.totalorder %s292, 0
        %s294 = ssub.s32 0, %s292
        %s295 = scalar_select %p293, %s294, %s292
        %s296 = sand.u32 %s295, 1
        %s297 = ssub.s32 0, %s296
        %s298 = scalar_select %p293, %s297, %s296
        %p299 = scmp.ne.s32.totalorder %s298, 0
        %p300 = scmp.lt.s32.totalorder %s298, 0
        %p301 = pnand %p300, %p299
        %p302 = pneg %p301
        %s303 = sadd.s32 %s298, 2
        %s304 = scalar_select %p302, %s303, %s298
        %s305 = smul.u32 4, %s304
        %p306 = scmp.lt.s32.totalorder %s305, 7
        %s307 = scalar_select %p306, %s305, 7
        %s308 = smul.addr %s307, 4
        %s309 = scalar_lea.vmem %s1, %s308
        %p310 = pneg %p93
        %p311 = pneg %p90
        %p312 = pneg %p114
        %p313 = pneg %p111
        %p314 = pneg %p135
        %p315 = pneg %p132
        %p316 = pneg %p156
        %p317 = pneg %p153
        %p318 = pneg %p177
        %p319 = pneg %p174
        %p320 = pneg %p203
        %p321 = pneg %p200
        %s322 = sand.u32 %s190, 1
        %s323 = scalar_lea.sflag [#allocation6], %s322
        %s324 = sand.u32 %s190, 1
        %s325 = smul.addr %s324, 32
        %s326 = scalar_lea.vmem [#allocation5], %s325
        %s327 = smul.u32 4, %s20
        %p328 = scmp.lt.s32.totalorder %s327, 7
        %s329 = scalar_select %p328, %s327, 7
        %s330 = smul.addr %s329, 4
        %s331 = scalar_lea.vmem %s0, %s330
        %s332 = smul.u32 4, %s20
        %s333 = sadd.s32 %s20, 1
        %p334 = scmp.lt.s32.totalorder %s333, 0
        %s335 = ssub.s32 0, %s333
        %s336 = scalar_select %p334, %s335, %s333
        %s337 = sand.u32 %s336, 1
        %s338 = ssub.s32 0, %s337
        %s339 = scalar_select %p334, %s338, %s337
        %p340 = scmp.ne.s32.totalorder %s339, 0
        %p341 = scmp.lt.s32.totalorder %s339, 0
        %p342 = pnand %p341, %p340
        %p343 = pneg %p342
        %s344 = sadd.s32 %s339, 2
        %s345 = scalar_select %p343, %s344, %s339
        %s346 = smul.u32 4, %s345
        %p347 = scmp.lt.s32.totalorder %s346, 7
        %s348 = scalar_select %p347, %s346, 7
        %s349 = smul.addr %s348, 4
        %s350 = scalar_lea.vmem %s1, %s349
        %s351 = sadd.s32 %s20, 1
        %p352 = scmp.lt.s32.totalorder %s351, 0
        %s353 = ssub.s32 0, %s351
        %s354 = scalar_select %p352, %s353, %s351
        %s355 = sand.u32 %s354, 1
        %s356 = ssub.s32 0, %s355
        %s357 = scalar_select %p352, %s356, %s355
        %p358 = scmp.ne.s32.totalorder %s357, 0
        %p359 = scmp.lt.s32.totalorder %s357, 0
        %p360 = pnand %p359, %p358
        %p361 = pneg %p360
        %s362 = sadd.s32 %s357, 2
        %s363 = scalar_select %p361, %s362, %s357
        %s364 = smul.u32 4, %s363
        %s365 = smul.u32 4, %s20
        %v367 = vld [vmem:[%s331] sm:$0xf]
        %v368 = vld [vmem:[%s331 + $0x4] sm:$0xf]
        %v369 = vld [vmem:[%s331 + $0x8] sm:$0xf]
        %v370 = vld [vmem:[%s331 + $0xc] sm:$0xf]
        %v371 = vld [vmem:[%s2] sm:$0xf]
        %v372 = vld [vmem:[%s2 + $0x4] sm:$0xf]
        %v373 = vld [vmem:[%s2 + $0x8] sm:$0xf]
        %v374 = vld [vmem:[%s2 + $0xc] sm:$0xf]
        %v379 = vunpack.c.l.b16 %v367
        %v380 = vunpack.c.l.b16 %v368
        %v381 = vunpack.c.l.b16 %v369
        %v382 = vunpack.c.l.b16 %v370
        %v383 = vpack.c.b16 %v380, %v379
        %v384 = vpack.c.b16 %v382, %v381
        %v389 = vunpack.c.l.b16 %v371
        %v390 = vunpack.c.l.b16 %v372
        %v391 = vunpack.c.l.b16 %v373
        %v392 = vunpack.c.l.b16 %v374
        %v393 = vpack.c.b16 %v390, %v389
        %v394 = vpack.c.b16 %v392, %v391
        %vm397 = vcmask 261120
        %v399 = vsel %vm397, %v383, 0
        %v402 = vsel %vm397, %v384, 0
        %404 = vmatprep.subr.bf16.mxu0 0
        %405 = vmatpush1.bf16.msra.mxu0 0
        %406 = vmatprep.subr.bf16.mxu0 0
        %407 = vmatpush1.bf16.msra.mxu0 0
        %408 = vmatprep.subr.bf16.mxu0 0
        %409 = vmatpush1.bf16.msra.mxu0 0
        %410 = vmatprep.subr.bf16.mxu0 0
        %411 = vmatpush1.bf16.msra.mxu0 0
        %412 = vmatprep.subr.bf16.mxu0 0
        %413 = vmatpush1.bf16.msra.mxu0 0
        %414 = vmatprep.subr.bf16.mxu0 0
        %415 = vmatpush1.bf16.msra.mxu0 0
        %416 = vmatprep.subr.bf16.mxu0 0
        %417 = vmatpush1.bf16.msra.mxu0 %v394
        %418 = vmatprep.subr.bf16.mxu0 0
        %419 = vmatpush1.bf16.msra.mxu0 %v393
        %420 = vmatprep.subr.bf16.mxu0 0
        %421 = vmatpush2.bf16.msra.mxu0 0
        %422 = vmatprep.subr.bf16.mxu0 0
        %423 = vmatpush2.bf16.msra.mxu0 0
        %424 = vmatprep.subr.bf16.mxu0 0
        %425 = vmatpush2.bf16.msra.mxu0 0
        %426 = vmatprep.subr.bf16.mxu0 0
        %427 = vmatpush2.bf16.msra.mxu0 0
        %428 = vmatprep.subr.bf16.mxu0 0
        %429 = vmatpush2.bf16.msra.mxu0 0
        %430 = vmatprep.subr.bf16.mxu0 0
        %431 = vmatpush2.bf16.msra.mxu0 0
        %432 = vmatprep.subr.bf16.mxu0 0
        %433 = vmatpush2.bf16.msra.mxu0 0
        %434 = vmatprep.subr.bf16.mxu0 0
        %435 = vmatpush2.bf16.msra.mxu0 0
        %436 = vmatprep.mubr.bf16.mxu0 0
        %437 = vmatmul.mubr.bf16.gmra.mxu0 %v399
        %v438 = vpop.f32.mrf.mxu0
        %v439 = vadd.f32 0.0, %v438
        %v440 = vpop.f32.mrf.mxu0
        %v441 = vpop.f32.mrf.mxu0
        %v442 = vadd.f32 0.0, %v441
        %v443 = vpop.f32.mrf.mxu0
        %444 = vmatprep.mubr.bf16.mxu0 0
        %445 = vmatmul.mubr.bf16.gmra.mxu0 %v402
        %v446 = vpop.f32.mrf.mxu0
        %v447 = vadd.f32 0.0, %v446
        %v448 = vpop.f32.mrf.mxu0
        %v449 = vpop.f32.mrf.mxu0
        %v450 = vadd.f32 0.0, %v449
        %v451 = vpop.f32.mrf.mxu0
        %452 = vdwg.mxu0
        %v453 = vpack.c.bf16 %v442, %v439
        %v454 = vpack.c.bf16 %v450, %v447
        %v457 = vunpack.c.l.b16 %v453
        %v458 = vunpack.c.h.b16 %v453
        %v459 = vunpack.c.l.b16 %v454
        %v460 = vunpack.c.h.b16 %v454
        %v461 = vpack.c.b16 %v457, %v457
        %v462 = vpack.c.b16 %v458, %v458
        %v463 = vpack.c.b16 %v459, %v459
        %v464 = vpack.c.b16 %v460, %v460
        %vm469 = vcmask 257024
        %470 = vst.msk [vmem:[#allocation2] sm:$0xf] %vm469, %v461
        %471 = vst.msk [vmem:[#allocation2 + $0x4] sm:$0xf] %vm469, %v462
        %472 = vst.msk [vmem:[#allocation2 + $0x8] sm:$0xf] %vm469, %v463
        %473 = vst.msk [vmem:[#allocation2 + $0xc] sm:$0xf] %vm469, %v464
        %v474 = vld [vmem:[%s350] sm:$0xf]
        %v475 = vld [vmem:[%s350 + $0x4] sm:$0xf]
        %v476 = vld [vmem:[%s350 + $0x8] sm:$0xf]
        %v477 = vld [vmem:[%s350 + $0xc] sm:$0xf]
        %v478 = vld [vmem:[%s3] sm:$0xf]
        %v479 = vld [vmem:[%s3 + $0x4] sm:$0xf]
        %v480 = vld [vmem:[%s3 + $0x8] sm:$0xf]
        %v481 = vld [vmem:[%s3 + $0xc] sm:$0xf]
        %v486 = vunpack.c.l.b16 %v474
        %v487 = vunpack.c.l.b16 %v475
        %v488 = vunpack.c.l.b16 %v476
        %v489 = vunpack.c.l.b16 %v477
        %v490 = vpack.c.b16 %v487, %v486
        %v491 = vpack.c.b16 %v489, %v488
        %v496 = vunpack.c.l.b16 %v478
        %v497 = vunpack.c.l.b16 %v479
        %v498 = vunpack.c.l.b16 %v480
        %v499 = vunpack.c.l.b16 %v481
        %v500 = vpack.c.b16 %v497, %v496
        %v501 = vpack.c.b16 %v499, %v498
        %v505 = vsel %vm397, %v490, 0
        %v508 = vsel %vm397, %v491, 0
        %510 = vmatprep.subr.bf16.mxu0 0
        %511 = vmatpush1.bf16.msra.mxu0 0
        %512 = vmatprep.subr.bf16.mxu0 0
        %513 = vmatpush1.bf16.msra.mxu0 0
        %514 = vmatprep.subr.bf16.mxu0 0
        %515 = vmatpush1.bf16.msra.mxu0 0
        %516 = vmatprep.subr.bf16.mxu0 0
        %517 = vmatpush1.bf16.msra.mxu0 0
        %518 = vmatprep.subr.bf16.mxu0 0
        %519 = vmatpush1.bf16.msra.mxu0 0
        %520 = vmatprep.subr.bf16.mxu0 0
        %521 = vmatpush1.bf16.msra.mxu0 0
        %522 = vmatprep.subr.bf16.mxu0 0
        %523 = vmatpush1.bf16.msra.mxu0 %v501
        %524 = vmatprep.subr.bf16.mxu0 0
        %525 = vmatpush1.bf16.msra.mxu0 %v500
        %526 = vmatprep.subr.bf16.mxu0 0
        %527 = vmatpush2.bf16.msra.mxu0 0
        %528 = vmatprep.subr.bf16.mxu0 0
        %529 = vmatpush2.bf16.msra.mxu0 0
        %530 = vmatprep.subr.bf16.mxu0 0
        %531 = vmatpush2.bf16.msra.mxu0 0
        %532 = vmatprep.subr.bf16.mxu0 0
        %533 = vmatpush2.bf16.msra.mxu0 0
        %534 = vmatprep.subr.bf16.mxu0 0
        %535 = vmatpush2.bf16.msra.mxu0 0
        %536 = vmatprep.subr.bf16.mxu0 0
        %537 = vmatpush2.bf16.msra.mxu0 0
        %538 = vmatprep.subr.bf16.mxu0 0
        %539 = vmatpush2.bf16.msra.mxu0 0
        %540 = vmatprep.subr.bf16.mxu0 0
        %541 = vmatpush2.bf16.msra.mxu0 0
        %542 = vmatprep.mubr.bf16.mxu0 0
        %543 = vmatmul.mubr.bf16.gmra.mxu0 %v505
        %v544 = vpop.f32.mrf.mxu0
        %v545 = vadd.f32 0.0, %v544
        %v546 = vpop.f32.mrf.mxu0
        %v547 = vpop.f32.mrf.mxu0
        %v548 = vadd.f32 0.0, %v547
        %v549 = vpop.f32.mrf.mxu0
        %550 = vmatprep.mubr.bf16.mxu0 0
        %551 = vmatmul.mubr.bf16.gmra.mxu0 %v508
        %v552 = vpop.f32.mrf.mxu0
        %v553 = vadd.f32 0.0, %v552
        %v554 = vpop.f32.mrf.mxu0
        %v555 = vpop.f32.mrf.mxu0
        %v556 = vadd.f32 0.0, %v555
        %v557 = vpop.f32.mrf.mxu0
        %558 = vdwg.mxu0
        %v559 = vpack.c.bf16 %v548, %v545
        %v560 = vpack.c.bf16 %v556, %v553
        %v563 = vunpack.c.l.b16 %v559
        %v564 = vunpack.c.h.b16 %v559
        %v565 = vunpack.c.l.b16 %v560
        %v566 = vunpack.c.h.b16 %v560
        %v567 = vpack.c.b16 %v563, %v563
        %v568 = vpack.c.b16 %v564, %v564
        %v569 = vpack.c.b16 %v565, %v565
        %v570 = vpack.c.b16 %v566, %v566
        %vm575 = vcmask 519168
        %576 = vst.msk [vmem:[#allocation3] sm:$0xf] %vm575, %v567
        %577 = vst.msk [vmem:[#allocation3 + $0x4] sm:$0xf] %vm575, %v568
        %578 = vst.msk [vmem:[#allocation3 + $0x8] sm:$0xf] %vm575, %v569
        %579 = vst.msk [vmem:[#allocation3 + $0xc] sm:$0xf] %vm575, %v570
        %v580 = vld [vmem:[#allocation2] sm:$0xf]
        %v581 = vld [vmem:[#allocation2 + $0x4] sm:$0xf]
        %v582 = vld [vmem:[#allocation2 + $0x8] sm:$0xf]
        %v583 = vld [vmem:[#allocation2 + $0xc] sm:$0xf]
        %v584 = vld [vmem:[#allocation3] sm:$0xf]
        %v585 = vld [vmem:[#allocation3 + $0x4] sm:$0xf]
        %v586 = vld [vmem:[#allocation3 + $0x8] sm:$0xf]
        %v587 = vld [vmem:[#allocation3 + $0xc] sm:$0xf]
        %v590 = vunpack.c.l.b16 %v580
        %v591 = vunpack.c.l.b16 %v581
        %v592 = vpack.c.b16 %v591, %v590
        %v595 = vunpack.c.l.b16 %v584
        %v596 = vunpack.c.l.b16 %v585
        %v597 = vpack.c.b16 %v596, %v595
        %vm598 = vcmask 31744
        %v600 = vsel %vm598, %v592, 0
        %v603 = vsel %vm598, %v597, 0
        %605 = vmatprep.subr.bf16.mxu0 0
        %606 = vmatpush1.bf16.xpose.msra.mxu0 0
        %607 = vmatprep.subr.bf16.mxu0 0
        %608 = vmatpush1.bf16.xpose.msra.mxu0 0
        %609 = vmatprep.subr.bf16.mxu0 0
        %610 = vmatpush1.bf16.xpose.msra.mxu0 0
        %611 = vmatprep.subr.bf16.mxu0 0
        %612 = vmatpush1.bf16.xpose.msra.mxu0 0
        %613 = vmatprep.subr.bf16.mxu0 0
        %614 = vmatpush1.bf16.xpose.msra.mxu0 0
        %615 = vmatprep.subr.bf16.mxu0 0
        %616 = vmatpush1.bf16.xpose.msra.mxu0 0
        %617 = vmatprep.subr.bf16.mxu0 0
        %618 = vmatpush1.bf16.xpose.msra.mxu0 0
        %619 = vmatprep.subr.bf16.mxu0 0
        %620 = vmatpush1.bf16.xpose.msra.mxu0 %v603
        %621 = vmatprep.subr.bf16.mxu0 0
        %622 = vmatpush2.bf16.xpose.msra.mxu0 0
        %623 = vmatprep.subr.bf16.mxu0 0
        %624 = vmatpush2.bf16.xpose.msra.mxu0 0
        %625 = vmatprep.subr.bf16.mxu0 0
        %626 = vmatpush2.bf16.xpose.msra.mxu0 0
        %627 = vmatprep.subr.bf16.mxu0 0
        %628 = vmatpush2.bf16.xpose.msra.mxu0 0
        %629 = vmatprep.subr.bf16.mxu0 0
        %630 = vmatpush2.bf16.xpose.msra.mxu0 0
        %631 = vmatprep.subr.bf16.mxu0 0
        %632 = vmatpush2.bf16.xpose.msra.mxu0 0
        %633 = vmatprep.subr.bf16.mxu0 0
        %634 = vmatpush2.bf16.xpose.msra.mxu0 0
        %635 = vmatprep.subr.bf16.mxu0 0
        %636 = vmatpush2.bf16.xpose.msra.mxu0 0
        %637 = vmatprep.mubr.bf16.mxu0 0
        %638 = vmatmul.mubr.bf16.gmra.mxu0 %v600
        %v639 = vpop.f32.mrf.mxu0
        %v640 = vadd.f32 0.0, %v639
        %v641 = vpop.f32.mrf.mxu0
        %v642 = vpop.f32.mrf.mxu0
        %v643 = vadd.f32 0.0, %v642
        %v644 = vpop.f32.mrf.mxu0
        %645 = vdwg.mxu0
        %v648 = vunpack.c.l.b16 %v582
        %v649 = vunpack.c.l.b16 %v583
        %v650 = vpack.c.b16 %v649, %v648
        %v653 = vunpack.c.l.b16 %v586
        %v654 = vunpack.c.l.b16 %v587
        %v655 = vpack.c.b16 %v654, %v653
        %v657 = vsel %vm598, %v650, 0
        %v660 = vsel %vm598, %v655, 0
        %662 = vmatprep.subr.bf16.mxu0 0
        %663 = vmatpush1.bf16.xpose.msra.mxu0 0
        %664 = vmatprep.subr.bf16.mxu0 0
        %665 = vmatpush1.bf16.xpose.msra.mxu0 0
        %666 = vmatprep.subr.bf16.mxu0 0
        %667 = vmatpush1.bf16.xpose.msra.mxu0 0
        %668 = vmatprep.subr.bf16.mxu0 0
        %669 = vmatpush1.bf16.xpose.msra.mxu0 0
        %670 = vmatprep.subr.bf16.mxu0 0
        %671 = vmatpush1.bf16.xpose.msra.mxu0 0
        %672 = vmatprep.subr.bf16.mxu0 0
        %673 = vmatpush1.bf16.xpose.msra.mxu0 0
        %674 = vmatprep.subr.bf16.mxu0 0
        %675 = vmatpush1.bf16.xpose.msra.mxu0 0
        %676 = vmatprep.subr.bf16.mxu0 0
        %677 = vmatpush1.bf16.xpose.msra.mxu0 %v660
        %678 = vmatprep.subr.bf16.mxu0 0
        %679 = vmatpush2.bf16.xpose.msra.mxu0 0
        %680 = vmatprep.subr.bf16.mxu0 0
        %681 = vmatpush2.bf16.xpose.msra.mxu0 0
        %682 = vmatprep.subr.bf16.mxu0 0
        %683 = vmatpush2.bf16.xpose.msra.mxu0 0
        %684 = vmatprep.subr.bf16.mxu0 0
        %685 = vmatpush2.bf16.xpose.msra.mxu0 0
        %686 = vmatprep.subr.bf16.mxu0 0
        %687 = vmatpush2.bf16.xpose.msra.mxu0 0
        %688 = vmatprep.subr.bf16.mxu0 0
        %689 = vmatpush2.bf16.xpose.msra.mxu0 0
        %690 = vmatprep.subr.bf16.mxu0 0
        %691 = vmatpush2.bf16.xpose.msra.mxu0 0
        %692 = vmatprep.subr.bf16.mxu0 0
        %693 = vmatpush2.bf16.xpose.msra.mxu0 0
        %694 = vmatprep.mubr.bf16.mxu0 0
        %695 = vmatmul.mubr.bf16.gmra.mxu0 %v657
        %v696 = vpop.f32.mrf.mxu0
        %v697 = vadd.f32 0.0, %v696
        %v698 = vpop.f32.mrf.mxu0
        %v699 = vpop.f32.mrf.mxu0
        %v700 = vadd.f32 0.0, %v699
        %v701 = vpop.f32.mrf.mxu0
        %702 = vdwg.mxu0
        %vm703 = vcmask 130048
        %v704 = vsel %vm703, %v640, -inf
        %705 = vmax.xlane.f32.xlu0 %v704
        %v706 = vpop.xlane.xlu0 %705
        %v707 = vsel %vm703, %v643, -inf
        %708 = vmax.xlane.f32.xlu0 %v707
        %v709 = vpop.xlane.xlu0 %708
        %v710 = vsel %vm703, %v697, -inf
        %711 = vmax.xlane.f32.xlu0 %v710
        %v712 = vpop.xlane.xlu0 %711
        %v713 = vsel %vm703, %v700, -inf
        %714 = vmax.xlane.f32.xlu0 %v713
        %v715 = vpop.xlane.xlu0 %714
        %v716 = vsub.f32 %v640, %v706
        %v717 = vsub.f32 %v643, %v709
        %v718 = vsub.f32 %v697, %v712
        %v719 = vsub.f32 %v700, %v715
        %v720 = vmul.f32 %v716, 1.442695
        %v721 = vpow.pop %v720
        %v722 = vmul.f32 %v717, 1.442695
        %v723 = vpow.pop %v722
        %v724 = vmul.f32 %v718, 1.442695
        %v725 = vpow.pop %v724
        %v726 = vmul.f32 %v719, 1.442695
        %v727 = vpow.pop %v726
        %v728 = vsel %vm703, %v721, 0.0
        %729 = vadd.xlane.f32.xlu0 %v728
        %v730 = vpop.xlane.xlu0 %729
        %v731 = vsel %vm703, %v723, 0.0
        %732 = vadd.xlane.f32.xlu0 %v731
        %v733 = vpop.xlane.xlu0 %732
        %v734 = vsel %vm703, %v725, 0.0
        %735 = vadd.xlane.f32.xlu0 %v734
        %v736 = vpop.xlane.xlu0 %735
        %v737 = vsel %vm703, %v727, 0.0
        %738 = vadd.xlane.f32.xlu0 %v737
        %v739 = vpop.xlane.xlu0 %738
        %v740 = vrcp.pop %v730
        %v741 = vrcp.pop %v733
        %v742 = vrcp.pop %v736
        %v743 = vrcp.pop %v739
        %v744 = vpack.c.bf16 %v723, %v721
        %v745 = vpack.c.bf16 %v727, %v725
        %746 = vrot.lane.b32.xlu0 %v597, 96
        %v747 = vpop.permute.xlu0 %746
        %v750 = vsel %vm703, %v744, 0
        %752 = vmatprep.subr.bf16.mxu0 0
        %753 = vmatpush1.bf16.msra.mxu0 0
        %754 = vmatprep.subr.bf16.mxu0 0
        %755 = vmatpush1.bf16.msra.mxu0 0
        %756 = vmatprep.subr.bf16.mxu0 0
        %757 = vmatpush1.bf16.msra.mxu0 0
        %758 = vmatprep.subr.bf16.mxu0 0
        %759 = vmatpush1.bf16.msra.mxu0 0
        %760 = vmatprep.subr.bf16.mxu0 0
        %761 = vmatpush1.bf16.msra.mxu0 0
        %762 = vmatprep.subr.bf16.mxu0 0
        %763 = vmatpush1.bf16.msra.mxu0 0
        %764 = vmatprep.subr.bf16.mxu0 0
        %765 = vmatpush1.bf16.msra.mxu0 0
        %766 = vmatprep.subr.bf16.mxu0 0
        %767 = vmatpush1.bf16.msra.mxu0 %v747
        %768 = vmatprep.subr.bf16.mxu0 0
        %769 = vmatpush2.bf16.msra.mxu0 0
        %770 = vmatprep.subr.bf16.mxu0 0
        %771 = vmatpush2.bf16.msra.mxu0 0
        %772 = vmatprep.subr.bf16.mxu0 0
        %773 = vmatpush2.bf16.msra.mxu0 0
        %774 = vmatprep.subr.bf16.mxu0 0
        %775 = vmatpush2.bf16.msra.mxu0 0
        %776 = vmatprep.subr.bf16.mxu0 0
        %777 = vmatpush2.bf16.msra.mxu0 0
        %778 = vmatprep.subr.bf16.mxu0 0
        %779 = vmatpush2.bf16.msra.mxu0 0
        %780 = vmatprep.subr.bf16.mxu0 0
        %781 = vmatpush2.bf16.msra.mxu0 0
        %782 = vmatprep.subr.bf16.mxu0 0
        %783 = vmatpush2.bf16.msra.mxu0 0
        %784 = vmatprep.mubr.bf16.mxu0 0
        %785 = vmatmul.mubr.bf16.gmra.mxu0 %v750
        %v786 = vpop.f32.mrf.mxu0
        %v787 = vadd.f32 0.0, %v786
        %v788 = vpop.f32.mrf.mxu0
        %v789 = vpop.f32.mrf.mxu0
        %v790 = vadd.f32 0.0, %v789
        %v791 = vpop.f32.mrf.mxu0
        %792 = vdwg.mxu0
        %793 = vrot.lane.b32.xlu0 %v655, 96
        %v794 = vpop.permute.xlu0 %793
        %v797 = vsel %vm703, %v745, 0
        %799 = vmatprep.subr.bf16.mxu0 0
        %800 = vmatpush1.bf16.msra.mxu0 0
        %801 = vmatprep.subr.bf16.mxu0 0
        %802 = vmatpush1.bf16.msra.mxu0 0
        %803 = vmatprep.subr.bf16.mxu0 0
        %804 = vmatpush1.bf16.msra.mxu0 0
        %805 = vmatprep.subr.bf16.mxu0 0
        %806 = vmatpush1.bf16.msra.mxu0 0
        %807 = vmatprep.subr.bf16.mxu0 0
        %808 = vmatpush1.bf16.msra.mxu0 0
        %809 = vmatprep.subr.bf16.mxu0 0
        %810 = vmatpush1.bf16.msra.mxu0 0
        %811 = vmatprep.subr.bf16.mxu0 0
        %812 = vmatpush1.bf16.msra.mxu0 0
        %813 = vmatprep.subr.bf16.mxu0 0
        %814 = vmatpush1.bf16.msra.mxu0 %v794
        %815 = vmatprep.subr.bf16.mxu0 0
        %816 = vmatpush2.bf16.msra.mxu0 0
        %817 = vmatprep.subr.bf16.mxu0 0
        %818 = vmatpush2.bf16.msra.mxu0 0
        %819 = vmatprep.subr.bf16.mxu0 0
        %820 = vmatpush2.bf16.msra.mxu0 0
        %821 = vmatprep.subr.bf16.mxu0 0
        %822 = vmatpush2.bf16.msra.mxu0 0
        %823 = vmatprep.subr.bf16.mxu0 0
        %824 = vmatpush2.bf16.msra.mxu0 0
        %825 = vmatprep.subr.bf16.mxu0 0
        %826 = vmatpush2.bf16.msra.mxu0 0
        %827 = vmatprep.subr.bf16.mxu0 0
        %828 = vmatpush2.bf16.msra.mxu0 0
        %829 = vmatprep.subr.bf16.mxu0 0
        %830 = vmatpush2.bf16.msra.mxu0 0
        %831 = vmatprep.mubr.bf16.mxu0 0
        %832 = vmatmul.mubr.bf16.gmra.mxu0 %v797
        %v833 = vpop.f32.mrf.mxu0
        %v834 = vadd.f32 0.0, %v833
        %v835 = vpop.f32.mrf.mxu0
        %v836 = vpop.f32.mrf.mxu0
        %v837 = vadd.f32 0.0, %v836
        %v838 = vpop.f32.mrf.mxu0
        %839 = vdwg.mxu0
        %v840 = vmul.f32 %v787, %v740
        %v841 = vmul.f32 %v790, %v741
        %v842 = vmul.f32 %v834, %v742
        %v843 = vmul.f32 %v837, %v743
        %v844 = vpack.c.bf16 %v841, %v840
        %v845 = vpack.c.bf16 %v843, %v842
        %v848 = vunpack.c.l.b16 %v844
        %v849 = vunpack.c.h.b16 %v844
        %v850 = vunpack.c.l.b16 %v845
        %v851 = vunpack.c.h.b16 %v845
        %v852 = vpack.c.b16 %v848, %v848
        %v853 = vpack.c.b16 %v849, %v849
        %v854 = vpack.c.b16 %v850, %v850
        %v855 = vpack.c.b16 %v851, %v851
        %vm860 = vcmask 27648
        %861 = vst.msk [vmem:[#allocation4] sm:$0xf] %vm860, %v852
        %862 = vst.msk [vmem:[#allocation4 + $0x4] sm:$0xf] %vm860, %v853
        %863 = vst.msk [vmem:[#allocation4 + $0x8] sm:$0xf] %vm860, %v854
        %864 = vst.msk [vmem:[#allocation4 + $0xc] sm:$0xf] %vm860, %v855
        %v865 = vld [vmem:[#allocation2] sm:$0xf]
        %v866 = vld [vmem:[#allocation2 + $0x4] sm:$0xf]
        %v867 = vld [vmem:[#allocation2 + $0x8] sm:$0xf]
        %v868 = vld [vmem:[#allocation2 + $0xc] sm:$0xf]
        %v869 = vld [vmem:[#allocation3] sm:$0xf]
        %v870 = vld [vmem:[#allocation3 + $0x4] sm:$0xf]
        %v871 = vld [vmem:[#allocation3 + $0x8] sm:$0xf]
        %v872 = vld [vmem:[#allocation3 + $0xc] sm:$0xf]
        %v875 = vunpack.c.l.b16 %v865
        %v876 = vunpack.c.l.b16 %v866
        %v877 = vpack.c.b16 %v876, %v875
        %878 = vrot.lane.b32.xlu0 %v877, 124
        %v879 = vpop.permute.xlu0 %878
        %v882 = vunpack.c.l.b16 %v869
        %v883 = vunpack.c.l.b16 %v870
        %v884 = vpack.c.b16 %v883, %v882
        %885 = vrot.lane.b32.xlu0 %v884, 124
        %v886 = vpop.permute.xlu0 %885
        %v888 = vsel %vm598, %v879, 0
        %v891 = vsel %vm598, %v886, 0
        %893 = vmatprep.subr.bf16.mxu0 0
        %894 = vmatpush1.bf16.xpose.msra.mxu0 0
        %895 = vmatprep.subr.bf16.mxu0 0
        %896 = vmatpush1.bf16.xpose.msra.mxu0 0
        %897 = vmatprep.subr.bf16.mxu0 0
        %898 = vmatpush1.bf16.xpose.msra.mxu0 0
        %899 = vmatprep.subr.bf16.mxu0 0
        %900 = vmatpush1.bf16.xpose.msra.mxu0 0
        %901 = vmatprep.subr.bf16.mxu0 0
        %902 = vmatpush1.bf16.xpose.msra.mxu0 0
        %903 = vmatprep.subr.bf16.mxu0 0
        %904 = vmatpush1.bf16.xpose.msra.mxu0 0
        %905 = vmatprep.subr.bf16.mxu0 0
        %906 = vmatpush1.bf16.xpose.msra.mxu0 0
        %907 = vmatprep.subr.bf16.mxu0 0
        %908 = vmatpush1.bf16.xpose.msra.mxu0 %v891
        %909 = vmatprep.subr.bf16.mxu0 0
        %910 = vmatpush2.bf16.xpose.msra.mxu0 0
        %911 = vmatprep.subr.bf16.mxu0 0
        %912 = vmatpush2.bf16.xpose.msra.mxu0 0
        %913 = vmatprep.subr.bf16.mxu0 0
        %914 = vmatpush2.bf16.xpose.msra.mxu0 0
        %915 = vmatprep.subr.bf16.mxu0 0
        %916 = vmatpush2.bf16.xpose.msra.mxu0 0
        %917 = vmatprep.subr.bf16.mxu0 0
        %918 = vmatpush2.bf16.xpose.msra.mxu0 0
        %919 = vmatprep.subr.bf16.mxu0 0
        %920 = vmatpush2.bf16.xpose.msra.mxu0 0
        %921 = vmatprep.subr.bf16.mxu0 0
        %922 = vmatpush2.bf16.xpose.msra.mxu0 0
        %923 = vmatprep.subr.bf16.mxu0 0
        %924 = vmatpush2.bf16.xpose.msra.mxu0 0
        %925 = vmatprep.mubr.bf16.mxu0 0
        %926 = vmatmul.mubr.bf16.gmra.mxu0 %v888
        %v927 = vpop.f32.mrf.mxu0
        %v928 = vadd.f32 0.0, %v927
        %v929 = vpop.f32.mrf.mxu0
        %v930 = vpop.f32.mrf.mxu0
        %v931 = vadd.f32 0.0, %v930
        %v932 = vpop.f32.mrf.mxu0
        %933 = vdwg.mxu0
        %v936 = vunpack.c.l.b16 %v867
        %v937 = vunpack.c.l.b16 %v868
        %v938 = vpack.c.b16 %v937, %v936
        %939 = vrot.lane.b32.xlu0 %v938, 124
        %v940 = vpop.permute.xlu0 %939
        %v943 = vunpack.c.l.b16 %v871
        %v944 = vunpack.c.l.b16 %v872
        %v945 = vpack.c.b16 %v944, %v943
        %946 = vrot.lane.b32.xlu0 %v945, 124
        %v947 = vpop.permute.xlu0 %946
        %v949 = vsel %vm598, %v940, 0
        %v952 = vsel %vm598, %v947, 0
        %954 = vmatprep.subr.bf16.mxu0 0
        %955 = vmatpush1.bf16.xpose.msra.mxu0 0
        %956 = vmatprep.subr.bf16.mxu0 0
        %957 = vmatpush1.bf16.xpose.msra.mxu0 0
        %958 = vmatprep.subr.bf16.mxu0 0
        %959 = vmatpush1.bf16.xpose.msra.mxu0 0
        %960 = vmatprep.subr.bf16.mxu0 0
        %961 = vmatpush1.bf16.xpose.msra.mxu0 0
        %962 = vmatprep.subr.bf16.mxu0 0
        %963 = vmatpush1.bf16.xpose.msra.mxu0 0
        %964 = vmatprep.subr.bf16.mxu0 0
        %965 = vmatpush1.bf16.xpose.msra.mxu0 0
        %966 = vmatprep.subr.bf16.mxu0 0
        %967 = vmatpush1.bf16.xpose.msra.mxu0 0
        %968 = vmatprep.subr.bf16.mxu0 0
        %969 = vmatpush1.bf16.xpose.msra.mxu0 %v952
        %970 = vmatprep.subr.bf16.mxu0 0
        %971 = vmatpush2.bf16.xpose.msra.mxu0 0
        %972 = vmatprep.subr.bf16.mxu0 0
        %973 = vmatpush2.bf16.xpose.msra.mxu0 0
        %974 = vmatprep.subr.bf16.mxu0 0
        %975 = vmatpush2.bf16.xpose.msra.mxu0 0
        %976 = vmatprep.subr.bf16.mxu0 0
        %977 = vmatpush2.bf16.xpose.msra.mxu0 0
        %978 = vmatprep.subr.bf16.mxu0 0
        %979 = vmatpush2.bf16.xpose.msra.mxu0 0
        %980 = vmatprep.subr.bf16.mxu0 0
        %981 = vmatpush2.bf16.xpose.msra.mxu0 0
        %982 = vmatprep.subr.bf16.mxu0 0
        %983 = vmatpush2.bf16.xpose.msra.mxu0 0
        %984 = vmatprep.subr.bf16.mxu0 0
        %985 = vmatpush2.bf16.xpose.msra.mxu0 0
        %986 = vmatprep.mubr.bf16.mxu0 0
        %987 = vmatmul.mubr.bf16.gmra.mxu0 %v949
        %v988 = vpop.f32.mrf.mxu0
        %v989 = vadd.f32 0.0, %v988
        %v990 = vpop.f32.mrf.mxu0
        %v991 = vpop.f32.mrf.mxu0
        %v992 = vadd.f32 0.0, %v991
        %v993 = vpop.f32.mrf.mxu0
        %994 = vdwg.mxu0
        %v995 = vsel %vm703, %v928, -inf
        %996 = vmax.xlane.f32.xlu0 %v995
        %v997 = vpop.xlane.xlu0 %996
        %v998 = vsel %vm703, %v931, -inf
        %999 = vmax.xlane.f32.xlu0 %v998
        %v1000 = vpop.xlane.xlu0 %999
        %v1001 = vsel %vm703, %v989, -inf
        %1002 = vmax.xlane.f32.xlu0 %v1001
        %v1003 = vpop.xlane.xlu0 %1002
        %v1004 = vsel %vm703, %v992, -inf
        %1005 = vmax.xlane.f32.xlu0 %v1004
        %v1006 = vpop.xlane.xlu0 %1005
        %v1007 = vsub.f32 %v928, %v997
        %v1008 = vsub.f32 %v931, %v1000
        %v1009 = vsub.f32 %v989, %v1003
        %v1010 = vsub.f32 %v992, %v1006
        %v1011 = vmul.f32 %v1007, 1.442695
        %v1012 = vpow.pop %v1011
        %v1013 = vmul.f32 %v1008, 1.442695
        %v1014 = vpow.pop %v1013
        %v1015 = vmul.f32 %v1009, 1.442695
        %v1016 = vpow.pop %v1015
        %v1017 = vmul.f32 %v1010, 1.442695
        %v1018 = vpow.pop %v1017
        %v1019 = vsel %vm703, %v1012, 0.0
        %1020 = vadd.xlane.f32.xlu0 %v1019
        %v1021 = vpop.xlane.xlu0 %1020
        %v1022 = vsel %vm703, %v1014, 0.0
        %1023 = vadd.xlane.f32.xlu0 %v1022
        %v1024 = vpop.xlane.xlu0 %1023
        %v1025 = vsel %vm703, %v1016, 0.0
        %1026 = vadd.xlane.f32.xlu0 %v1025
        %v1027 = vpop.xlane.xlu0 %1026
        %v1028 = vsel %vm703, %v1018, 0.0
        %1029 = vadd.xlane.f32.xlu0 %v1028
        %v1030 = vpop.xlane.xlu0 %1029
        %v1031 = vrcp.pop %v1021
        %v1032 = vrcp.pop %v1024
        %v1033 = vrcp.pop %v1027
        %v1034 = vrcp.pop %v1030
        %v1035 = vpack.c.bf16 %v1014, %v1012
        %v1036 = vpack.c.bf16 %v1018, %v1016
        %1037 = vrot.lane.b32.xlu0 %v884, 92
        %v1038 = vpop.permute.xlu0 %1037
        %v1041 = vsel %vm703, %v1035, 0
        %1043 = vmatprep.subr.bf16.mxu0 0
        %1044 = vmatpush1.bf16.msra.mxu0 0
        %1045 = vmatprep.subr.bf16.mxu0 0
        %1046 = vmatpush1.bf16.msra.mxu0 0
        %1047 = vmatprep.subr.bf16.mxu0 0
        %1048 = vmatpush1.bf16.msra.mxu0 0
        %1049 = vmatprep.subr.bf16.mxu0 0
        %1050 = vmatpush1.bf16.msra.mxu0 0
        %1051 = vmatprep.subr.bf16.mxu0 0
        %1052 = vmatpush1.bf16.msra.mxu0 0
        %1053 = vmatprep.subr.bf16.mxu0 0
        %1054 = vmatpush1.bf16.msra.mxu0 0
        %1055 = vmatprep.subr.bf16.mxu0 0
        %1056 = vmatpush1.bf16.msra.mxu0 0
        %1057 = vmatprep.subr.bf16.mxu0 0
        %1058 = vmatpush1.bf16.msra.mxu0 %v1038
        %1059 = vmatprep.subr.bf16.mxu0 0
        %1060 = vmatpush2.bf16.msra.mxu0 0
        %1061 = vmatprep.subr.bf16.mxu0 0
        %1062 = vmatpush2.bf16.msra.mxu0 0
        %1063 = vmatprep.subr.bf16.mxu0 0
        %1064 = vmatpush2.bf16.msra.mxu0 0
        %1065 = vmatprep.subr.bf16.mxu0 0
        %1066 = vmatpush2.bf16.msra.mxu0 0
        %1067 = vmatprep.subr.bf16.mxu0 0
        %1068 = vmatpush2.bf16.msra.mxu0 0
        %1069 = vmatprep.subr.bf16.mxu0 0
        %1070 = vmatpush2.bf16.msra.mxu0 0
        %1071 = vmatprep.subr.bf16.mxu0 0
        %1072 = vmatpush2.bf16.msra.mxu0 0
        %1073 = vmatprep.subr.bf16.mxu0 0
        %1074 = vmatpush2.bf16.msra.mxu0 0
        %1075 = vmatprep.mubr.bf16.mxu0 0
        %1076 = vmatmul.mubr.bf16.gmra.mxu0 %v1041
        %v1077 = vpop.f32.mrf.mxu0
        %v1078 = vadd.f32 0.0, %v1077
        %v1079 = vpop.f32.mrf.mxu0
        %v1080 = vpop.f32.mrf.mxu0
        %v1081 = vadd.f32 0.0, %v1080
        %v1082 = vpop.f32.mrf.mxu0
        %1083 = vdwg.mxu0
        %1084 = vrot.lane.b32.xlu0 %v945, 92
        %v1085 = vpop.permute.xlu0 %1084
        %v1088 = vsel %vm703, %v1036, 0
        %1090 = vmatprep.subr.bf16.mxu0 0
        %1091 = vmatpush1.bf16.msra.mxu0 0
        %1092 = vmatprep.subr.bf16.mxu0 0
        %1093 = vmatpush1.bf16.msra.mxu0 0
        %1094 = vmatprep.subr.bf16.mxu0 0
        %1095 = vmatpush1.bf16.msra.mxu0 0
        %1096 = vmatprep.subr.bf16.mxu0 0
        %1097 = vmatpush1.bf16.msra.mxu0 0
        %1098 = vmatprep.subr.bf16.mxu0 0
        %1099 = vmatpush1.bf16.msra.mxu0 0
        %1100 = vmatprep.subr.bf16.mxu0 0
        %1101 = vmatpush1.bf16.msra.mxu0 0
        %1102 = vmatprep.subr.bf16.mxu0 0
        %1103 = vmatpush1.bf16.msra.mxu0 0
        %1104 = vmatprep.subr.bf16.mxu0 0
        %1105 = vmatpush1.bf16.msra.mxu0 %v1085
        %1106 = vmatprep.subr.bf16.mxu0 0
        %1107 = vmatpush2.bf16.msra.mxu0 0
        %1108 = vmatprep.subr.bf16.mxu0 0
        %1109 = vmatpush2.bf16.msra.mxu0 0
        %1110 = vmatprep.subr.bf16.mxu0 0
        %1111 = vmatpush2.bf16.msra.mxu0 0
        %1112 = vmatprep.subr.bf16.mxu0 0
        %1113 = vmatpush2.bf16.msra.mxu0 0
        %1114 = vmatprep.subr.bf16.mxu0 0
        %1115 = vmatpush2.bf16.msra.mxu0 0
        %1116 = vmatprep.subr.bf16.mxu0 0
        %1117 = vmatpush2.bf16.msra.mxu0 0
        %1118 = vmatprep.subr.bf16.mxu0 0
        %1119 = vmatpush2.bf16.msra.mxu0 0
        %1120 = vmatprep.subr.bf16.mxu0 0
        %1121 = vmatpush2.bf16.msra.mxu0 0
        %1122 = vmatprep.mubr.bf16.mxu0 0
        %1123 = vmatmul.mubr.bf16.gmra.mxu0 %v1088
        %v1124 = vpop.f32.mrf.mxu0
        %v1125 = vadd.f32 0.0, %v1124
        %v1126 = vpop.f32.mrf.mxu0
        %v1127 = vpop.f32.mrf.mxu0
        %v1128 = vadd.f32 0.0, %v1127
        %v1129 = vpop.f32.mrf.mxu0
        %1130 = vdwg.mxu0
        %v1131 = vmul.f32 %v1078, %v1031
        %v1132 = vmul.f32 %v1081, %v1032
        %v1133 = vmul.f32 %v1125, %v1033
        %v1134 = vmul.f32 %v1128, %v1034
        %v1135 = vpack.c.bf16 %v1132, %v1131
        %v1136 = vpack.c.bf16 %v1134, %v1133
        %v1139 = vunpack.c.l.b16 %v1135
        %v1140 = vunpack.c.h.b16 %v1135
        %v1141 = vunpack.c.l.b16 %v1136
        %v1142 = vunpack.c.h.b16 %v1136
        %v1143 = vpack.c.b16 %v1139, %v1139
        %v1144 = vpack.c.b16 %v1140, %v1140
        %v1145 = vpack.c.b16 %v1141, %v1141
        %v1146 = vpack.c.b16 %v1142, %v1142
        %1147 = vrot.lane.b32.xlu0 %v1143, 4
        %v1148 = vpop.permute.xlu0 %1147
        %1149 = vrot.lane.b32.xlu0 %v1144, 4
        %v1150 = vpop.permute.xlu0 %1149
        %1151 = vrot.lane.b32.xlu0 %v1145, 4
        %v1152 = vpop.permute.xlu0 %1151
        %1153 = vrot.lane.b32.xlu0 %v1146, 4
        %v1154 = vpop.permute.xlu0 %1153
        %vm1159 = vcmask 60448
        %1160 = vst.msk [vmem:[#allocation4] sm:$0xf] %vm1159, %v1148
        %1161 = vst.msk [vmem:[#allocation4 + $0x4] sm:$0xf] %vm1159, %v1150
        %1162 = vst.msk [vmem:[#allocation4 + $0x8] sm:$0xf] %vm1159, %v1152
        %1163 = vst.msk [vmem:[#allocation4 + $0xc] sm:$0xf] %vm1159, %v1154
        %v1164 = vld [vmem:[#allocation2] sm:$0xf]
        %v1165 = vld [vmem:[#allocation2 + $0x4] sm:$0xf]
        %v1166 = vld [vmem:[#allocation2 + $0x8] sm:$0xf]
        %v1167 = vld [vmem:[#allocation2 + $0xc] sm:$0xf]
        %v1168 = vld [vmem:[#allocation3] sm:$0xf]
        %v1169 = vld [vmem:[#allocation3 + $0x4] sm:$0xf]
        %v1170 = vld [vmem:[#allocation3 + $0x8] sm:$0xf]
        %v1171 = vld [vmem:[#allocation3 + $0xc] sm:$0xf]
        %v1174 = vunpack.c.l.b16 %v1164
        %v1175 = vunpack.c.l.b16 %v1165
        %v1176 = vpack.c.b16 %v1175, %v1174
        %1177 = vrot.lane.b32.xlu0 %v1176, 120
        %v1178 = vpop.permute.xlu0 %1177
        %v1181 = vunpack.c.l.b16 %v1168
        %v1182 = vunpack.c.l.b16 %v1169
        %v1183 = vpack.c.b16 %v1182, %v1181
        %1184 = vrot.lane.b32.xlu0 %v1183, 120
        %v1185 = vpop.permute.xlu0 %1184
        %v1187 = vsel %vm598, %v1178, 0
        %v1190 = vsel %vm598, %v1185, 0
        %1192 = vmatprep.subr.bf16.mxu0 0
        %1193 = vmatpush1.bf16.xpose.msra.mxu0 0
        %1194 = vmatprep.subr.bf16.mxu0 0
        %1195 = vmatpush1.bf16.xpose.msra.mxu0 0
        %1196 = vmatprep.subr.bf16.mxu0 0
        %1197 = vmatpush1.bf16.xpose.msra.mxu0 0
        %1198 = vmatprep.subr.bf16.mxu0 0
        %1199 = vmatpush1.bf16.xpose.msra.mxu0 0
        %1200 = vmatprep.subr.bf16.mxu0 0
        %1201 = vmatpush1.bf16.xpose.msra.mxu0 0
        %1202 = vmatprep.subr.bf16.mxu0 0
        %1203 = vmatpush1.bf16.xpose.msra.mxu0 0
        %1204 = vmatprep.subr.bf16.mxu0 0
        %1205 = vmatpush1.bf16.xpose.msra.mxu0 0
        %1206 = vmatprep.subr.bf16.mxu0 0
        %1207 = vmatpush1.bf16.xpose.msra.mxu0 %v1190
        %1208 = vmatprep.subr.bf16.mxu0 0
        %1209 = vmatpush2.bf16.xpose.msra.mxu0 0
        %1210 = vmatprep.subr.bf16.mxu0 0
        %1211 = vmatpush2.bf16.xpose.msra.mxu0 0
        %1212 = vmatprep.subr.bf16.mxu0 0
        %1213 = vmatpush2.bf16.xpose.msra.mxu0 0
        %1214 = vmatprep.subr.bf16.mxu0 0
        %1215 = vmatpush2.bf16.xpose.msra.mxu0 0
        %1216 = vmatprep.subr.bf16.mxu0 0
        %1217 = vmatpush2.bf16.xpose.msra.mxu0 0
        %1218 = vmatprep.subr.bf16.mxu0 0
        %1219 = vmatpush2.bf16.xpose.msra.mxu0 0
        %1220 = vmatprep.subr.bf16.mxu0 0
        %1221 = vmatpush2.bf16.xpose.msra.mxu0 0
        %1222 = vmatprep.subr.bf16.mxu0 0
        %1223 = vmatpush2.bf16.xpose.msra.mxu0 0
        %1224 = vmatprep.mubr.bf16.mxu0 0
        %1225 = vmatmul.mubr.bf16.gmra.mxu0 %v1187
        %v1226 = vpop.f32.mrf.mxu0
        %v1227 = vadd.f32 0.0, %v1226
        %v1228 = vpop.f32.mrf.mxu0
        %v1229 = vpop.f32.mrf.mxu0
        %v1230 = vadd.f32 0.0, %v1229
        %v1231 = vpop.f32.mrf.mxu0
        %1232 = vdwg.mxu0
        %v1235 = vunpack.c.l.b16 %v1166
        %v1236 = vunpack.c.l.b16 %v1167
        %v1237 = vpack.c.b16 %v1236, %v1235
        %1238 = vrot.lane.b32.xlu0 %v1237, 120
        %v1239 = vpop.permute.xlu0 %1238
        %v1242 = vunpack.c.l.b16 %v1170
        %v1243 = vunpack.c.l.b16 %v1171
        %v1244 = vpack.c.b16 %v1243, %v1242
        %1245 = vrot.lane.b32.xlu0 %v1244, 120
        %v1246 = vpop.permute.xlu0 %1245
        %v1248 = vsel %vm598, %v1239, 0
        %v1251 = vsel %vm598, %v1246, 0
        %1253 = vmatprep.subr.bf16.mxu0 0
        %1254 = vmatpush1.bf16.xpose.msra.mxu0 0
        %1255 = vmatprep.subr.bf16.mxu0 0
        %1256 = vmatpush1.bf16.xpose.msra.mxu0 0
        %1257 = vmatprep.subr.bf16.mxu0 0
        %1258 = vmatpush1.bf16.xpose.msra.mxu0 0
        %1259 = vmatprep.subr.bf16.mxu0 0
        %1260 = vmatpush1.bf16.xpose.msra.mxu0 0
        %1261 = vmatprep.subr.bf16.mxu0 0
        %1262 = vmatpush1.bf16.xpose.msra.mxu0 0
        %1263 = vmatprep.subr.bf16.mxu0 0
        %1264 = vmatpush1.bf16.xpose.msra.mxu0 0
        %1265 = vmatprep.subr.bf16.mxu0 0
        %1266 = vmatpush1.bf16.xpose.msra.mxu0 0
        %1267 = vmatprep.subr.bf16.mxu0 0
        %1268 = vmatpush1.bf16.xpose.msra.mxu0 %v1251
        %1269 = vmatprep.subr.bf16.mxu0 0
        %1270 = vmatpush2.bf16.xpose.msra.mxu0 0
        %1271 = vmatprep.subr.bf16.mxu0 0
        %1272 = vmatpush2.bf16.xpose.msra.mxu0 0
        %1273 = vmatprep.subr.bf16.mxu0 0
        %1274 = vmatpush2.bf16.xpose.msra.mxu0 0
        %1275 = vmatprep.subr.bf16.mxu0 0
        %1276 = vmatpush2.bf16.xpose.msra.mxu0 0
        %1277 = vmatprep.subr.bf16.mxu0 0
        %1278 = vmatpush2.bf16.xpose.msra.mxu0 0
        %1279 = vmatprep.subr.bf16.mxu0 0
        %1280 = vmatpush2.bf16.xpose.msra.mxu0 0
        %1281 = vmatprep.subr.bf16.mxu0 0
        %1282 = vmatpush2.bf16.xpose.msra.mxu0 0
        %1283 = vmatprep.subr.bf16.mxu0 0
        %1284 = vmatpush2.bf16.xpose.msra.mxu0 0
        %1285 = vmatprep.mubr.bf16.mxu0 0
        %1286 = vmatmul.mubr.bf16.gmra.mxu0 %v1248
        %v1287 = vpop.f32.mrf.mxu0
        %v1288 = vadd.f32 0.0, %v1287
        %v1289 = vpop.f32.mrf.mxu0
        %v1290 = vpop.f32.mrf.mxu0
        %v1291 = vadd.f32 0.0, %v1290
        %v1292 = vpop.f32.mrf.mxu0
        %1293 = vdwg.mxu0
        %v1294 = vsel %vm703, %v1227, -inf
        %1295 = vmax.xlane.f32.xlu0 %v1294
        %v1296 = vpop.xlane.xlu0 %1295
        %v1297 = vsel %vm703, %v1230, -inf
        %1298 = vmax.xlane.f32.xlu0 %v1297
        %v1299 = vpop.xlane.xlu0 %1298
        %v1300 = vsel %vm703, %v1288, -inf
        %1301 = vmax.xlane.f32.xlu0 %v1300
        %v1302 = vpop.xlane.xlu0 %1301
        %v1303 = vsel %vm703, %v1291, -inf
        %1304 = vmax.xlane.f32.xlu0 %v1303
        %v1305 = vpop.xlane.xlu0 %1304
        %v1306 = vsub.f32 %v1227, %v1296
        %v1307 = vsub.f32 %v1230, %v1299
        %v1308 = vsub.f32 %v1288, %v1302
        %v1309 = vsub.f32 %v1291, %v1305
        %v1310 = vmul.f32 %v1306, 1.442695
        %v1311 = vpow.pop %v1310
        %v1312 = vmul.f32 %v1307, 1.442695
        %v1313 = vpow.pop %v1312
        %v1314 = vmul.f32 %v1308, 1.442695
        %v1315 = vpow.pop %v1314
        %v1316 = vmul.f32 %v1309, 1.442695
        %v1317 = vpow.pop %v1316
        %v1318 = vsel %vm703, %v1311, 0.0
        %1319 = vadd.xlane.f32.xlu0 %v1318
        %v1320 = vpop.xlane.xlu0 %1319
        %v1321 = vsel %vm703, %v1313, 0.0
        %1322 = vadd.xlane.f32.xlu0 %v1321
        %v1323 = vpop.xlane.xlu0 %1322
        %v1324 = vsel %vm703, %v1315, 0.0
        %1325 = vadd.xlane.f32.xlu0 %v1324
        %v1326 = vpop.xlane.xlu0 %1325
        %v1327 = vsel %vm703, %v1317, 0.0
        %1328 = vadd.xlane.f32.xlu0 %v1327
        %v1329 = vpop.xlane.xlu0 %1328
        %v1330 = vrcp.pop %v1320
        %v1331 = vrcp.pop %v1323
        %v1332 = vrcp.pop %v1326
        %v1333 = vrcp.pop %v1329
        %v1334 = vpack.c.bf16 %v1313, %v1311
        %v1335 = vpack.c.bf16 %v1317, %v1315
        %1336 = vrot.lane.b32.xlu0 %v1183, 88
        %v1337 = vpop.permute.xlu0 %1336
        %v1340 = vsel %vm703, %v1334, 0
        %1342 = vmatprep.subr.bf16.mxu0 0
        %1343 = vmatpush1.bf16.msra.mxu0 0
        %1344 = vmatprep.subr.bf16.mxu0 0
        %1345 = vmatpush1.bf16.msra.mxu0 0
        %1346 = vmatprep.subr.bf16.mxu0 0
        %1347 = vmatpush1.bf16.msra.mxu0 0
        %1348 = vmatprep.subr.bf16.mxu0 0
        %1349 = vmatpush1.bf16.msra.mxu0 0
        %1350 = vmatprep.subr.bf16.mxu0 0
        %1351 = vmatpush1.bf16.msra.mxu0 0
        %1352 = vmatprep.subr.bf16.mxu0 0
        %1353 = vmatpush1.bf16.msra.mxu0 0
        %1354 = vmatprep.subr.bf16.mxu0 0
        %1355 = vmatpush1.bf16.msra.mxu0 0
        %1356 = vmatprep.subr.bf16.mxu0 0
        %1357 = vmatpush1.bf16.msra.mxu0 %v1337
        %1358 = vmatprep.subr.bf16.mxu0 0
        %1359 = vmatpush2.bf16.msra.mxu0 0
        %1360 = vmatprep.subr.bf16.mxu0 0
        %1361 = vmatpush2.bf16.msra.mxu0 0
        %1362 = vmatprep.subr.bf16.mxu0 0
        %1363 = vmatpush2.bf16.msra.mxu0 0
        %1364 = vmatprep.subr.bf16.mxu0 0
        %1365 = vmatpush2.bf16.msra.mxu0 0
        %1366 = vmatprep.subr.bf16.mxu0 0
        %1367 = vmatpush2.bf16.msra.mxu0 0
        %1368 = vmatprep.subr.bf16.mxu0 0
        %1369 = vmatpush2.bf16.msra.mxu0 0
        %1370 = vmatprep.subr.bf16.mxu0 0
        %1371 = vmatpush2.bf16.msra.mxu0 0
        %1372 = vmatprep.subr.bf16.mxu0 0
        %1373 = vmatpush2.bf16.msra.mxu0 0
        %1374 = vmatprep.mubr.bf16.mxu0 0
        %1375 = vmatmul.mubr.bf16.gmra.mxu0 %v1340
        %v1376 = vpop.f32.mrf.mxu0
        %v1377 = vadd.f32 0.0, %v1376
        %v1378 = vpop.f32.mrf.mxu0
        %v1379 = vpop.f32.mrf.mxu0
        %v1380 = vadd.f32 0.0, %v1379
        %v1381 = vpop.f32.mrf.mxu0
        %1382 = vdwg.mxu0
        %1383 = vrot.lane.b32.xlu0 %v1244, 88
        %v1384 = vpop.permute.xlu0 %1383
        %v1387 = vsel %vm703, %v1335, 0
        %1389 = vmatprep.subr.bf16.mxu0 0
        %1390 = vmatpush1.bf16.msra.mxu0 0
        %1391 = vmatprep.subr.bf16.mxu0 0
        %1392 = vmatpush1.bf16.msra.mxu0 0
        %1393 = vmatprep.subr.bf16.mxu0 0
        %1394 = vmatpush1.bf16.msra.mxu0 0
        %1395 = vmatprep.subr.bf16.mxu0 0
        %1396 = vmatpush1.bf16.msra.mxu0 0
        %1397 = vmatprep.subr.bf16.mxu0 0
        %1398 = vmatpush1.bf16.msra.mxu0 0
        %1399 = vmatprep.subr.bf16.mxu0 0
        %1400 = vmatpush1.bf16.msra.mxu0 0
        %1401 = vmatprep.subr.bf16.mxu0 0
        %1402 = vmatpush1.bf16.msra.mxu0 0
        %1403 = vmatprep.subr.bf16.mxu0 0
        %1404 = vmatpush1.bf16.msra.mxu0 %v1384
        %1405 = vmatprep.subr.bf16.mxu0 0
        %1406 = vmatpush2.bf16.msra.mxu0 0
        %1407 = vmatprep.subr.bf16.mxu0 0
        %1408 = vmatpush2.bf16.msra.mxu0 0
        %1409 = vmatprep.subr.bf16.mxu0 0
        %1410 = vmatpush2.bf16.msra.mxu0 0
        %1411 = vmatprep.subr.bf16.mxu0 0
        %1412 = vmatpush2.bf16.msra.mxu0 0
        %1413 = vmatprep.subr.bf16.mxu0 0
        %1414 = vmatpush2.bf16.msra.mxu0 0
        %1415 = vmatprep.subr.bf16.mxu0 0
        %1416 = vmatpush2.bf16.msra.mxu0 0
        %1417 = vmatprep.subr.bf16.mxu0 0
        %1418 = vmatpush2.bf16.msra.mxu0 0
        %1419 = vmatprep.subr.bf16.mxu0 0
        %1420 = vmatpush2.bf16.msra.mxu0 0
        %1421 = vmatprep.mubr.bf16.mxu0 0
        %1422 = vmatmul.mubr.bf16.gmra.mxu0 %v1387
        %v1423 = vpop.f32.mrf.mxu0
        %v1424 = vadd.f32 0.0, %v1423
        %v1425 = vpop.f32.mrf.mxu0
        %v1426 = vpop.f32.mrf.mxu0
        %v1427 = vadd.f32 0.0, %v1426
        %v1428 = vpop.f32.mrf.mxu0
        %1429 = vdwg.mxu0
        %v1430 = vmul.f32 %v1377, %v1330
        %v1431 = vmul.f32 %v1380, %v1331
        %v1432 = vmul.f32 %v1424, %v1332
        %v1433 = vmul.f32 %v1427, %v1333
        %v1434 = vpack.c.bf16 %v1431, %v1430
        %v1435 = vpack.c.bf16 %v1433, %v1432
        %v1438 = vunpack.c.l.b16 %v1434
        %v1439 = vunpack.c.h.b16 %v1434
        %v1440 = vunpack.c.l.b16 %v1435
        %v1441 = vunpack.c.h.b16 %v1435
        %v1442 = vpack.c.b16 %v1438, %v1438
        %v1443 = vpack.c.b16 %v1439, %v1439
        %v1444 = vpack.c.b16 %v1440, %v1440
        %v1445 = vpack.c.b16 %v1441, %v1441
        %1446 = vrot.lane.b32.xlu0 %v1442, 8
        %v1447 = vpop.permute.xlu0 %1446
        %1448 = vrot.lane.b32.xlu0 %v1443, 8
        %v1449 = vpop.permute.xlu0 %1448
        %1450 = vrot.lane.b32.xlu0 %v1444, 8
        %v1451 = vpop.permute.xlu0 %1450
        %1452 = vrot.lane.b32.xlu0 %v1445, 8
        %v1453 = vpop.permute.xlu0 %1452
        %vm1458 = vcmask 93248
        %1459 = vst.msk [vmem:[#allocation4] sm:$0xf] %vm1458, %v1447
        %1460 = vst.msk [vmem:[#allocation4 + $0x4] sm:$0xf] %vm1458, %v1449
        %1461 = vst.msk [vmem:[#allocation4 + $0x8] sm:$0xf] %vm1458, %v1451
        %1462 = vst.msk [vmem:[#allocation4 + $0xc] sm:$0xf] %vm1458, %v1453
        %v1463 = vld [vmem:[#allocation2] sm:$0xf]
        %v1464 = vld [vmem:[#allocation2 + $0x4] sm:$0xf]
        %v1465 = vld [vmem:[#allocation2 + $0x8] sm:$0xf]
        %v1466 = vld [vmem:[#allocation2 + $0xc] sm:$0xf]
        %v1467 = vld [vmem:[#allocation3] sm:$0xf]
        %v1468 = vld [vmem:[#allocation3 + $0x4] sm:$0xf]
        %v1469 = vld [vmem:[#allocation3 + $0x8] sm:$0xf]
        %v1470 = vld [vmem:[#allocation3 + $0xc] sm:$0xf]
        %v1473 = vunpack.c.l.b16 %v1463
        %v1474 = vunpack.c.l.b16 %v1464
        %v1475 = vpack.c.b16 %v1474, %v1473
        %1476 = vrot.lane.b32.xlu0 %v1475, 116
        %v1477 = vpop.permute.xlu0 %1476
        %v1480 = vunpack.c.l.b16 %v1467
        %v1481 = vunpack.c.l.b16 %v1468
        %v1482 = vpack.c.b16 %v1481, %v1480
        %1483 = vrot.lane.b32.xlu0 %v1482, 116
        %v1484 = vpop.permute.xlu0 %1483
        %v1486 = vsel %vm598, %v1477, 0
        %v1489 = vsel %vm598, %v1484, 0
        %1491 = vmatprep.subr.bf16.mxu0 0
        %1492 = vmatpush1.bf16.xpose.msra.mxu0 0
        %1493 = vmatprep.subr.bf16.mxu0 0
        %1494 = vmatpush1.bf16.xpose.msra.mxu0 0
        %1495 = vmatprep.subr.bf16.mxu0 0
        %1496 = vmatpush1.bf16.xpose.msra.mxu0 0
        %1497 = vmatprep.subr.bf16.mxu0 0
        %1498 = vmatpush1.bf16.xpose.msra.mxu0 0
        %1499 = vmatprep.subr.bf16.mxu0 0
        %1500 = vmatpush1.bf16.xpose.msra.mxu0 0
        %1501 = vmatprep.subr.bf16.mxu0 0
        %1502 = vmatpush1.bf16.xpose.msra.mxu0 0
        %1503 = vmatprep.subr.bf16.mxu0 0
        %1504 = vmatpush1.bf16.xpose.msra.mxu0 0
        %1505 = vmatprep.subr.bf16.mxu0 0
        %1506 = vmatpush1.bf16.xpose.msra.mxu0 %v1489
        %1507 = vmatprep.subr.bf16.mxu0 0
        %1508 = vmatpush2.bf16.xpose.msra.mxu0 0
        %1509 = vmatprep.subr.bf16.mxu0 0
        %1510 = vmatpush2.bf16.xpose.msra.mxu0 0
        %1511 = vmatprep.subr.bf16.mxu0 0
        %1512 = vmatpush2.bf16.xpose.msra.mxu0 0
        %1513 = vmatprep.subr.bf16.mxu0 0
        %1514 = vmatpush2.bf16.xpose.msra.mxu0 0
        %1515 = vmatprep.subr.bf16.mxu0 0
        %1516 = vmatpush2.bf16.xpose.msra.mxu0 0
        %1517 = vmatprep.subr.bf16.mxu0 0
        %1518 = vmatpush2.bf16.xpose.msra.mxu0 0
        %1519 = vmatprep.subr.bf16.mxu0 0
        %1520 = vmatpush2.bf16.xpose.msra.mxu0 0
        %1521 = vmatprep.subr.bf16.mxu0 0
        %1522 = vmatpush2.bf16.xpose.msra.mxu0 0
        %1523 = vmatprep.mubr.bf16.mxu0 0
        %1524 = vmatmul.mubr.bf16.gmra.mxu0 %v1486
        %v1525 = vpop.f32.mrf.mxu0
        %v1526 = vadd.f32 0.0, %v1525
        %v1527 = vpop.f32.mrf.mxu0
        %v1528 = vpop.f32.mrf.mxu0
        %v1529 = vadd.f32 0.0, %v1528
        %v1530 = vpop.f32.mrf.mxu0
        %1531 = vdwg.mxu0
        %v1534 = vunpack.c.l.b16 %v1465
        %v1535 = vunpack.c.l.b16 %v1466
        %v1536 = vpack.c.b16 %v1535, %v1534
        %1537 = vrot.lane.b32.xlu0 %v1536, 116
        %v1538 = vpop.permute.xlu0 %1537
        %v1541 = vunpack.c.l.b16 %v1469
        %v1542 = vunpack.c.l.b16 %v1470
        %v1543 = vpack.c.b16 %v1542, %v1541
        %1544 = vrot.lane.b32.xlu0 %v1543, 116
        %v1545 = vpop.permute.xlu0 %1544
        %v1547 = vsel %vm598, %v1538, 0
        %v1550 = vsel %vm598, %v1545, 0
        %1552 = vmatprep.subr.bf16.mxu0 0
        %1553 = vmatpush1.bf16.xpose.msra.mxu0 0
        %1554 = vmatprep.subr.bf16.mxu0 0
        %1555 = vmatpush1.bf16.xpose.msra.mxu0 0
        %1556 = vmatprep.subr.bf16.mxu0 0
        %1557 = vmatpush1.bf16.xpose.msra.mxu0 0
        %1558 = vmatprep.subr.bf16.mxu0 0
        %1559 = vmatpush1.bf16.xpose.msra.mxu0 0
        %1560 = vmatprep.subr.bf16.mxu0 0
        %1561 = vmatpush1.bf16.xpose.msra.mxu0 0
        %1562 = vmatprep.subr.bf16.mxu0 0
        %1563 = vmatpush1.bf16.xpose.msra.mxu0 0
        %1564 = vmatprep.subr.bf16.mxu0 0
        %1565 = vmatpush1.bf16.xpose.msra.mxu0 0
        %1566 = vmatprep.subr.bf16.mxu0 0
        %1567 = vmatpush1.bf16.xpose.msra.mxu0 %v1550
        %1568 = vmatprep.subr.bf16.mxu0 0
        %1569 = vmatpush2.bf16.xpose.msra.mxu0 0
        %1570 = vmatprep.subr.bf16.mxu0 0
        %1571 = vmatpush2.bf16.xpose.msra.mxu0 0
        %1572 = vmatprep.subr.bf16.mxu0 0
        %1573 = vmatpush2.bf16.xpose.msra.mxu0 0
        %1574 = vmatprep.subr.bf16.mxu0 0
        %1575 = vmatpush2.bf16.xpose.msra.mxu0 0
        %1576 = vmatprep.subr.bf16.mxu0 0
        %1577 = vmatpush2.bf16.xpose.msra.mxu0 0
        %1578 = vmatprep.subr.bf16.mxu0 0
        %1579 = vmatpush2.bf16.xpose.msra.mxu0 0
        %1580 = vmatprep.subr.bf16.mxu0 0
        %1581 = vmatpush2.bf16.xpose.msra.mxu0 0
        %1582 = vmatprep.subr.bf16.mxu0 0
        %1583 = vmatpush2.bf16.xpose.msra.mxu0 0
        %1584 = vmatprep.mubr.bf16.mxu0 0
        %1585 = vmatmul.mubr.bf16.gmra.mxu0 %v1547
        %v1586 = vpop.f32.mrf.mxu0
        %v1587 = vadd.f32 0.0, %v1586
        %v1588 = vpop.f32.mrf.mxu0
        %v1589 = vpop.f32.mrf.mxu0
        %v1590 = vadd.f32 0.0, %v1589
        %v1591 = vpop.f32.mrf.mxu0
        %1592 = vdwg.mxu0
        %v1593 = vsel %vm703, %v1526, -inf
        %1594 = vmax.xlane.f32.xlu0 %v1593
        %v1595 = vpop.xlane.xlu0 %1594
        %v1596 = vsel %vm703, %v1529, -inf
        %1597 = vmax.xlane.f32.xlu0 %v1596
        %v1598 = vpop.xlane.xlu0 %1597
        %v1599 = vsel %vm703, %v1587, -inf
        %1600 = vmax.xlane.f32.xlu0 %v1599
        %v1601 = vpop.xlane.xlu0 %1600
        %v1602 = vsel %vm703, %v1590, -inf
        %1603 = vmax.xlane.f32.xlu0 %v1602
        %v1604 = vpop.xlane.xlu0 %1603
        %v1605 = vsub.f32 %v1526, %v1595
        %v1606 = vsub.f32 %v1529, %v1598
        %v1607 = vsub.f32 %v1587, %v1601
        %v1608 = vsub.f32 %v1590, %v1604
        %v1609 = vmul.f32 %v1605, 1.442695
        %v1610 = vpow.pop %v1609
        %v1611 = vmul.f32 %v1606, 1.442695
        %v1612 = vpow.pop %v1611
        %v1613 = vmul.f32 %v1607, 1.442695
        %v1614 = vpow.pop %v1613
        %v1615 = vmul.f32 %v1608, 1.442695
        %v1616 = vpow.pop %v1615
        %v1617 = vsel %vm703, %v1610, 0.0
        %1618 = vadd.xlane.f32.xlu0 %v1617
        %v1619 = vpop.xlane.xlu0 %1618
        %v1620 = vsel %vm703, %v1612, 0.0
        %1621 = vadd.xlane.f32.xlu0 %v1620
        %v1622 = vpop.xlane.xlu0 %1621
        %v1623 = vsel %vm703, %v1614, 0.0
        %1624 = vadd.xlane.f32.xlu0 %v1623
        %v1625 = vpop.xlane.xlu0 %1624
        %v1626 = vsel %vm703, %v1616, 0.0
        %1627 = vadd.xlane.f32.xlu0 %v1626
        %v1628 = vpop.xlane.xlu0 %1627
        %v1629 = vrcp.pop %v1619
        %v1630 = vrcp.pop %v1622
        %v1631 = vrcp.pop %v1625
        %v1632 = vrcp.pop %v1628
        %v1633 = vpack.c.bf16 %v1612, %v1610
        %v1634 = vpack.c.bf16 %v1616, %v1614
        %1635 = vrot.lane.b32.xlu0 %v1482, 84
        %v1636 = vpop.permute.xlu0 %1635
        %v1639 = vsel %vm703, %v1633, 0
        %1641 = vmatprep.subr.bf16.mxu0 0
        %1642 = vmatpush1.bf16.msra.mxu0 0
        %1643 = vmatprep.subr.bf16.mxu0 0
        %1644 = vmatpush1.bf16.msra.mxu0 0
        %1645 = vmatprep.subr.bf16.mxu0 0
        %1646 = vmatpush1.bf16.msra.mxu0 0
        %1647 = vmatprep.subr.bf16.mxu0 0
        %1648 = vmatpush1.bf16.msra.mxu0 0
        %1649 = vmatprep.subr.bf16.mxu0 0
        %1650 = vmatpush1.bf16.msra.mxu0 0
        %1651 = vmatprep.subr.bf16.mxu0 0
        %1652 = vmatpush1.bf16.msra.mxu0 0
        %1653 = vmatprep.subr.bf16.mxu0 0
        %1654 = vmatpush1.bf16.msra.mxu0 0
        %1655 = vmatprep.subr.bf16.mxu0 0
        %1656 = vmatpush1.bf16.msra.mxu0 %v1636
        %1657 = vmatprep.subr.bf16.mxu0 0
        %1658 = vmatpush2.bf16.msra.mxu0 0
        %1659 = vmatprep.subr.bf16.mxu0 0
        %1660 = vmatpush2.bf16.msra.mxu0 0
        %1661 = vmatprep.subr.bf16.mxu0 0
        %1662 = vmatpush2.bf16.msra.mxu0 0
        %1663 = vmatprep.subr.bf16.mxu0 0
        %1664 = vmatpush2.bf16.msra.mxu0 0
        %1665 = vmatprep.subr.bf16.mxu0 0
        %1666 = vmatpush2.bf16.msra.mxu0 0
        %1667 = vmatprep.subr.bf16.mxu0 0
        %1668 = vmatpush2.bf16.msra.mxu0 0
        %1669 = vmatprep.subr.bf16.mxu0 0
        %1670 = vmatpush2.bf16.msra.mxu0 0
        %1671 = vmatprep.subr.bf16.mxu0 0
        %1672 = vmatpush2.bf16.msra.mxu0 0
        %1673 = vmatprep.mubr.bf16.mxu0 0
        %1674 = vmatmul.mubr.bf16.gmra.mxu0 %v1639
        %v1675 = vpop.f32.mrf.mxu0
        %v1676 = vadd.f32 0.0, %v1675
        %v1677 = vpop.f32.mrf.mxu0
        %v1678 = vpop.f32.mrf.mxu0
        %v1679 = vadd.f32 0.0, %v1678
        %v1680 = vpop.f32.mrf.mxu0
        %1681 = vdwg.mxu0
        %1682 = vrot.lane.b32.xlu0 %v1543, 84
        %v1683 = vpop.permute.xlu0 %1682
        %v1686 = vsel %vm703, %v1634, 0
        %1688 = vmatprep.subr.bf16.mxu0 0
        %1689 = vmatpush1.bf16.msra.mxu0 0
        %1690 = vmatprep.subr.bf16.mxu0 0
        %1691 = vmatpush1.bf16.msra.mxu0 0
        %1692 = vmatprep.subr.bf16.mxu0 0
        %1693 = vmatpush1.bf16.msra.mxu0 0
        %1694 = vmatprep.subr.bf16.mxu0 0
        %1695 = vmatpush1.bf16.msra.mxu0 0
        %1696 = vmatprep.subr.bf16.mxu0 0
        %1697 = vmatpush1.bf16.msra.mxu0 0
        %1698 = vmatprep.subr.bf16.mxu0 0
        %1699 = vmatpush1.bf16.msra.mxu0 0
        %1700 = vmatprep.subr.bf16.mxu0 0
        %1701 = vmatpush1.bf16.msra.mxu0 0
        %1702 = vmatprep.subr.bf16.mxu0 0
        %1703 = vmatpush1.bf16.msra.mxu0 %v1683
        %1704 = vmatprep.subr.bf16.mxu0 0
        %1705 = vmatpush2.bf16.msra.mxu0 0
        %1706 = vmatprep.subr.bf16.mxu0 0
        %1707 = vmatpush2.bf16.msra.mxu0 0
        %1708 = vmatprep.subr.bf16.mxu0 0
        %1709 = vmatpush2.bf16.msra.mxu0 0
        %1710 = vmatprep.subr.bf16.mxu0 0
        %1711 = vmatpush2.bf16.msra.mxu0 0
        %1712 = vmatprep.subr.bf16.mxu0 0
        %1713 = vmatpush2.bf16.msra.mxu0 0
        %1714 = vmatprep.subr.bf16.mxu0 0
        %1715 = vmatpush2.bf16.msra.mxu0 0
        %1716 = vmatprep.subr.bf16.mxu0 0
        %1717 = vmatpush2.bf16.msra.mxu0 0
        %1718 = vmatprep.subr.bf16.mxu0 0
        %1719 = vmatpush2.bf16.msra.mxu0 0
        %1720 = vmatprep.mubr.bf16.mxu0 0
        %1721 = vmatmul.mubr.bf16.gmra.mxu0 %v1686
        %v1722 = vpop.f32.mrf.mxu0
        %v1723 = vadd.f32 0.0, %v1722
        %v1724 = vpop.f32.mrf.mxu0
        %v1725 = vpop.f32.mrf.mxu0
        %v1726 = vadd.f32 0.0, %v1725
        %v1727 = vpop.f32.mrf.mxu0
        %1728 = vdwg.mxu0
        %v1729 = vmul.f32 %v1676, %v1629
        %v1730 = vmul.f32 %v1679, %v1630
        %v1731 = vmul.f32 %v1723, %v1631
        %v1732 = vmul.f32 %v1726, %v1632
        %v1733 = vpack.c.bf16 %v1730, %v1729
        %v1734 = vpack.c.bf16 %v1732, %v1731
        %v1737 = vunpack.c.l.b16 %v1733
        %v1738 = vunpack.c.h.b16 %v1733
        %v1739 = vunpack.c.l.b16 %v1734
        %v1740 = vunpack.c.h.b16 %v1734
        %v1741 = vpack.c.b16 %v1737, %v1737
        %v1742 = vpack.c.b16 %v1738, %v1738
        %v1743 = vpack.c.b16 %v1739, %v1739
        %v1744 = vpack.c.b16 %v1740, %v1740
        %1745 = vrot.lane.b32.xlu0 %v1741, 12
        %v1746 = vpop.permute.xlu0 %1745
        %1747 = vrot.lane.b32.xlu0 %v1742, 12
        %v1748 = vpop.permute.xlu0 %1747
        %1749 = vrot.lane.b32.xlu0 %v1743, 12
        %v1750 = vpop.permute.xlu0 %1749
        %1751 = vrot.lane.b32.xlu0 %v1744, 12
        %v1752 = vpop.permute.xlu0 %1751
        %vm1757 = vcmask 126048
        %1758 = vst.msk [vmem:[#allocation4] sm:$0xf] %vm1757, %v1746
        %1759 = vst.msk [vmem:[#allocation4 + $0x4] sm:$0xf] %vm1757, %v1748
        %1760 = vst.msk [vmem:[#allocation4 + $0x8] sm:$0xf] %vm1757, %v1750
        %1761 = vst.msk [vmem:[#allocation4 + $0xc] sm:$0xf] %vm1757, %v1752
        %v1762 = vld [vmem:[#allocation2] sm:$0xf]
        %v1763 = vld [vmem:[#allocation2 + $0x4] sm:$0xf]
        %v1764 = vld [vmem:[#allocation2 + $0x8] sm:$0xf]
        %v1765 = vld [vmem:[#allocation2 + $0xc] sm:$0xf]
        %v1766 = vld [vmem:[#allocation3] sm:$0xf]
        %v1767 = vld [vmem:[#allocation3 + $0x4] sm:$0xf]
        %v1768 = vld [vmem:[#allocation3 + $0x8] sm:$0xf]
        %v1769 = vld [vmem:[#allocation3 + $0xc] sm:$0xf]
        %v1772 = vunpack.c.l.b16 %v1762
        %v1773 = vunpack.c.l.b16 %v1763
        %v1774 = vpack.c.b16 %v1773, %v1772
        %1775 = vrot.lane.b32.xlu0 %v1774, 112
        %v1776 = vpop.permute.xlu0 %1775
        %v1779 = vunpack.c.l.b16 %v1766
        %v1780 = vunpack.c.l.b16 %v1767
        %v1781 = vpack.c.b16 %v1780, %v1779
        %1782 = vrot.lane.b32.xlu0 %v1781, 112
        %v1783 = vpop.permute.xlu0 %1782
        %v1785 = vsel %vm598, %v1776, 0
        %v1788 = vsel %vm598, %v1783, 0
        %1790 = vmatprep.subr.bf16.mxu0 0
        %1791 = vmatpush1.bf16.xpose.msra.mxu0 0
        %1792 = vmatprep.subr.bf16.mxu0 0
        %1793 = vmatpush1.bf16.xpose.msra.mxu0 0
        %1794 = vmatprep.subr.bf16.mxu0 0
        %1795 = vmatpush1.bf16.xpose.msra.mxu0 0
        %1796 = vmatprep.subr.bf16.mxu0 0
        %1797 = vmatpush1.bf16.xpose.msra.mxu0 0
        %1798 = vmatprep.subr.bf16.mxu0 0
        %1799 = vmatpush1.bf16.xpose.msra.mxu0 0
        %1800 = vmatprep.subr.bf16.mxu0 0
        %1801 = vmatpush1.bf16.xpose.msra.mxu0 0
        %1802 = vmatprep.subr.bf16.mxu0 0
        %1803 = vmatpush1.bf16.xpose.msra.mxu0 0
        %1804 = vmatprep.subr.bf16.mxu0 0
        %1805 = vmatpush1.bf16.xpose.msra.mxu0 %v1788
        %1806 = vmatprep.subr.bf16.mxu0 0
        %1807 = vmatpush2.bf16.xpose.msra.mxu0 0
        %1808 = vmatprep.subr.bf16.mxu0 0
        %1809 = vmatpush2.bf16.xpose.msra.mxu0 0
        %1810 = vmatprep.subr.bf16.mxu0 0
        %1811 = vmatpush2.bf16.xpose.msra.mxu0 0
        %1812 = vmatprep.subr.bf16.mxu0 0
        %1813 = vmatpush2.bf16.xpose.msra.mxu0 0
        %1814 = vmatprep.subr.bf16.mxu0 0
        %1815 = vmatpush2.bf16.xpose.msra.mxu0 0
        %1816 = vmatprep.subr.bf16.mxu0 0
        %1817 = vmatpush2.bf16.xpose.msra.mxu0 0
        %1818 = vmatprep.subr.bf16.mxu0 0
        %1819 = vmatpush2.bf16.xpose.msra.mxu0 0
        %1820 = vmatprep.subr.bf16.mxu0 0
        %1821 = vmatpush2.bf16.xpose.msra.mxu0 0
        %1822 = vmatprep.mubr.bf16.mxu0 0
        %1823 = vmatmul.mubr.bf16.gmra.mxu0 %v1785
        %v1824 = vpop.f32.mrf.mxu0
        %v1825 = vadd.f32 0.0, %v1824
        %v1826 = vpop.f32.mrf.mxu0
        %v1827 = vpop.f32.mrf.mxu0
        %v1828 = vadd.f32 0.0, %v1827
        %v1829 = vpop.f32.mrf.mxu0
        %1830 = vdwg.mxu0
        %v1833 = vunpack.c.l.b16 %v1764
        %v1834 = vunpack.c.l.b16 %v1765
        %v1835 = vpack.c.b16 %v1834, %v1833
        %1836 = vrot.lane.b32.xlu0 %v1835, 112
        %v1837 = vpop.permute.xlu0 %1836
        %v1840 = vunpack.c.l.b16 %v1768
        %v1841 = vunpack.c.l.b16 %v1769
        %v1842 = vpack.c.b16 %v1841, %v1840
        %1843 = vrot.lane.b32.xlu0 %v1842, 112
        %v1844 = vpop.permute.xlu0 %1843
        %v1846 = vsel %vm598, %v1837, 0
        %v1849 = vsel %vm598, %v1844, 0
        %1851 = vmatprep.subr.bf16.mxu0 0
        %1852 = vmatpush1.bf16.xpose.msra.mxu0 0
        %1853 = vmatprep.subr.bf16.mxu0 0
        %1854 = vmatpush1.bf16.xpose.msra.mxu0 0
        %1855 = vmatprep.subr.bf16.mxu0 0
        %1856 = vmatpush1.bf16.xpose.msra.mxu0 0
        %1857 = vmatprep.subr.bf16.mxu0 0
        %1858 = vmatpush1.bf16.xpose.msra.mxu0 0
        %1859 = vmatprep.subr.bf16.mxu0 0
        %1860 = vmatpush1.bf16.xpose.msra.mxu0 0
        %1861 = vmatprep.subr.bf16.mxu0 0
        %1862 = vmatpush1.bf16.xpose.msra.mxu0 0
        %1863 = vmatprep.subr.bf16.mxu0 0
        %1864 = vmatpush1.bf16.xpose.msra.mxu0 0
        %1865 = vmatprep.subr.bf16.mxu0 0
        %1866 = vmatpush1.bf16.xpose.msra.mxu0 %v1849
        %1867 = vmatprep.subr.bf16.mxu0 0
        %1868 = vmatpush2.bf16.xpose.msra.mxu0 0
        %1869 = vmatprep.subr.bf16.mxu0 0
        %1870 = vmatpush2.bf16.xpose.msra.mxu0 0
        %1871 = vmatprep.subr.bf16.mxu0 0
        %1872 = vmatpush2.bf16.xpose.msra.mxu0 0
        %1873 = vmatprep.subr.bf16.mxu0 0
        %1874 = vmatpush2.bf16.xpose.msra.mxu0 0
        %1875 = vmatprep.subr.bf16.mxu0 0
        %1876 = vmatpush2.bf16.xpose.msra.mxu0 0
        %1877 = vmatprep.subr.bf16.mxu0 0
        %1878 = vmatpush2.bf16.xpose.msra.mxu0 0
        %1879 = vmatprep.subr.bf16.mxu0 0
        %1880 = vmatpush2.bf16.xpose.msra.mxu0 0
        %1881 = vmatprep.subr.bf16.mxu0 0
        %1882 = vmatpush2.bf16.xpose.msra.mxu0 0
        %1883 = vmatprep.mubr.bf16.mxu0 0
        %1884 = vmatmul.mubr.bf16.gmra.mxu0 %v1846
        %v1885 = vpop.f32.mrf.mxu0
        %v1886 = vadd.f32 0.0, %v1885
        %v1887 = vpop.f32.mrf.mxu0
        %v1888 = vpop.f32.mrf.mxu0
        %v1889 = vadd.f32 0.0, %v1888
        %v1890 = vpop.f32.mrf.mxu0
        %1891 = vdwg.mxu0
        %v1892 = vsel %vm703, %v1825, -inf
        %1893 = vmax.xlane.f32.xlu0 %v1892
        %v1894 = vpop.xlane.xlu0 %1893
        %v1895 = vsel %vm703, %v1828, -inf
        %1896 = vmax.xlane.f32.xlu0 %v1895
        %v1897 = vpop.xlane.xlu0 %1896
        %v1898 = vsel %vm703, %v1886, -inf
        %1899 = vmax.xlane.f32.xlu0 %v1898
        %v1900 = vpop.xlane.xlu0 %1899
        %v1901 = vsel %vm703, %v1889, -inf
        %1902 = vmax.xlane.f32.xlu0 %v1901
        %v1903 = vpop.xlane.xlu0 %1902
        %v1904 = vsub.f32 %v1825, %v1894
        %v1905 = vsub.f32 %v1828, %v1897
        %v1906 = vsub.f32 %v1886, %v1900
        %v1907 = vsub.f32 %v1889, %v1903
        %v1908 = vmul.f32 %v1904, 1.442695
        %v1909 = vpow.pop %v1908
        %v1910 = vmul.f32 %v1905, 1.442695
        %v1911 = vpow.pop %v1910
        %v1912 = vmul.f32 %v1906, 1.442695
        %v1913 = vpow.pop %v1912
        %v1914 = vmul.f32 %v1907, 1.442695
        %v1915 = vpow.pop %v1914
        %v1916 = vsel %vm703, %v1909, 0.0
        %1917 = vadd.xlane.f32.xlu0 %v1916
        %v1918 = vpop.xlane.xlu0 %1917
        %v1919 = vsel %vm703, %v1911, 0.0
        %1920 = vadd.xlane.f32.xlu0 %v1919
        %v1921 = vpop.xlane.xlu0 %1920
        %v1922 = vsel %vm703, %v1913, 0.0
        %1923 = vadd.xlane.f32.xlu0 %v1922
        %v1924 = vpop.xlane.xlu0 %1923
        %v1925 = vsel %vm703, %v1915, 0.0
        %1926 = vadd.xlane.f32.xlu0 %v1925
        %v1927 = vpop.xlane.xlu0 %1926
        %v1928 = vrcp.pop %v1918
        %v1929 = vrcp.pop %v1921
        %v1930 = vrcp.pop %v1924
        %v1931 = vrcp.pop %v1927
        %v1932 = vpack.c.bf16 %v1911, %v1909
        %v1933 = vpack.c.bf16 %v1915, %v1913
        %1934 = vrot.lane.b32.xlu0 %v1781, 80
        %v1935 = vpop.permute.xlu0 %1934
        %v1938 = vsel %vm703, %v1932, 0
        %1940 = vmatprep.subr.bf16.mxu0 0
        %1941 = vmatpush1.bf16.msra.mxu0 0
        %1942 = vmatprep.subr.bf16.mxu0 0
        %1943 = vmatpush1.bf16.msra.mxu0 0
        %1944 = vmatprep.subr.bf16.mxu0 0
        %1945 = vmatpush1.bf16.msra.mxu0 0
        %1946 = vmatprep.subr.bf16.mxu0 0
        %1947 = vmatpush1.bf16.msra.mxu0 0
        %1948 = vmatprep.subr.bf16.mxu0 0
        %1949 = vmatpush1.bf16.msra.mxu0 0
        %1950 = vmatprep.subr.bf16.mxu0 0
        %1951 = vmatpush1.bf16.msra.mxu0 0
        %1952 = vmatprep.subr.bf16.mxu0 0
        %1953 = vmatpush1.bf16.msra.mxu0 0
        %1954 = vmatprep.subr.bf16.mxu0 0
        %1955 = vmatpush1.bf16.msra.mxu0 %v1935
        %1956 = vmatprep.subr.bf16.mxu0 0
        %1957 = vmatpush2.bf16.msra.mxu0 0
        %1958 = vmatprep.subr.bf16.mxu0 0
        %1959 = vmatpush2.bf16.msra.mxu0 0
        %1960 = vmatprep.subr.bf16.mxu0 0
        %1961 = vmatpush2.bf16.msra.mxu0 0
        %1962 = vmatprep.subr.bf16.mxu0 0
        %1963 = vmatpush2.bf16.msra.mxu0 0
        %1964 = vmatprep.subr.bf16.mxu0 0
        %1965 = vmatpush2.bf16.msra.mxu0 0
        %1966 = vmatprep.subr.bf16.mxu0 0
        %1967 = vmatpush2.bf16.msra.mxu0 0
        %1968 = vmatprep.subr.bf16.mxu0 0
        %1969 = vmatpush2.bf16.msra.mxu0 0
        %1970 = vmatprep.subr.bf16.mxu0 0
        %1971 = vmatpush2.bf16.msra.mxu0 0
        %1972 = vmatprep.mubr.bf16.mxu0 0
        %1973 = vmatmul.mubr.bf16.gmra.mxu0 %v1938
        %v1974 = vpop.f32.mrf.mxu0
        %v1975 = vadd.f32 0.0, %v1974
        %v1976 = vpop.f32.mrf.mxu0
        %v1977 = vpop.f32.mrf.mxu0
        %v1978 = vadd.f32 0.0, %v1977
        %v1979 = vpop.f32.mrf.mxu0
        %1980 = vdwg.mxu0
        %1981 = vrot.lane.b32.xlu0 %v1842, 80
        %v1982 = vpop.permute.xlu0 %1981
        %v1985 = vsel %vm703, %v1933, 0
        %1987 = vmatprep.subr.bf16.mxu0 0
        %1988 = vmatpush1.bf16.msra.mxu0 0
        %1989 = vmatprep.subr.bf16.mxu0 0
        %1990 = vmatpush1.bf16.msra.mxu0 0
        %1991 = vmatprep.subr.bf16.mxu0 0
        %1992 = vmatpush1.bf16.msra.mxu0 0
        %1993 = vmatprep.subr.bf16.mxu0 0
        %1994 = vmatpush1.bf16.msra.mxu0 0
        %1995 = vmatprep.subr.bf16.mxu0 0
        %1996 = vmatpush1.bf16.msra.mxu0 0
        %1997 = vmatprep.subr.bf16.mxu0 0
        %1998 = vmatpush1.bf16.msra.mxu0 0
        %1999 = vmatprep.subr.bf16.mxu0 0
        %2000 = vmatpush1.bf16.msra.mxu0 0
        %2001 = vmatprep.subr.bf16.mxu0 0
        %2002 = vmatpush1.bf16.msra.mxu0 %v1982
        %2003 = vmatprep.subr.bf16.mxu0 0
        %2004 = vmatpush2.bf16.msra.mxu0 0
        %2005 = vmatprep.subr.bf16.mxu0 0
        %2006 = vmatpush2.bf16.msra.mxu0 0
        %2007 = vmatprep.subr.bf16.mxu0 0
        %2008 = vmatpush2.bf16.msra.mxu0 0
        %2009 = vmatprep.subr.bf16.mxu0 0
        %2010 = vmatpush2.bf16.msra.mxu0 0
        %2011 = vmatprep.subr.bf16.mxu0 0
        %2012 = vmatpush2.bf16.msra.mxu0 0
        %2013 = vmatprep.subr.bf16.mxu0 0
        %2014 = vmatpush2.bf16.msra.mxu0 0
        %2015 = vmatprep.subr.bf16.mxu0 0
        %2016 = vmatpush2.bf16.msra.mxu0 0
        %2017 = vmatprep.subr.bf16.mxu0 0
        %2018 = vmatpush2.bf16.msra.mxu0 0
        %2019 = vmatprep.mubr.bf16.mxu0 0
        %2020 = vmatmul.mubr.bf16.gmra.mxu0 %v1985
        %v2021 = vpop.f32.mrf.mxu0
        %v2022 = vadd.f32 0.0, %v2021
        %v2023 = vpop.f32.mrf.mxu0
        %v2024 = vpop.f32.mrf.mxu0
        %v2025 = vadd.f32 0.0, %v2024
        %v2026 = vpop.f32.mrf.mxu0
        %2027 = vdwg.mxu0
        %v2028 = vmul.f32 %v1975, %v1928
        %v2029 = vmul.f32 %v1978, %v1929
        %v2030 = vmul.f32 %v2022, %v1930
        %v2031 = vmul.f32 %v2025, %v1931
        %v2032 = vpack.c.bf16 %v2029, %v2028
        %v2033 = vpack.c.bf16 %v2031, %v2030
        %v2036 = vunpack.c.l.b16 %v2032
        %v2037 = vunpack.c.h.b16 %v2032
        %v2038 = vunpack.c.l.b16 %v2033
        %v2039 = vunpack.c.h.b16 %v2033
        %v2040 = vpack.c.b16 %v2036, %v2036
        %v2041 = vpack.c.b16 %v2037, %v2037
        %v2042 = vpack.c.b16 %v2038, %v2038
        %v2043 = vpack.c.b16 %v2039, %v2039
        %2044 = vrot.lane.b32.xlu0 %v2040, 16
        %v2045 = vpop.permute.xlu0 %2044
        %2046 = vrot.lane.b32.xlu0 %v2041, 16
        %v2047 = vpop.permute.xlu0 %2046
        %2048 = vrot.lane.b32.xlu0 %v2042, 16
        %v2049 = vpop.permute.xlu0 %2048
        %2050 = vrot.lane.b32.xlu0 %v2043, 16
        %v2051 = vpop.permute.xlu0 %2050
        %vm2056 = vcmask 158848
        %2057 = vst.msk [vmem:[#allocation4] sm:$0xf] %vm2056, %v2045
        %2058 = vst.msk [vmem:[#allocation4 + $0x4] sm:$0xf] %vm2056, %v2047
        %2059 = vst.msk [vmem:[#allocation4 + $0x8] sm:$0xf] %vm2056, %v2049
        %2060 = vst.msk [vmem:[#allocation4 + $0xc] sm:$0xf] %vm2056, %v2051
        %v2061 = vld [vmem:[#allocation2] sm:$0xf]
        %v2062 = vld [vmem:[#allocation2 + $0x4] sm:$0xf]
        %v2063 = vld [vmem:[#allocation2 + $0x8] sm:$0xf]
        %v2064 = vld [vmem:[#allocation2 + $0xc] sm:$0xf]
        %v2065 = vld [vmem:[#allocation3] sm:$0xf]
        %v2066 = vld [vmem:[#allocation3 + $0x4] sm:$0xf]
        %v2067 = vld [vmem:[#allocation3 + $0x8] sm:$0xf]
        %v2068 = vld [vmem:[#allocation3 + $0xc] sm:$0xf]
        %v2071 = vunpack.c.l.b16 %v2061
        %v2072 = vunpack.c.l.b16 %v2062
        %v2073 = vpack.c.b16 %v2072, %v2071
        %2074 = vrot.lane.b32.xlu0 %v2073, 108
        %v2075 = vpop.permute.xlu0 %2074
        %v2078 = vunpack.c.l.b16 %v2065
        %v2079 = vunpack.c.l.b16 %v2066
        %v2080 = vpack.c.b16 %v2079, %v2078
        %2081 = vrot.lane.b32.xlu0 %v2080, 108
        %v2082 = vpop.permute.xlu0 %2081
        %v2084 = vsel %vm598, %v2075, 0
        %v2087 = vsel %vm598, %v2082, 0
        %2089 = vmatprep.subr.bf16.mxu0 0
        %2090 = vmatpush1.bf16.xpose.msra.mxu0 0
        %2091 = vmatprep.subr.bf16.mxu0 0
        %2092 = vmatpush1.bf16.xpose.msra.mxu0 0
        %2093 = vmatprep.subr.bf16.mxu0 0
        %2094 = vmatpush1.bf16.xpose.msra.mxu0 0
        %2095 = vmatprep.subr.bf16.mxu0 0
        %2096 = vmatpush1.bf16.xpose.msra.mxu0 0
        %2097 = vmatprep.subr.bf16.mxu0 0
        %2098 = vmatpush1.bf16.xpose.msra.mxu0 0
        %2099 = vmatprep.subr.bf16.mxu0 0
        %2100 = vmatpush1.bf16.xpose.msra.mxu0 0
        %2101 = vmatprep.subr.bf16.mxu0 0
        %2102 = vmatpush1.bf16.xpose.msra.mxu0 0
        %2103 = vmatprep.subr.bf16.mxu0 0
        %2104 = vmatpush1.bf16.xpose.msra.mxu0 %v2087
        %2105 = vmatprep.subr.bf16.mxu0 0
        %2106 = vmatpush2.bf16.xpose.msra.mxu0 0
        %2107 = vmatprep.subr.bf16.mxu0 0
        %2108 = vmatpush2.bf16.xpose.msra.mxu0 0
        %2109 = vmatprep.subr.bf16.mxu0 0
        %2110 = vmatpush2.bf16.xpose.msra.mxu0 0
        %2111 = vmatprep.subr.bf16.mxu0 0
        %2112 = vmatpush2.bf16.xpose.msra.mxu0 0
        %2113 = vmatprep.subr.bf16.mxu0 0
        %2114 = vmatpush2.bf16.xpose.msra.mxu0 0
        %2115 = vmatprep.subr.bf16.mxu0 0
        %2116 = vmatpush2.bf16.xpose.msra.mxu0 0
        %2117 = vmatprep.subr.bf16.mxu0 0
        %2118 = vmatpush2.bf16.xpose.msra.mxu0 0
        %2119 = vmatprep.subr.bf16.mxu0 0
        %2120 = vmatpush2.bf16.xpose.msra.mxu0 0
        %2121 = vmatprep.mubr.bf16.mxu0 0
        %2122 = vmatmul.mubr.bf16.gmra.mxu0 %v2084
        %v2123 = vpop.f32.mrf.mxu0
        %v2124 = vadd.f32 0.0, %v2123
        %v2125 = vpop.f32.mrf.mxu0
        %v2126 = vpop.f32.mrf.mxu0
        %v2127 = vadd.f32 0.0, %v2126
        %v2128 = vpop.f32.mrf.mxu0
        %2129 = vdwg.mxu0
        %v2132 = vunpack.c.l.b16 %v2063
        %v2133 = vunpack.c.l.b16 %v2064
        %v2134 = vpack.c.b16 %v2133, %v2132
        %2135 = vrot.lane.b32.xlu0 %v2134, 108
        %v2136 = vpop.permute.xlu0 %2135
        %v2139 = vunpack.c.l.b16 %v2067
        %v2140 = vunpack.c.l.b16 %v2068
        %v2141 = vpack.c.b16 %v2140, %v2139
        %2142 = vrot.lane.b32.xlu0 %v2141, 108
        %v2143 = vpop.permute.xlu0 %2142
        %v2145 = vsel %vm598, %v2136, 0
        %v2148 = vsel %vm598, %v2143, 0
        %2150 = vmatprep.subr.bf16.mxu0 0
        %2151 = vmatpush1.bf16.xpose.msra.mxu0 0
        %2152 = vmatprep.subr.bf16.mxu0 0
        %2153 = vmatpush1.bf16.xpose.msra.mxu0 0
        %2154 = vmatprep.subr.bf16.mxu0 0
        %2155 = vmatpush1.bf16.xpose.msra.mxu0 0
        %2156 = vmatprep.subr.bf16.mxu0 0
        %2157 = vmatpush1.bf16.xpose.msra.mxu0 0
        %2158 = vmatprep.subr.bf16.mxu0 0
        %2159 = vmatpush1.bf16.xpose.msra.mxu0 0
        %2160 = vmatprep.subr.bf16.mxu0 0
        %2161 = vmatpush1.bf16.xpose.msra.mxu0 0
        %2162 = vmatprep.subr.bf16.mxu0 0
        %2163 = vmatpush1.bf16.xpose.msra.mxu0 0
        %2164 = vmatprep.subr.bf16.mxu0 0
        %2165 = vmatpush1.bf16.xpose.msra.mxu0 %v2148
        %2166 = vmatprep.subr.bf16.mxu0 0
        %2167 = vmatpush2.bf16.xpose.msra.mxu0 0
        %2168 = vmatprep.subr.bf16.mxu0 0
        %2169 = vmatpush2.bf16.xpose.msra.mxu0 0
        %2170 = vmatprep.subr.bf16.mxu0 0
        %2171 = vmatpush2.bf16.xpose.msra.mxu0 0
        %2172 = vmatprep.subr.bf16.mxu0 0
        %2173 = vmatpush2.bf16.xpose.msra.mxu0 0
        %2174 = vmatprep.subr.bf16.mxu0 0
        %2175 = vmatpush2.bf16.xpose.msra.mxu0 0
        %2176 = vmatprep.subr.bf16.mxu0 0
        %2177 = vmatpush2.bf16.xpose.msra.mxu0 0
        %2178 = vmatprep.subr.bf16.mxu0 0
        %2179 = vmatpush2.bf16.xpose.msra.mxu0 0
        %2180 = vmatprep.subr.bf16.mxu0 0
        %2181 = vmatpush2.bf16.xpose.msra.mxu0 0
        %2182 = vmatprep.mubr.bf16.mxu0 0
        %2183 = vmatmul.mubr.bf16.gmra.mxu0 %v2145
        %v2184 = vpop.f32.mrf.mxu0
        %v2185 = vadd.f32 0.0, %v2184
        %v2186 = vpop.f32.mrf.mxu0
        %v2187 = vpop.f32.mrf.mxu0
        %v2188 = vadd.f32 0.0, %v2187
        %v2189 = vpop.f32.mrf.mxu0
        %2190 = vdwg.mxu0
        %v2191 = vsel %vm703, %v2124, -inf
        %2192 = vmax.xlane.f32.xlu0 %v2191
        %v2193 = vpop.xlane.xlu0 %2192
        %v2194 = vsel %vm703, %v2127, -inf
        %2195 = vmax.xlane.f32.xlu0 %v2194
        %v2196 = vpop.xlane.xlu0 %2195
        %v2197 = vsel %vm703, %v2185, -inf
        %2198 = vmax.xlane.f32.xlu0 %v2197
        %v2199 = vpop.xlane.xlu0 %2198
        %v2200 = vsel %vm703, %v2188, -inf
        %2201 = vmax.xlane.f32.xlu0 %v2200
        %v2202 = vpop.xlane.xlu0 %2201
        %v2203 = vsub.f32 %v2124, %v2193
        %v2204 = vsub.f32 %v2127, %v2196
        %v2205 = vsub.f32 %v2185, %v2199
        %v2206 = vsub.f32 %v2188, %v2202
        %v2207 = vmul.f32 %v2203, 1.442695
        %v2208 = vpow.pop %v2207
        %v2209 = vmul.f32 %v2204, 1.442695
        %v2210 = vpow.pop %v2209
        %v2211 = vmul.f32 %v2205, 1.442695
        %v2212 = vpow.pop %v2211
        %v2213 = vmul.f32 %v2206, 1.442695
        %v2214 = vpow.pop %v2213
        %v2215 = vsel %vm703, %v2208, 0.0
        %2216 = vadd.xlane.f32.xlu0 %v2215
        %v2217 = vpop.xlane.xlu0 %2216
        %v2218 = vsel %vm703, %v2210, 0.0
        %2219 = vadd.xlane.f32.xlu0 %v2218
        %v2220 = vpop.xlane.xlu0 %2219
        %v2221 = vsel %vm703, %v2212, 0.0
        %2222 = vadd.xlane.f32.xlu0 %v2221
        %v2223 = vpop.xlane.xlu0 %2222
        %v2224 = vsel %vm703, %v2214, 0.0
        %2225 = vadd.xlane.f32.xlu0 %v2224
        %v2226 = vpop.xlane.xlu0 %2225
        %v2227 = vrcp.pop %v2217
        %v2228 = vrcp.pop %v2220
        %v2229 = vrcp.pop %v2223
        %v2230 = vrcp.pop %v2226
        %v2231 = vpack.c.bf16 %v2210, %v2208
        %v2232 = vpack.c.bf16 %v2214, %v2212
        %2233 = vrot.lane.b32.xlu0 %v2080, 76
        %v2234 = vpop.permute.xlu0 %2233
        %v2237 = vsel %vm703, %v2231, 0
        %2239 = vmatprep.subr.bf16.mxu0 0
        %2240 = vmatpush1.bf16.msra.mxu0 0
        %2241 = vmatprep.subr.bf16.mxu0 0
        %2242 = vmatpush1.bf16.msra.mxu0 0
        %2243 = vmatprep.subr.bf16.mxu0 0
        %2244 = vmatpush1.bf16.msra.mxu0 0
        %2245 = vmatprep.subr.bf16.mxu0 0
        %2246 = vmatpush1.bf16.msra.mxu0 0
        %2247 = vmatprep.subr.bf16.mxu0 0
        %2248 = vmatpush1.bf16.msra.mxu0 0
        %2249 = vmatprep.subr.bf16.mxu0 0
        %2250 = vmatpush1.bf16.msra.mxu0 0
        %2251 = vmatprep.subr.bf16.mxu0 0
        %2252 = vmatpush1.bf16.msra.mxu0 0
        %2253 = vmatprep.subr.bf16.mxu0 0
        %2254 = vmatpush1.bf16.msra.mxu0 %v2234
        %2255 = vmatprep.subr.bf16.mxu0 0
        %2256 = vmatpush2.bf16.msra.mxu0 0
        %2257 = vmatprep.subr.bf16.mxu0 0
        %2258 = vmatpush2.bf16.msra.mxu0 0
        %2259 = vmatprep.subr.bf16.mxu0 0
        %2260 = vmatpush2.bf16.msra.mxu0 0
        %2261 = vmatprep.subr.bf16.mxu0 0
        %2262 = vmatpush2.bf16.msra.mxu0 0
        %2263 = vmatprep.subr.bf16.mxu0 0
        %2264 = vmatpush2.bf16.msra.mxu0 0
        %2265 = vmatprep.subr.bf16.mxu0 0
        %2266 = vmatpush2.bf16.msra.mxu0 0
        %2267 = vmatprep.subr.bf16.mxu0 0
        %2268 = vmatpush2.bf16.msra.mxu0 0
        %2269 = vmatprep.subr.bf16.mxu0 0
        %2270 = vmatpush2.bf16.msra.mxu0 0
        %2271 = vmatprep.mubr.bf16.mxu0 0
        %2272 = vmatmul.mubr.bf16.gmra.mxu0 %v2237
        %v2273 = vpop.f32.mrf.mxu0
        %v2274 = vadd.f32 0.0, %v2273
        %v2275 = vpop.f32.mrf.mxu0
        %v2276 = vpop.f32.mrf.mxu0
        %v2277 = vadd.f32 0.0, %v2276
        %v2278 = vpop.f32.mrf.mxu0
        %2279 = vdwg.mxu0
        %2280 = vrot.lane.b32.xlu0 %v2141, 76
        %v2281 = vpop.permute.xlu0 %2280
        %v2284 = vsel %vm703, %v2232, 0
        %2286 = vmatprep.subr.bf16.mxu0 0
        %2287 = vmatpush1.bf16.msra.mxu0 0
        %2288 = vmatprep.subr.bf16.mxu0 0
        %2289 = vmatpush1.bf16.msra.mxu0 0
        %2290 = vmatprep.subr.bf16.mxu0 0
        %2291 = vmatpush1.bf16.msra.mxu0 0
        %2292 = vmatprep.subr.bf16.mxu0 0
        %2293 = vmatpush1.bf16.msra.mxu0 0
        %2294 = vmatprep.subr.bf16.mxu0 0
        %2295 = vmatpush1.bf16.msra.mxu0 0
        %2296 = vmatprep.subr.bf16.mxu0 0
        %2297 = vmatpush1.bf16.msra.mxu0 0
        %2298 = vmatprep.subr.bf16.mxu0 0
        %2299 = vmatpush1.bf16.msra.mxu0 0
        %2300 = vmatprep.subr.bf16.mxu0 0
        %2301 = vmatpush1.bf16.msra.mxu0 %v2281
        %2302 = vmatprep.subr.bf16.mxu0 0
        %2303 = vmatpush2.bf16.msra.mxu0 0
        %2304 = vmatprep.subr.bf16.mxu0 0
        %2305 = vmatpush2.bf16.msra.mxu0 0
        %2306 = vmatprep.subr.bf16.mxu0 0
        %2307 = vmatpush2.bf16.msra.mxu0 0
        %2308 = vmatprep.subr.bf16.mxu0 0
        %2309 = vmatpush2.bf16.msra.mxu0 0
        %2310 = vmatprep.subr.bf16.mxu0 0
        %2311 = vmatpush2.bf16.msra.mxu0 0
        %2312 = vmatprep.subr.bf16.mxu0 0
        %2313 = vmatpush2.bf16.msra.mxu0 0
        %2314 = vmatprep.subr.bf16.mxu0 0
        %2315 = vmatpush2.bf16.msra.mxu0 0
        %2316 = vmatprep.subr.bf16.mxu0 0
        %2317 = vmatpush2.bf16.msra.mxu0 0
        %2318 = vmatprep.mubr.bf16.mxu0 0
        %2319 = vmatmul.mubr.bf16.gmra.mxu0 %v2284
        %v2320 = vpop.f32.mrf.mxu0
        %v2321 = vadd.f32 0.0, %v2320
        %v2322 = vpop.f32.mrf.mxu0
        %v2323 = vpop.f32.mrf.mxu0
        %v2324 = vadd.f32 0.0, %v2323
        %v2325 = vpop.f32.mrf.mxu0
        %2326 = vdwg.mxu0
        %v2327 = vmul.f32 %v2274, %v2227
        %v2328 = vmul.f32 %v2277, %v2228
        %v2329 = vmul.f32 %v2321, %v2229
        %v2330 = vmul.f32 %v2324, %v2230
        %v2331 = vpack.c.bf16 %v2328, %v2327
        %v2332 = vpack.c.bf16 %v2330, %v2329
        %v2335 = vunpack.c.l.b16 %v2331
        %v2336 = vunpack.c.h.b16 %v2331
        %v2337 = vunpack.c.l.b16 %v2332
        %v2338 = vunpack.c.h.b16 %v2332
        %v2339 = vpack.c.b16 %v2335, %v2335
        %v2340 = vpack.c.b16 %v2336, %v2336
        %v2341 = vpack.c.b16 %v2337, %v2337
        %v2342 = vpack.c.b16 %v2338, %v2338
        %2343 = vrot.lane.b32.xlu0 %v2339, 20
        %v2344 = vpop.permute.xlu0 %2343
        %2345 = vrot.lane.b32.xlu0 %v2340, 20
        %v2346 = vpop.permute.xlu0 %2345
        %2347 = vrot.lane.b32.xlu0 %v2341, 20
        %v2348 = vpop.permute.xlu0 %2347
        %2349 = vrot.lane.b32.xlu0 %v2342, 20
        %v2350 = vpop.permute.xlu0 %2349
        %vm2355 = vcmask 191648
        %2356 = vst.msk [vmem:[#allocation4] sm:$0xf] %vm2355, %v2344
        %2357 = vst.msk [vmem:[#allocation4 + $0x4] sm:$0xf] %vm2355, %v2346
        %2358 = vst.msk [vmem:[#allocation4 + $0x8] sm:$0xf] %vm2355, %v2348
        %2359 = vst.msk [vmem:[#allocation4 + $0xc] sm:$0xf] %vm2355, %v2350
        %v2360 = vld [vmem:[#allocation2] sm:$0xf]
        %v2361 = vld [vmem:[#allocation2 + $0x4] sm:$0xf]
        %v2362 = vld [vmem:[#allocation2 + $0x8] sm:$0xf]
        %v2363 = vld [vmem:[#allocation2 + $0xc] sm:$0xf]
        %v2364 = vld [vmem:[#allocation3] sm:$0xf]
        %v2365 = vld [vmem:[#allocation3 + $0x4] sm:$0xf]
        %v2366 = vld [vmem:[#allocation3 + $0x8] sm:$0xf]
        %v2367 = vld [vmem:[#allocation3 + $0xc] sm:$0xf]
        %v2370 = vunpack.c.l.b16 %v2360
        %v2371 = vunpack.c.l.b16 %v2361
        %v2372 = vpack.c.b16 %v2371, %v2370
        %2373 = vrot.lane.b32.xlu0 %v2372, 104
        %v2374 = vpop.permute.xlu0 %2373
        %v2377 = vunpack.c.l.b16 %v2364
        %v2378 = vunpack.c.l.b16 %v2365
        %v2379 = vpack.c.b16 %v2378, %v2377
        %2380 = vrot.lane.b32.xlu0 %v2379, 104
        %v2381 = vpop.permute.xlu0 %2380
        %v2383 = vsel %vm598, %v2374, 0
        %v2386 = vsel %vm598, %v2381, 0
        %2388 = vmatprep.subr.bf16.mxu0 0
        %2389 = vmatpush1.bf16.xpose.msra.mxu0 0
        %2390 = vmatprep.subr.bf16.mxu0 0
        %2391 = vmatpush1.bf16.xpose.msra.mxu0 0
        %2392 = vmatprep.subr.bf16.mxu0 0
        %2393 = vmatpush1.bf16.xpose.msra.mxu0 0
        %2394 = vmatprep.subr.bf16.mxu0 0
        %2395 = vmatpush1.bf16.xpose.msra.mxu0 0
        %2396 = vmatprep.subr.bf16.mxu0 0
        %2397 = vmatpush1.bf16.xpose.msra.mxu0 0
        %2398 = vmatprep.subr.bf16.mxu0 0
        %2399 = vmatpush1.bf16.xpose.msra.mxu0 0
        %2400 = vmatprep.subr.bf16.mxu0 0
        %2401 = vmatpush1.bf16.xpose.msra.mxu0 0
        %2402 = vmatprep.subr.bf16.mxu0 0
        %2403 = vmatpush1.bf16.xpose.msra.mxu0 %v2386
        %2404 = vmatprep.subr.bf16.mxu0 0
        %2405 = vmatpush2.bf16.xpose.msra.mxu0 0
        %2406 = vmatprep.subr.bf16.mxu0 0
        %2407 = vmatpush2.bf16.xpose.msra.mxu0 0
        %2408 = vmatprep.subr.bf16.mxu0 0
        %2409 = vmatpush2.bf16.xpose.msra.mxu0 0
        %2410 = vmatprep.subr.bf16.mxu0 0
        %2411 = vmatpush2.bf16.xpose.msra.mxu0 0
        %2412 = vmatprep.subr.bf16.mxu0 0
        %2413 = vmatpush2.bf16.xpose.msra.mxu0 0
        %2414 = vmatprep.subr.bf16.mxu0 0
        %2415 = vmatpush2.bf16.xpose.msra.mxu0 0
        %2416 = vmatprep.subr.bf16.mxu0 0
        %2417 = vmatpush2.bf16.xpose.msra.mxu0 0
        %2418 = vmatprep.subr.bf16.mxu0 0
        %2419 = vmatpush2.bf16.xpose.msra.mxu0 0
        %2420 = vmatprep.mubr.bf16.mxu0 0
        %2421 = vmatmul.mubr.bf16.gmra.mxu0 %v2383
        %v2422 = vpop.f32.mrf.mxu0
        %v2423 = vadd.f32 0.0, %v2422
        %v2424 = vpop.f32.mrf.mxu0
        %v2425 = vpop.f32.mrf.mxu0
        %v2426 = vadd.f32 0.0, %v2425
        %v2427 = vpop.f32.mrf.mxu0
        %2428 = vdwg.mxu0
        %v2431 = vunpack.c.l.b16 %v2362
        %v2432 = vunpack.c.l.b16 %v2363
        %v2433 = vpack.c.b16 %v2432, %v2431
        %2434 = vrot.lane.b32.xlu0 %v2433, 104
        %v2435 = vpop.permute.xlu0 %2434
        %v2438 = vunpack.c.l.b16 %v2366
        %v2439 = vunpack.c.l.b16 %v2367
        %v2440 = vpack.c.b16 %v2439, %v2438
        %2441 = vrot.lane.b32.xlu0 %v2440, 104
        %v2442 = vpop.permute.xlu0 %2441
        %v2444 = vsel %vm598, %v2435, 0
        %v2447 = vsel %vm598, %v2442, 0
        %2449 = vmatprep.subr.bf16.mxu0 0
        %2450 = vmatpush1.bf16.xpose.msra.mxu0 0
        %2451 = vmatprep.subr.bf16.mxu0 0
        %2452 = vmatpush1.bf16.xpose.msra.mxu0 0
        %2453 = vmatprep.subr.bf16.mxu0 0
        %2454 = vmatpush1.bf16.xpose.msra.mxu0 0
        %2455 = vmatprep.subr.bf16.mxu0 0
        %2456 = vmatpush1.bf16.xpose.msra.mxu0 0
        %2457 = vmatprep.subr.bf16.mxu0 0
        %2458 = vmatpush1.bf16.xpose.msra.mxu0 0
        %2459 = vmatprep.subr.bf16.mxu0 0
        %2460 = vmatpush1.bf16.xpose.msra.mxu0 0
        %2461 = vmatprep.subr.bf16.mxu0 0
        %2462 = vmatpush1.bf16.xpose.msra.mxu0 0
        %2463 = vmatprep.subr.bf16.mxu0 0
        %2464 = vmatpush1.bf16.xpose.msra.mxu0 %v2447
        %2465 = vmatprep.subr.bf16.mxu0 0
        %2466 = vmatpush2.bf16.xpose.msra.mxu0 0
        %2467 = vmatprep.subr.bf16.mxu0 0
        %2468 = vmatpush2.bf16.xpose.msra.mxu0 0
        %2469 = vmatprep.subr.bf16.mxu0 0
        %2470 = vmatpush2.bf16.xpose.msra.mxu0 0
        %2471 = vmatprep.subr.bf16.mxu0 0
        %2472 = vmatpush2.bf16.xpose.msra.mxu0 0
        %2473 = vmatprep.subr.bf16.mxu0 0
        %2474 = vmatpush2.bf16.xpose.msra.mxu0 0
        %2475 = vmatprep.subr.bf16.mxu0 0
        %2476 = vmatpush2.bf16.xpose.msra.mxu0 0
        %2477 = vmatprep.subr.bf16.mxu0 0
        %2478 = vmatpush2.bf16.xpose.msra.mxu0 0
        %2479 = vmatprep.subr.bf16.mxu0 0
        %2480 = vmatpush2.bf16.xpose.msra.mxu0 0
        %2481 = vmatprep.mubr.bf16.mxu0 0
        %2482 = vmatmul.mubr.bf16.gmra.mxu0 %v2444
        %v2483 = vpop.f32.mrf.mxu0
        %v2484 = vadd.f32 0.0, %v2483
        %v2485 = vpop.f32.mrf.mxu0
        %v2486 = vpop.f32.mrf.mxu0
        %v2487 = vadd.f32 0.0, %v2486
        %v2488 = vpop.f32.mrf.mxu0
        %2489 = vdwg.mxu0
        %v2490 = vsel %vm703, %v2423, -inf
        %2491 = vmax.xlane.f32.xlu0 %v2490
        %v2492 = vpop.xlane.xlu0 %2491
        %v2493 = vsel %vm703, %v2426, -inf
        %2494 = vmax.xlane.f32.xlu0 %v2493
        %v2495 = vpop.xlane.xlu0 %2494
        %v2496 = vsel %vm703, %v2484, -inf
        %2497 = vmax.xlane.f32.xlu0 %v2496
        %v2498 = vpop.xlane.xlu0 %2497
        %v2499 = vsel %vm703, %v2487, -inf
        %2500 = vmax.xlane.f32.xlu0 %v2499
        %v2501 = vpop.xlane.xlu0 %2500
        %v2502 = vsub.f32 %v2423, %v2492
        %v2503 = vsub.f32 %v2426, %v2495
        %v2504 = vsub.f32 %v2484, %v2498
        %v2505 = vsub.f32 %v2487, %v2501
        %v2506 = vmul.f32 %v2502, 1.442695
        %v2507 = vpow.pop %v2506
        %v2508 = vmul.f32 %v2503, 1.442695
        %v2509 = vpow.pop %v2508
        %v2510 = vmul.f32 %v2504, 1.442695
        %v2511 = vpow.pop %v2510
        %v2512 = vmul.f32 %v2505, 1.442695
        %v2513 = vpow.pop %v2512
        %v2514 = vsel %vm703, %v2507, 0.0
        %2515 = vadd.xlane.f32.xlu0 %v2514
        %v2516 = vpop.xlane.xlu0 %2515
        %v2517 = vsel %vm703, %v2509, 0.0
        %2518 = vadd.xlane.f32.xlu0 %v2517
        %v2519 = vpop.xlane.xlu0 %2518
        %v2520 = vsel %vm703, %v2511, 0.0
        %2521 = vadd.xlane.f32.xlu0 %v2520
        %v2522 = vpop.xlane.xlu0 %2521
        %v2523 = vsel %vm703, %v2513, 0.0
        %2524 = vadd.xlane.f32.xlu0 %v2523
        %v2525 = vpop.xlane.xlu0 %2524
        %v2526 = vrcp.pop %v2516
        %v2527 = vrcp.pop %v2519
        %v2528 = vrcp.pop %v2522
        %v2529 = vrcp.pop %v2525
        %v2530 = vpack.c.bf16 %v2509, %v2507
        %v2531 = vpack.c.bf16 %v2513, %v2511
        %2532 = vrot.lane.b32.xlu0 %v2379, 72
        %v2533 = vpop.permute.xlu0 %2532
        %v2536 = vsel %vm703, %v2530, 0
        %2538 = vmatprep.subr.bf16.mxu0 0
        %2539 = vmatpush1.bf16.msra.mxu0 0
        %2540 = vmatprep.subr.bf16.mxu0 0
        %2541 = vmatpush1.bf16.msra.mxu0 0
        %2542 = vmatprep.subr.bf16.mxu0 0
        %2543 = vmatpush1.bf16.msra.mxu0 0
        %2544 = vmatprep.subr.bf16.mxu0 0
        %2545 = vmatpush1.bf16.msra.mxu0 0
        %2546 = vmatprep.subr.bf16.mxu0 0
        %2547 = vmatpush1.bf16.msra.mxu0 0
        %2548 = vmatprep.subr.bf16.mxu0 0
        %2549 = vmatpush1.bf16.msra.mxu0 0
        %2550 = vmatprep.subr.bf16.mxu0 0
        %2551 = vmatpush1.bf16.msra.mxu0 0
        %2552 = vmatprep.subr.bf16.mxu0 0
        %2553 = vmatpush1.bf16.msra.mxu0 %v2533
        %2554 = vmatprep.subr.bf16.mxu0 0
        %2555 = vmatpush2.bf16.msra.mxu0 0
        %2556 = vmatprep.subr.bf16.mxu0 0
        %2557 = vmatpush2.bf16.msra.mxu0 0
        %2558 = vmatprep.subr.bf16.mxu0 0
        %2559 = vmatpush2.bf16.msra.mxu0 0
        %2560 = vmatprep.subr.bf16.mxu0 0
        %2561 = vmatpush2.bf16.msra.mxu0 0
        %2562 = vmatprep.subr.bf16.mxu0 0
        %2563 = vmatpush2.bf16.msra.mxu0 0
        %2564 = vmatprep.subr.bf16.mxu0 0
        %2565 = vmatpush2.bf16.msra.mxu0 0
        %2566 = vmatprep.subr.bf16.mxu0 0
        %2567 = vmatpush2.bf16.msra.mxu0 0
        %2568 = vmatprep.subr.bf16.mxu0 0
        %2569 = vmatpush2.bf16.msra.mxu0 0
        %2570 = vmatprep.mubr.bf16.mxu0 0
        %2571 = vmatmul.mubr.bf16.gmra.mxu0 %v2536
        %v2572 = vpop.f32.mrf.mxu0
        %v2573 = vadd.f32 0.0, %v2572
        %v2574 = vpop.f32.mrf.mxu0
        %v2575 = vpop.f32.mrf.mxu0
        %v2576 = vadd.f32 0.0, %v2575
        %v2577 = vpop.f32.mrf.mxu0
        %2578 = vdwg.mxu0
        %2579 = vrot.lane.b32.xlu0 %v2440, 72
        %v2580 = vpop.permute.xlu0 %2579
        %v2583 = vsel %vm703, %v2531, 0
        %2585 = vmatprep.subr.bf16.mxu0 0
        %2586 = vmatpush1.bf16.msra.mxu0 0
        %2587 = vmatprep.subr.bf16.mxu0 0
        %2588 = vmatpush1.bf16.msra.mxu0 0
        %2589 = vmatprep.subr.bf16.mxu0 0
        %2590 = vmatpush1.bf16.msra.mxu0 0
        %2591 = vmatprep.subr.bf16.mxu0 0
        %2592 = vmatpush1.bf16.msra.mxu0 0
        %2593 = vmatprep.subr.bf16.mxu0 0
        %2594 = vmatpush1.bf16.msra.mxu0 0
        %2595 = vmatprep.subr.bf16.mxu0 0
        %2596 = vmatpush1.bf16.msra.mxu0 0
        %2597 = vmatprep.subr.bf16.mxu0 0
        %2598 = vmatpush1.bf16.msra.mxu0 0
        %2599 = vmatprep.subr.bf16.mxu0 0
        %2600 = vmatpush1.bf16.msra.mxu0 %v2580
        %2601 = vmatprep.subr.bf16.mxu0 0
        %2602 = vmatpush2.bf16.msra.mxu0 0
        %2603 = vmatprep.subr.bf16.mxu0 0
        %2604 = vmatpush2.bf16.msra.mxu0 0
        %2605 = vmatprep.subr.bf16.mxu0 0
        %2606 = vmatpush2.bf16.msra.mxu0 0
        %2607 = vmatprep.subr.bf16.mxu0 0
        %2608 = vmatpush2.bf16.msra.mxu0 0
        %2609 = vmatprep.subr.bf16.mxu0 0
        %2610 = vmatpush2.bf16.msra.mxu0 0
        %2611 = vmatprep.subr.bf16.mxu0 0
        %2612 = vmatpush2.bf16.msra.mxu0 0
        %2613 = vmatprep.subr.bf16.mxu0 0
        %2614 = vmatpush2.bf16.msra.mxu0 0
        %2615 = vmatprep.subr.bf16.mxu0 0
        %2616 = vmatpush2.bf16.msra.mxu0 0
        %2617 = vmatprep.mubr.bf16.mxu0 0
        %2618 = vmatmul.mubr.bf16.gmra.mxu0 %v2583
        %v2619 = vpop.f32.mrf.mxu0
        %v2620 = vadd.f32 0.0, %v2619
        %v2621 = vpop.f32.mrf.mxu0
        %v2622 = vpop.f32.mrf.mxu0
        %v2623 = vadd.f32 0.0, %v2622
        %v2624 = vpop.f32.mrf.mxu0
        %2625 = vdwg.mxu0
        %v2626 = vmul.f32 %v2573, %v2526
        %v2627 = vmul.f32 %v2576, %v2527
        %v2628 = vmul.f32 %v2620, %v2528
        %v2629 = vmul.f32 %v2623, %v2529
        %v2630 = vpack.c.bf16 %v2627, %v2626
        %v2631 = vpack.c.bf16 %v2629, %v2628
        %v2634 = vunpack.c.l.b16 %v2630
        %v2635 = vunpack.c.h.b16 %v2630
        %v2636 = vunpack.c.l.b16 %v2631
        %v2637 = vunpack.c.h.b16 %v2631
        %v2638 = vpack.c.b16 %v2634, %v2634
        %v2639 = vpack.c.b16 %v2635, %v2635
        %v2640 = vpack.c.b16 %v2636, %v2636
        %v2641 = vpack.c.b16 %v2637, %v2637
        %2642 = vrot.lane.b32.xlu0 %v2638, 24
        %v2643 = vpop.permute.xlu0 %2642
        %2644 = vrot.lane.b32.xlu0 %v2639, 24
        %v2645 = vpop.permute.xlu0 %2644
        %2646 = vrot.lane.b32.xlu0 %v2640, 24
        %v2647 = vpop.permute.xlu0 %2646
        %2648 = vrot.lane.b32.xlu0 %v2641, 24
        %v2649 = vpop.permute.xlu0 %2648
        %vm2654 = vcmask 224448
        %2655 = vst.msk [vmem:[#allocation4] sm:$0xf] %vm2654, %v2643
        %2656 = vst.msk [vmem:[#allocation4 + $0x4] sm:$0xf] %vm2654, %v2645
        %2657 = vst.msk [vmem:[#allocation4 + $0x8] sm:$0xf] %vm2654, %v2647
        %2658 = vst.msk [vmem:[#allocation4 + $0xc] sm:$0xf] %vm2654, %v2649
        %v2659 = vld [vmem:[#allocation2] sm:$0xf]
        %v2660 = vld [vmem:[#allocation2 + $0x4] sm:$0xf]
        %v2661 = vld [vmem:[#allocation2 + $0x8] sm:$0xf]
        %v2662 = vld [vmem:[#allocation2 + $0xc] sm:$0xf]
        %v2663 = vld [vmem:[#allocation3] sm:$0xf]
        %v2664 = vld [vmem:[#allocation3 + $0x4] sm:$0xf]
        %v2665 = vld [vmem:[#allocation3 + $0x8] sm:$0xf]
        %v2666 = vld [vmem:[#allocation3 + $0xc] sm:$0xf]
        %v2669 = vunpack.c.l.b16 %v2659
        %v2670 = vunpack.c.l.b16 %v2660
        %v2671 = vpack.c.b16 %v2670, %v2669
        %2672 = vrot.lane.b32.xlu0 %v2671, 100
        %v2673 = vpop.permute.xlu0 %2672
        %v2676 = vunpack.c.l.b16 %v2663
        %v2677 = vunpack.c.l.b16 %v2664
        %v2678 = vpack.c.b16 %v2677, %v2676
        %2679 = vrot.lane.b32.xlu0 %v2678, 100
        %v2680 = vpop.permute.xlu0 %2679
        %v2682 = vsel %vm598, %v2673, 0
        %v2685 = vsel %vm598, %v2680, 0
        %2687 = vmatprep.subr.bf16.mxu0 0
        %2688 = vmatpush1.bf16.xpose.msra.mxu0 0
        %2689 = vmatprep.subr.bf16.mxu0 0
        %2690 = vmatpush1.bf16.xpose.msra.mxu0 0
        %2691 = vmatprep.subr.bf16.mxu0 0
        %2692 = vmatpush1.bf16.xpose.msra.mxu0 0
        %2693 = vmatprep.subr.bf16.mxu0 0
        %2694 = vmatpush1.bf16.xpose.msra.mxu0 0
        %2695 = vmatprep.subr.bf16.mxu0 0
        %2696 = vmatpush1.bf16.xpose.msra.mxu0 0
        %2697 = vmatprep.subr.bf16.mxu0 0
        %2698 = vmatpush1.bf16.xpose.msra.mxu0 0
        %2699 = vmatprep.subr.bf16.mxu0 0
        %2700 = vmatpush1.bf16.xpose.msra.mxu0 0
        %2701 = vmatprep.subr.bf16.mxu0 0
        %2702 = vmatpush1.bf16.xpose.msra.mxu0 %v2685
        %2703 = vmatprep.subr.bf16.mxu0 0
        %2704 = vmatpush2.bf16.xpose.msra.mxu0 0
        %2705 = vmatprep.subr.bf16.mxu0 0
        %2706 = vmatpush2.bf16.xpose.msra.mxu0 0
        %2707 = vmatprep.subr.bf16.mxu0 0
        %2708 = vmatpush2.bf16.xpose.msra.mxu0 0
        %2709 = vmatprep.subr.bf16.mxu0 0
        %2710 = vmatpush2.bf16.xpose.msra.mxu0 0
        %2711 = vmatprep.subr.bf16.mxu0 0
        %2712 = vmatpush2.bf16.xpose.msra.mxu0 0
        %2713 = vmatprep.subr.bf16.mxu0 0
        %2714 = vmatpush2.bf16.xpose.msra.mxu0 0
        %2715 = vmatprep.subr.bf16.mxu0 0
        %2716 = vmatpush2.bf16.xpose.msra.mxu0 0
        %2717 = vmatprep.subr.bf16.mxu0 0
        %2718 = vmatpush2.bf16.xpose.msra.mxu0 0
        %2719 = vmatprep.mubr.bf16.mxu0 0
        %2720 = vmatmul.mubr.bf16.gmra.mxu0 %v2682
        %v2721 = vpop.f32.mrf.mxu0
        %v2722 = vadd.f32 0.0, %v2721
        %v2723 = vpop.f32.mrf.mxu0
        %v2724 = vpop.f32.mrf.mxu0
        %v2725 = vadd.f32 0.0, %v2724
        %v2726 = vpop.f32.mrf.mxu0
        %2727 = vdwg.mxu0
        %v2730 = vunpack.c.l.b16 %v2661
        %v2731 = vunpack.c.l.b16 %v2662
        %v2732 = vpack.c.b16 %v2731, %v2730
        %2733 = vrot.lane.b32.xlu0 %v2732, 100
        %v2734 = vpop.permute.xlu0 %2733
        %v2737 = vunpack.c.l.b16 %v2665
        %v2738 = vunpack.c.l.b16 %v2666
        %v2739 = vpack.c.b16 %v2738, %v2737
        %2740 = vrot.lane.b32.xlu0 %v2739, 100
        %v2741 = vpop.permute.xlu0 %2740
        %v2743 = vsel %vm598, %v2734, 0
        %v2746 = vsel %vm598, %v2741, 0
        %2748 = vmatprep.subr.bf16.mxu0 0
        %2749 = vmatpush1.bf16.xpose.msra.mxu0 0
        %2750 = vmatprep.subr.bf16.mxu0 0
        %2751 = vmatpush1.bf16.xpose.msra.mxu0 0
        %2752 = vmatprep.subr.bf16.mxu0 0
        %2753 = vmatpush1.bf16.xpose.msra.mxu0 0
        %2754 = vmatprep.subr.bf16.mxu0 0
        %2755 = vmatpush1.bf16.xpose.msra.mxu0 0
        %2756 = vmatprep.subr.bf16.mxu0 0
        %2757 = vmatpush1.bf16.xpose.msra.mxu0 0
        %2758 = vmatprep.subr.bf16.mxu0 0
        %2759 = vmatpush1.bf16.xpose.msra.mxu0 0
        %2760 = vmatprep.subr.bf16.mxu0 0
        %2761 = vmatpush1.bf16.xpose.msra.mxu0 0
        %2762 = vmatprep.subr.bf16.mxu0 0
        %2763 = vmatpush1.bf16.xpose.msra.mxu0 %v2746
        %2764 = vmatprep.subr.bf16.mxu0 0
        %2765 = vmatpush2.bf16.xpose.msra.mxu0 0
        %2766 = vmatprep.subr.bf16.mxu0 0
        %2767 = vmatpush2.bf16.xpose.msra.mxu0 0
        %2768 = vmatprep.subr.bf16.mxu0 0
        %2769 = vmatpush2.bf16.xpose.msra.mxu0 0
        %2770 = vmatprep.subr.bf16.mxu0 0
        %2771 = vmatpush2.bf16.xpose.msra.mxu0 0
        %2772 = vmatprep.subr.bf16.mxu0 0
        %2773 = vmatpush2.bf16.xpose.msra.mxu0 0
        %2774 = vmatprep.subr.bf16.mxu0 0
        %2775 = vmatpush2.bf16.xpose.msra.mxu0 0
        %2776 = vmatprep.subr.bf16.mxu0 0
        %2777 = vmatpush2.bf16.xpose.msra.mxu0 0
        %2778 = vmatprep.subr.bf16.mxu0 0
        %2779 = vmatpush2.bf16.xpose.msra.mxu0 0
        %2780 = vmatprep.mubr.bf16.mxu0 0
        %2781 = vmatmul.mubr.bf16.gmra.mxu0 %v2743
        %v2782 = vpop.f32.mrf.mxu0
        %v2783 = vadd.f32 0.0, %v2782
        %v2784 = vpop.f32.mrf.mxu0
        %v2785 = vpop.f32.mrf.mxu0
        %v2786 = vadd.f32 0.0, %v2785
        %v2787 = vpop.f32.mrf.mxu0
        %2788 = vdwg.mxu0
        %v2789 = vsel %vm703, %v2722, -inf
        %2790 = vmax.xlane.f32.xlu0 %v2789
        %v2791 = vpop.xlane.xlu0 %2790
        %v2792 = vsel %vm703, %v2725, -inf
        %2793 = vmax.xlane.f32.xlu0 %v2792
        %v2794 = vpop.xlane.xlu0 %2793
        %v2795 = vsel %vm703, %v2783, -inf
        %2796 = vmax.xlane.f32.xlu0 %v2795
        %v2797 = vpop.xlane.xlu0 %2796
        %v2798 = vsel %vm703, %v2786, -inf
        %2799 = vmax.xlane.f32.xlu0 %v2798
        %v2800 = vpop.xlane.xlu0 %2799
        %v2801 = vsub.f32 %v2722, %v2791
        %v2802 = vsub.f32 %v2725, %v2794
        %v2803 = vsub.f32 %v2783, %v2797
        %v2804 = vsub.f32 %v2786, %v2800
        %v2805 = vmul.f32 %v2801, 1.442695
        %v2806 = vpow.pop %v2805
        %v2807 = vmul.f32 %v2802, 1.442695
        %v2808 = vpow.pop %v2807
        %v2809 = vmul.f32 %v2803, 1.442695
        %v2810 = vpow.pop %v2809
        %v2811 = vmul.f32 %v2804, 1.442695
        %v2812 = vpow.pop %v2811
        %v2813 = vsel %vm703, %v2806, 0.0
        %2814 = vadd.xlane.f32.xlu0 %v2813
        %v2815 = vpop.xlane.xlu0 %2814
        %v2816 = vsel %vm703, %v2808, 0.0
        %2817 = vadd.xlane.f32.xlu0 %v2816
        %v2818 = vpop.xlane.xlu0 %2817
        %v2819 = vsel %vm703, %v2810, 0.0
        %2820 = vadd.xlane.f32.xlu0 %v2819
        %v2821 = vpop.xlane.xlu0 %2820
        %v2822 = vsel %vm703, %v2812, 0.0
        %2823 = vadd.xlane.f32.xlu0 %v2822
        %v2824 = vpop.xlane.xlu0 %2823
        %v2825 = vrcp.pop %v2815
        %v2826 = vrcp.pop %v2818
        %v2827 = vrcp.pop %v2821
        %v2828 = vrcp.pop %v2824
        %v2829 = vpack.c.bf16 %v2808, %v2806
        %v2830 = vpack.c.bf16 %v2812, %v2810
        %2831 = vrot.lane.b32.xlu0 %v2678, 68
        %v2832 = vpop.permute.xlu0 %2831
        %v2835 = vsel %vm703, %v2829, 0
        %2837 = vmatprep.subr.bf16.mxu0 0
        %2838 = vmatpush1.bf16.msra.mxu0 0
        %2839 = vmatprep.subr.bf16.mxu0 0
        %2840 = vmatpush1.bf16.msra.mxu0 0
        %2841 = vmatprep.subr.bf16.mxu0 0
        %2842 = vmatpush1.bf16.msra.mxu0 0
        %2843 = vmatprep.subr.bf16.mxu0 0
        %2844 = vmatpush1.bf16.msra.mxu0 0
        %2845 = vmatprep.subr.bf16.mxu0 0
        %2846 = vmatpush1.bf16.msra.mxu0 0
        %2847 = vmatprep.subr.bf16.mxu0 0
        %2848 = vmatpush1.bf16.msra.mxu0 0
        %2849 = vmatprep.subr.bf16.mxu0 0
        %2850 = vmatpush1.bf16.msra.mxu0 0
        %2851 = vmatprep.subr.bf16.mxu0 0
        %2852 = vmatpush1.bf16.msra.mxu0 %v2832
        %2853 = vmatprep.subr.bf16.mxu0 0
        %2854 = vmatpush2.bf16.msra.mxu0 0
        %2855 = vmatprep.subr.bf16.mxu0 0
        %2856 = vmatpush2.bf16.msra.mxu0 0
        %2857 = vmatprep.subr.bf16.mxu0 0
        %2858 = vmatpush2.bf16.msra.mxu0 0
        %2859 = vmatprep.subr.bf16.mxu0 0
        %2860 = vmatpush2.bf16.msra.mxu0 0
        %2861 = vmatprep.subr.bf16.mxu0 0
        %2862 = vmatpush2.bf16.msra.mxu0 0
        %2863 = vmatprep.subr.bf16.mxu0 0
        %2864 = vmatpush2.bf16.msra.mxu0 0
        %2865 = vmatprep.subr.bf16.mxu0 0
        %2866 = vmatpush2.bf16.msra.mxu0 0
        %2867 = vmatprep.subr.bf16.mxu0 0
        %2868 = vmatpush2.bf16.msra.mxu0 0
        %2869 = vmatprep.mubr.bf16.mxu0 0
        %2870 = vmatmul.mubr.bf16.gmra.mxu0 %v2835
        %v2871 = vpop.f32.mrf.mxu0
        %v2872 = vadd.f32 0.0, %v2871
        %v2873 = vpop.f32.mrf.mxu0
        %v2874 = vpop.f32.mrf.mxu0
        %v2875 = vadd.f32 0.0, %v2874
        %v2876 = vpop.f32.mrf.mxu0
        %2877 = vdwg.mxu0
        %2878 = vrot.lane.b32.xlu0 %v2739, 68
        %v2879 = vpop.permute.xlu0 %2878
        %v2882 = vsel %vm703, %v2830, 0
        %2884 = vmatprep.subr.bf16.mxu0 0
        %2885 = vmatpush1.bf16.msra.mxu0 0
        %2886 = vmatprep.subr.bf16.mxu0 0
        %2887 = vmatpush1.bf16.msra.mxu0 0
        %2888 = vmatprep.subr.bf16.mxu0 0
        %2889 = vmatpush1.bf16.msra.mxu0 0
        %2890 = vmatprep.subr.bf16.mxu0 0
        %2891 = vmatpush1.bf16.msra.mxu0 0
        %2892 = vmatprep.subr.bf16.mxu0 0
        %2893 = vmatpush1.bf16.msra.mxu0 0
        %2894 = vmatprep.subr.bf16.mxu0 0
        %2895 = vmatpush1.bf16.msra.mxu0 0
        %2896 = vmatprep.subr.bf16.mxu0 0
        %2897 = vmatpush1.bf16.msra.mxu0 0
        %2898 = vmatprep.subr.bf16.mxu0 0
        %2899 = vmatpush1.bf16.msra.mxu0 %v2879
        %2900 = vmatprep.subr.bf16.mxu0 0
        %2901 = vmatpush2.bf16.msra.mxu0 0
        %2902 = vmatprep.subr.bf16.mxu0 0
        %2903 = vmatpush2.bf16.msra.mxu0 0
        %2904 = vmatprep.subr.bf16.mxu0 0
        %2905 = vmatpush2.bf16.msra.mxu0 0
        %2906 = vmatprep.subr.bf16.mxu0 0
        %2907 = vmatpush2.bf16.msra.mxu0 0
        %2908 = vmatprep.subr.bf16.mxu0 0
        %2909 = vmatpush2.bf16.msra.mxu0 0
        %2910 = vmatprep.subr.bf16.mxu0 0
        %2911 = vmatpush2.bf16.msra.mxu0 0
        %2912 = vmatprep.subr.bf16.mxu0 0
        %2913 = vmatpush2.bf16.msra.mxu0 0
        %2914 = vmatprep.subr.bf16.mxu0 0
        %2915 = vmatpush2.bf16.msra.mxu0 0
        %2916 = vmatprep.mubr.bf16.mxu0 0
        %2917 = vmatmul.mubr.bf16.gmra.mxu0 %v2882
        %v2918 = vpop.f32.mrf.mxu0
        %v2919 = vadd.f32 0.0, %v2918
        %v2920 = vpop.f32.mrf.mxu0
        %v2921 = vpop.f32.mrf.mxu0
        %v2922 = vadd.f32 0.0, %v2921
        %v2923 = vpop.f32.mrf.mxu0
        %2924 = vdwg.mxu0
        %v2925 = vmul.f32 %v2872, %v2825
        %v2926 = vmul.f32 %v2875, %v2826
        %v2927 = vmul.f32 %v2919, %v2827
        %v2928 = vmul.f32 %v2922, %v2828
        %v2929 = vpack.c.bf16 %v2926, %v2925
        %v2930 = vpack.c.bf16 %v2928, %v2927
        %v2933 = vunpack.c.l.b16 %v2929
        %v2934 = vunpack.c.h.b16 %v2929
        %v2935 = vunpack.c.l.b16 %v2930
        %v2936 = vunpack.c.h.b16 %v2930
        %v2937 = vpack.c.b16 %v2933, %v2933
        %v2938 = vpack.c.b16 %v2934, %v2934
        %v2939 = vpack.c.b16 %v2935, %v2935
        %v2940 = vpack.c.b16 %v2936, %v2936
        %2941 = vrot.lane.b32.xlu0 %v2937, 28
        %v2942 = vpop.permute.xlu0 %2941
        %2943 = vrot.lane.b32.xlu0 %v2938, 28
        %v2944 = vpop.permute.xlu0 %2943
        %2945 = vrot.lane.b32.xlu0 %v2939, 28
        %v2946 = vpop.permute.xlu0 %2945
        %2947 = vrot.lane.b32.xlu0 %v2940, 28
        %v2948 = vpop.permute.xlu0 %2947
        %vm2953 = vcmask 257248
        %2954 = vst.msk [vmem:[#allocation4] sm:$0xf] %vm2953, %v2942
        %2955 = vst.msk [vmem:[#allocation4 + $0x4] sm:$0xf] %vm2953, %v2944
        %2956 = vst.msk [vmem:[#allocation4 + $0x8] sm:$0xf] %vm2953, %v2946
        %2957 = vst.msk [vmem:[#allocation4 + $0xc] sm:$0xf] %vm2953, %v2948
        %v2958 = vld [vmem:[#allocation4] sm:$0xf]
        %v2959 = vld [vmem:[#allocation4 + $0x4] sm:$0xf]
        %v2960 = vld [vmem:[#allocation4 + $0x8] sm:$0xf]
        %v2961 = vld [vmem:[#allocation4 + $0xc] sm:$0xf]
        %v2962 = vld [vmem:[%s4] sm:$0xf]
        %v2963 = vld [vmem:[%s4 + $0x4] sm:$0xf]
        %v2964 = vld [vmem:[%s4 + $0x8] sm:$0xf]
        %v2965 = vld [vmem:[%s4 + $0xc] sm:$0xf]
        %v2966 = vld [vmem:[%s5] sm:$0x1]
        %v2968 = vlaneseq
        %v2969 = vshrl.u32 %v2968, 7
        %v2970 = vsub.s32 0, %v2969
        %v2971 = vrot.slane %v2966, %v2970
        %v2977 = vunpack.c.l.b16 %v2958
        %v2978 = vunpack.c.l.b16 %v2959
        %v2979 = vunpack.c.l.b16 %v2960
        %v2980 = vunpack.c.l.b16 %v2961
        %v2981 = vpack.c.b16 %v2978, %v2977
        %v2982 = vpack.c.b16 %v2980, %v2979
        %v2987 = vunpack.c.l.b16 %v2962
        %v2988 = vunpack.c.l.b16 %v2963
        %v2989 = vunpack.c.l.b16 %v2964
        %v2990 = vunpack.c.l.b16 %v2965
        %v2991 = vpack.c.b16 %v2988, %v2987
        %v2992 = vpack.c.b16 %v2990, %v2989
        %v2996 = vsel %vm397, %v2981, 0
        %v2999 = vsel %vm397, %v2982, 0
        %3001 = vmatprep.subr.bf16.mxu0 0
        %3002 = vmatpush1.bf16.msra.mxu0 0
        %3003 = vmatprep.subr.bf16.mxu0 0
        %3004 = vmatpush1.bf16.msra.mxu0 0
        %3005 = vmatprep.subr.bf16.mxu0 0
        %3006 = vmatpush1.bf16.msra.mxu0 0
        %3007 = vmatprep.subr.bf16.mxu0 0
        %3008 = vmatpush1.bf16.msra.mxu0 0
        %3009 = vmatprep.subr.bf16.mxu0 0
        %3010 = vmatpush1.bf16.msra.mxu0 0
        %3011 = vmatprep.subr.bf16.mxu0 0
        %3012 = vmatpush1.bf16.msra.mxu0 0
        %3013 = vmatprep.subr.bf16.mxu0 0
        %3014 = vmatpush1.bf16.msra.mxu0 %v2992
        %3015 = vmatprep.subr.bf16.mxu0 0
        %3016 = vmatpush1.bf16.msra.mxu0 %v2991
        %3017 = vmatprep.subr.bf16.mxu0 0
        %3018 = vmatpush2.bf16.msra.mxu0 0
        %3019 = vmatprep.subr.bf16.mxu0 0
        %3020 = vmatpush2.bf16.msra.mxu0 0
        %3021 = vmatprep.subr.bf16.mxu0 0
        %3022 = vmatpush2.bf16.msra.mxu0 0
        %3023 = vmatprep.subr.bf16.mxu0 0
        %3024 = vmatpush2.bf16.msra.mxu0 0
        %3025 = vmatprep.subr.bf16.mxu0 0
        %3026 = vmatpush2.bf16.msra.mxu0 0
        %3027 = vmatprep.subr.bf16.mxu0 0
        %3028 = vmatpush2.bf16.msra.mxu0 0
        %3029 = vmatprep.subr.bf16.mxu0 0
        %3030 = vmatpush2.bf16.msra.mxu0 0
        %3031 = vmatprep.subr.bf16.mxu0 0
        %3032 = vmatpush2.bf16.msra.mxu0 0
        %3033 = vmatprep.mubr.bf16.mxu0 0
        %3034 = vmatmul.mubr.bf16.gmra.mxu0 %v2996
        %v3035 = vpop.f32.mrf.mxu0
        %v3036 = vadd.f32 %v2971, %v3035
        %v3037 = vpop.f32.mrf.mxu0
        %v3038 = vpop.f32.mrf.mxu0
        %v3039 = vadd.f32 %v2971, %v3038
        %v3040 = vpop.f32.mrf.mxu0
        %3041 = vmatprep.mubr.bf16.mxu0 0
        %3042 = vmatmul.mubr.bf16.gmra.mxu0 %v2999
        %v3043 = vpop.f32.mrf.mxu0
        %v3044 = vadd.f32 %v2971, %v3043
        %v3045 = vpop.f32.mrf.mxu0
        %v3046 = vpop.f32.mrf.mxu0
        %v3047 = vadd.f32 %v2971, %v3046
        %v3048 = vpop.f32.mrf.mxu0
        %3049 = vdwg.mxu0
        %3050 = vst [vmem:[%s326] sm:$0xff] %v3036
        %3051 = vst [vmem:[%s326 + $0x8] sm:$0xff] %v3039
        %3052 = vst [vmem:[%s326 + $0x10] sm:$0xff] %v3044
        %3053 = vst [vmem:[%s326 + $0x18] sm:$0xff] %v3047
        %s3054 = sand.u32 %s190, 1
        %s3055 = scalar_lea.sflag [#allocation6], %s3054
        %s3056 = sand.u32 %s190, 1
        %s3057 = smul.addr %s3056, 32
        %s3058 = scalar_lea.vmem [#allocation5], %s3057
        // Predicated region
        $region45: #{tpu_custom_call.1} parent=43 // pred_check
          %p3059 = pneg %p200
        $region46: #{tpu_custom_call.1} parent=43 // pred_check_branch
          %3061 = sbr.rel (%p3059) target = $region48
        $region47: #{tpu_custom_call.1} parent=43 // pred_region
          %s3062 = smul.u32 4, %s20
          %s3064 = ssub.s32 512, 512
          %3065 = vsyncadd %s3055, %s3064
          %s3066 = smul.addr %s3062, 128
          %s3067 = scalar_lea.hbm %s6, %s3066
          %s3068 = sshll.u32 %s3058, 4
          %s3069 = int_to_ptr.vmem [resolvable:$true] %s3068
          %3074 = dma.vmem_to_hbm [thread:$0]  %s3069, 512, %s3067, %s3055, 128, 128, 8
        $region48: #{tpu_custom_call.1} parent=43 // pred_fallthru
          _
      $region44: #{tpu_custom_call.1} parent=5 // pred_fallthru
        _
      %p3075 = scmp.le.s32.totalorder 2, %s15
      // Predicated region
      $region49: #{tpu_custom_call.1} parent=5 // pred_check
        %p3076 = pneg %p3075
      $region50: #{tpu_custom_call.1} parent=5 // pred_check_branch
        %3078 = sbr.rel (%p3076) target = $region52
      $region51: #{tpu_custom_call.1} parent=5 // pred_region
        %s3079 = ssub.s32 %s15, 2
        // Predicated region
        $region53: #{tpu_custom_call.1} parent=51 // pred_check
          %p3080 = pneg %p206
        $region54: #{tpu_custom_call.1} parent=51 // pred_check_branch
          %3082 = sbr.rel (%p3080) target = $region56
        $region55: #{tpu_custom_call.1} parent=51 // pred_region
          %s3083 = sand.u32 %s191, 1
          %s3084 = scalar_lea.sflag [#allocation6], %s3083
          %s3085 = sand.u32 %s191, 1
          %s3086 = smul.addr %s3085, 32
          %s3087 = scalar_lea.vmem [#allocation5], %s3086
          %3088 = dma.done %s3084, 512
        $region56: #{tpu_custom_call.1} parent=51 // pred_fallthru
          _
      $region52: #{tpu_custom_call.1} parent=5 // pred_fallthru
        _
    $region6: #{tpu_custom_call.1} parent=1 // loop_footer
      %s19 = sadd.s32 1, %s15
    $region7: #{tpu_custom_call.1} parent=1 // loop_footer_branch
      %14 = sbr.rel target = $region3
    $region8: #{tpu_custom_call.1} parent=1 // loop_exit
      _
    %3089 = vsyncpa [#allocation6], 1
    %s3090 = scalar_lea.sflag [#allocation6], 1
    %3091 = vsyncpa %s3090, 1

</llo_original>
